<compile_context>
chip_gen: v7x
topology: tpu7x:2x2x1
jax: 0.10.0
libtpu: 0.0.40
codegen_flags: <defaults>
</compile_context>

<pallas_src>
import math
from functools import partial

import jax
import jax.numpy as jnp
from jax.experimental import pallas as pl
from jax.experimental.pallas import tpu as pltpu


# Order of per-layer weight tensors passed to the kernel (after x and memory).
_WEIGHT_NAMES = (
    'sa_wq', 'sa_wk', 'sa_wv', 'sa_bq', 'sa_bk', 'sa_bv', 'sa_wo', 'sa_bo',
    'ca_wq', 'ca_wk', 'ca_wv', 'ca_bq', 'ca_bk', 'ca_bv', 'ca_wo', 'ca_bo',
    'w1', 'b1', 'w2', 'b2',
    'ln1_g', 'ln1_b', 'ln2_g', 'ln2_b', 'ln3_g', 'ln3_b',
)

# Weights that feed the MXU (candidates for bf16 storage on v6e/v7x).
_MATMUL_WEIGHTS = frozenset({
    'sa_wq', 'sa_wk', 'sa_wv', 'sa_wo',
    'ca_wq', 'ca_wk', 'ca_wv', 'ca_wo',
    'w1', 'w2',
})


def _round_up(n, m):
    return ((n + m - 1) // m) * m


# --------------------------------------------------------------------------------------
# Fused decoder-stack kernel: one grid step == one decoder layer
# --------------------------------------------------------------------------------------

def _decoder_stack_kernel(
        x_ref, mem_ref,
        sa_wq, sa_wk, sa_wv, sa_bq, sa_bk, sa_bv, sa_wo, sa_bo,
        ca_wq, ca_wk, ca_wv, ca_bq, ca_bk, ca_bv, ca_wo, ca_bo,
        w1, b1, w2, b2,
        ln1_g, ln1_b, ln2_g, ln2_b, ln3_g, ln3_b,
        o_ref,
        x_carry,
        *, B, T, S, T_pad, S_pad, E, H, eps):
    dh = E // H
    scale = 1.0 / math.sqrt(dh)
    layer = pl.program_id(0)
    last = pl.num_programs(0) - 1

    # Load the original tgt into the persistent activation carry at the first layer.
    @pl.when(layer == 0)
    def _init():
        x_carry[...] = x_ref[...]

    x2d = x_carry[...]                                    # (B*T_pad, E), batch-major rows

    def mm(a, w_ref, b_ref=None):
        """Row-major linear: a @ W (+ b).  Activations cast to the weight dtype (bf16-ready),
        accumulation in f32 on the MXU."""
        out = jax.lax.dot_general(
            a.astype(w_ref.dtype), w_ref[0],
            dimension_numbers=(((1,), (0,)), ((), ())),
            preferred_element_type=jnp.float32)
        if b_ref is not None:
            out = out + b_ref[0]
        return out

    def layer_norm(h, g_ref, b_ref):
        # torch LayerNorm: biased variance over the last axis, in f32.
        mu = jnp.mean(h, axis=-1, keepdims=True)
        d = h - mu
        var = jnp.mean(d * d, axis=-1, keepdims=True)
        return d * jax.lax.rsqrt(var + eps) * g_ref[0] + b_ref[0]

    def attend(q2d, k2d, v2d, n_kv_pad, n_kv):
        """q2d: (B*T_pad, E); k2d/v2d: (B*n_kv_pad, E).  Heads are contiguous dh-wide column
        blocks (torch MultiheadAttention split).  All reshapes are layout-free (rows padded
        to multiples of 8); padded key rows are masked out of the softmax."""
        q3 = q2d.reshape(B, T_pad, E)
        k3 = k2d.reshape(B, n_kv_pad, E)
        v3 = v2d.reshape(B, n_kv_pad, E)
        mask = None
        if n_kv_pad != n_kv:   # static
            mask = jax.lax.broadcasted_iota(jnp.int32, (1, T_pad, n_kv_pad), 2) < n_kv
        heads = []
        for h in range(H):
            cs = slice(h * dh, (h + 1) * dh)
            s = jax.lax.dot_general(                       # (B, T_pad, n_kv_pad), B-batched
                q3[:, :, cs], k3[:, :, cs],
                dimension_numbers=(((2,), (2,)), ((0,), (0,))),
                preferred_element_type=jnp.float32) * scale
            if mask is not None:
                s = jnp.where(mask, s, -1e30)
            s = s - jnp.max(s, axis=-1, keepdims=True)
            p = jnp.exp(s)
            p = p / jnp.sum(p, axis=-1, keepdims=True)     # exact divide (review concern)
            heads.append(jax.lax.dot_general(              # (B, T_pad, dh), B-batched
                p, v3[:, :, cs],
                dimension_numbers=(((2,), (1,)), ((0,), (0,))),
                preferred_element_type=jnp.float32))
        # Head-concat stays in vregs (lane-dense), feeds the out-proj matmul directly.
        return jnp.concatenate(heads, axis=-1).reshape(B * T_pad, E)

    # ---------------- self-attention block ----------------
    q = mm(x2d, sa_wq, sa_bq)
    k = mm(x2d, sa_wk, sa_bk)
    v = mm(x2d, sa_wv, sa_bv)
    a = attend(q, k, v, T_pad, T)
    x2d = layer_norm(x2d + mm(a, sa_wo, sa_bo), ln1_g, ln1_b)

    # ---------------- cross-attention block ----------------
    mem2d = mem_ref[...]                                   # (B*S_pad, E)
    q = mm(x2d, ca_wq, ca_bq)
    k = mm(mem2d, ca_wk, ca_bk)                            # one flattened matmul, bias once
    v = mm(mem2d, ca_wv, ca_bv)
    a = attend(q, k, v, S_pad, S)
    x2d = layer_norm(x2d + mm(a, ca_wo, ca_bo), ln2_g, ln2_b)

    # ---------------- feed-forward block ----------------
    hdn = jnp.maximum(mm(x2d, w1, b1), 0.0)
    x2d = layer_norm(x2d + mm(hdn, w2, b2), ln3_g, ln3_b)

    @pl.when(layer < last)
    def _carry():
        x_carry[...] = x2d

    @pl.when(layer == last)
    def _finalize():
        o_ref[...] = x2d


def decoder_forward_pallas(tgt, memory, stacked, H, eps=1e-5):
    """tgt: (T, B, E), memory: (S, B, E); stacked: dict of per-layer-stacked weights."""
    T, B, E = tgt.shape
    S = memory.shape[0]
    L = stacked['sa_wq'].shape[0]
    T_pad = _round_up(T, 8)
    S_pad = _round_up(S, 8)

    # One-time layout glue (plain JAX): batch-major rows, padded to sublane multiples so all
    # in-kernel (B*n, E) <-> (B, n, E) reshapes are layout-free.
    x3 = jnp.transpose(tgt, (1, 0, 2))                     # (B, T, E)
    if T_pad != T:
        x3 = jnp.pad(x3, ((0, 0), (0, T_pad - T), (0, 0)))
    x2d = x3.reshape(B * T_pad, E)
    m3 = jnp.transpose(memory, (1, 0, 2))                  # (B, S, E)
    if S_pad != S:
        m3 = jnp.pad(m3, ((0, 0), (0, S_pad - S), (0, 0)))
    mem2d = m3.reshape(B * S_pad, E)

    weights = [stacked[n] for n in _WEIGHT_NAMES]

    def const_spec(shape):
        nd = len(shape)
        return pl.BlockSpec(tuple(shape), lambda l, _nd=nd: (0,) * _nd)

    def per_layer_spec(shape):
        nd = len(shape)
        return pl.BlockSpec((1,) + tuple(shape[1:]),
                            lambda l, _nd=nd: (l,) + (0,) * (_nd - 1))

    in_specs = ([const_spec(x2d.shape), const_spec(mem2d.shape)]
                + [per_layer_spec(w.shape) for w in weights])

    out2d = pl.pallas_call(
        partial(_decoder_stack_kernel,
                B=B, T=T, S=S, T_pad=T_pad, S_pad=S_pad, E=E, H=H, eps=eps),
        out_shape=jax.ShapeDtypeStruct((B * T_pad, E), jnp.float32),
        grid=(L,),
        in_specs=in_specs,
        out_specs=pl.BlockSpec((B * T_pad, E), lambda l: (0, 0)),
        scratch_shapes=[pltpu.VMEM((B * T_pad, E), jnp.float32)],   # activation carry
        compiler_params=pltpu.CompilerParams(
            dimension_semantics=("arbitrary",)),                    # layers are sequential
    )(x2d, mem2d, *weights)

    out3 = out2d.reshape(B, T_pad, E)[:, :T, :]
    return jnp.transpose(out3, (1, 0, 2))


# --------------------------------------------------------------------------------------
# Parameter preparation: torch-style params -> pre-transposed / pre-split / stacked tensors
# --------------------------------------------------------------------------------------

def prep_stacked_params(params, dtype=jnp.float32):
    """dtype: storage dtype for MXU weight matrices (use jnp.bfloat16 on v6e/v7x;
    biases / LayerNorm params stay f32)."""
    E = params[0]['sa_out_w'].shape[0]
    per_layer = []
    for p in params:
        iw, ib = p['sa_in_w'], p['sa_in_b']
        cw, cb = p['ca_in_w'], p['ca_in_b']
        per_layer.append({
            'sa_wq': iw[:E].T, 'sa_wk': iw[E:2 * E].T, 'sa_wv': iw[2 * E:].T,      # (E, E)
            'sa_bq': ib[:E].reshape(1, -1), 'sa_bk': ib[E:2 * E].reshape(1, -1),
            'sa_bv': ib[2 * E:].reshape(1, -1),
            'sa_wo': p['sa_out_w'].T, 'sa_bo': p['sa_out_b'].reshape(1, -1),
            'ca_wq': cw[:E].T, 'ca_wk': cw[E:2 * E].T, 'ca_wv': cw[2 * E:].T,
            'ca_bq': cb[:E].reshape(1, -1), 'ca_bk': cb[E:2 * E].reshape(1, -1),
            'ca_bv': cb[2 * E:].reshape(1, -1),
            'ca_wo': p['ca_out_w'].T, 'ca_bo': p['ca_out_b'].reshape(1, -1),
            'w1': p['w1'].T, 'b1': p['b1'].reshape(1, -1),                          # (E, F)
            'w2': p['w2'].T, 'b2': p['b2'].reshape(1, -1),                          # (F, E)
            'ln1_g': p['ln1_g'].reshape(1, -1), 'ln1_b': p['ln1_b'].reshape(1, -1),
            'ln2_g': p['ln2_g'].reshape(1, -1), 'ln2_b': p['ln2_b'].reshape(1, -1),
            'ln3_g': p['ln3_g'].reshape(1, -1), 'ln3_b': p['ln3_b'].reshape(1, -1),
        })
    stacked = {}
    for name in _WEIGHT_NAMES:
        arr = jnp.stack([jnp.asarray(d[name]) for d in per_layer], axis=0)
        if name in _MATMUL_WEIGHTS:
            arr = arr.astype(dtype)
        stacked[name] = arr
    return stacked


# --------------------------------------------------------------------------------------
# Pure-JAX reference (torch semantics) for the correctness check
# --------------------------------------------------------------------------------------

def _mha_ref(query, key_, value, in_w, in_b, out_w, out_b, H):
    Tq, Bq, E = query.shape
    Sk = key_.shape[0]
    dh = E // H
    scale = 1.0 / math.sqrt(dh)
    wq, wk, wv = in_w[:E], in_w[E:2 * E], in_w[2 * E:]
    bq, bk, bv = in_b[:E], in_b[E:2 * E], in_b[2 * E:]
    q = query.reshape(Tq * Bq, E) @ wq.T + bq
    k = key_.reshape(Sk * Bq, E) @ wk.T + bk
    v = value.reshape(Sk * Bq, E) @ wv.T + bv
    q = q.reshape(Tq, Bq, H, dh).transpose(1, 2, 0, 3).reshape(Bq * H, Tq, dh)
    k = k.reshape(Sk, Bq, H, dh).transpose(1, 2, 0, 3).reshape(Bq * H, Sk, dh)
    v = v.reshape(Sk, Bq, H, dh).transpose(1, 2, 0, 3).reshape(Bq * H, Sk, dh)
    s = jnp.einsum('btd,bsd->bts', q, k) * scale
    s = s - s.max(-1, keepdims=True)
    p = jnp.exp(s)
    p = p / p.sum(-1, keepdims=True)
    o = jnp.einsum('bts,bsd->btd', p, v)
    o = o.reshape(Bq, H, Tq, dh).transpose(2, 0, 1, 3).reshape(Tq * Bq, E)
    return (o @ out_w.T + out_b).reshape(Tq, Bq, E)


def _add_ln_ref(x, y, g, b, eps=1e-5):
    h = x + y
    mu = h.mean(-1, keepdims=True)
    d = h - mu
    var = (d * d).mean(-1, keepdims=True)
    return d * jax.lax.rsqrt(var + eps) * g + b


def _decoder_layer_ref(x, memory, p, H):
    sa = _mha_ref(x, x, x, p['sa_in_w'], p['sa_in_b'], p['sa_out_w'], p['sa_out_b'], H)
    x = _add_ln_ref(x, sa, p['ln1_g'], p['ln1_b'])
    ca = _mha_ref(x, memory, memory, p['ca_in_w'], p['ca_in_b'], p['ca_out_w'], p['ca_out_b'], H)
    x = _add_ln_ref(x, ca, p['ln2_g'], p['ln2_b'])
    h = jnp.maximum(x @ p['w1'].T + p['b1'], 0.0)
    ff = h @ p['w2'].T + p['b2']
    return _add_ln_ref(x, ff, p['ln3_g'], p['ln3_b'])


def decoder_forward_ref(tgt, memory, params, H):
    x = tgt
    for p in params:
        x = _decoder_layer_ref(x, memory, p, H)
    return x


# --------------------------------------------------------------------------------------
# Deterministic parameter init (shapes as in nn.TransformerDecoderLayer.__init__)
# --------------------------------------------------------------------------------------

def init_params(key, E, F, L):
    layers = []
    for l in range(L):
        ks = jax.random.split(jax.random.fold_in(key, l), 12)
        w = lambda k, shape, s: jax.random.normal(k, shape, jnp.float32) * s
        p = {
            'sa_in_w': w(ks[0], (3 * E, E), 1.0 / math.sqrt(E)),
            'sa_in_b': w(ks[1], (3 * E,), 0.02),
            'sa_out_w': w(ks[2], (E, E), 1.0 / math.sqrt(E)),
            'sa_out_b': w(ks[3], (E,), 0.02),
            'ca_in_w': w(ks[4], (3 * E, E), 1.0 / math.sqrt(E)),
            'ca_in_b': w(ks[5], (3 * E,), 0.02),
            'ca_out_w': w(ks[6], (E, E), 1.0 / math.sqrt(E)),
            'ca_out_b': w(ks[7], (E,), 0.02),
            'w1': w(ks[8], (F, E), 1.0 / math.sqrt(E)),
            'b1': w(ks[9], (F,), 0.02),
            'w2': w(ks[10], (E, F), 1.0 / math.sqrt(F)),
            'b2': w(ks[11], (E,), 0.02),
            'ln1_g': jnp.ones((E,), jnp.float32), 'ln1_b': jnp.zeros((E,), jnp.float32),
            'ln2_g': jnp.ones((E,), jnp.float32), 'ln2_b': jnp.zeros((E,), jnp.float32),
            'ln3_g': jnp.ones((E,), jnp.float32), 'ln3_b': jnp.zeros((E,), jnp.float32),
        }
        layers.append(p)
    return layers


# --------------------------------------------------------------------------------------

if __name__ == "__main__":
    embed_dims, heads, dim_feedforward, num_layers = 32, 4, 64, 2
    T, S, B = 8, 12, 2   # tgt seq, memory seq, batch (S=12 exercises the padded-KV mask path)

    key = jax.random.PRNGKey(0)
    k_params, k_tgt, k_mem = jax.random.split(key, 3)
    params = init_params(k_params, embed_dims, dim_feedforward, num_layers)
    tgt = jax.random.normal(k_tgt, (T, B, embed_dims), jnp.float32)
    memory = jax.random.normal(k_mem, (S, B, embed_dims), jnp.float32)

    # f32 weights here for a tight correctness check; pass dtype=jnp.bfloat16 on v6e/v7x.
    stacked = prep_stacked_params(params)

    fwd = jax.jit(lambda t, m, w: decoder_forward_pallas(t, m, w, heads))
    out = jax.block_until_ready(fwd(tgt, memory, stacked))

    # sanity check against a pure-JAX reference of the same math (exact softmax divide now,
    # so the tolerance is tight again)
    ref = decoder_forward_ref(tgt, memory, params, heads)
    err = float(jnp.max(jnp.abs(out - ref)))
    assert out.shape == (T, B, embed_dims)
    assert err < 1e-3, f"mismatch vs reference: {err}"

    print("KERNEL_OK")
</pallas_src>

<mosaic_0001>
module attributes {stable_mosaic.version = 11 : i64} {
  func.func @_decoder_stack_kernel(%arg0: i32, %arg1: memref<16x32xf32, #tpu.memory_space<vmem>>, %arg2: memref<32x32xf32, #tpu.memory_space<vmem>>, %arg3: memref<1x32x32xf32, #tpu.memory_space<vmem>>, %arg4: memref<1x32x32xf32, #tpu.memory_space<vmem>>, %arg5: memref<1x32x32xf32, #tpu.memory_space<vmem>>, %arg6: memref<1x1x32xf32, #tpu.memory_space<vmem>>, %arg7: memref<1x1x32xf32, #tpu.memory_space<vmem>>, %arg8: memref<1x1x32xf32, #tpu.memory_space<vmem>>, %arg9: memref<1x32x32xf32, #tpu.memory_space<vmem>>, %arg10: memref<1x1x32xf32, #tpu.memory_space<vmem>>, %arg11: memref<1x32x32xf32, #tpu.memory_space<vmem>>, %arg12: memref<1x32x32xf32, #tpu.memory_space<vmem>>, %arg13: memref<1x32x32xf32, #tpu.memory_space<vmem>>, %arg14: memref<1x1x32xf32, #tpu.memory_space<vmem>>, %arg15: memref<1x1x32xf32, #tpu.memory_space<vmem>>, %arg16: memref<1x1x32xf32, #tpu.memory_space<vmem>>, %arg17: memref<1x32x32xf32, #tpu.memory_space<vmem>>, %arg18: memref<1x1x32xf32, #tpu.memory_space<vmem>>, %arg19: memref<1x32x64xf32, #tpu.memory_space<vmem>>, %arg20: memref<1x1x64xf32, #tpu.memory_space<vmem>>, %arg21: memref<1x64x32xf32, #tpu.memory_space<vmem>>, %arg22: memref<1x1x32xf32, #tpu.memory_space<vmem>>, %arg23: memref<1x1x32xf32, #tpu.memory_space<vmem>>, %arg24: memref<1x1x32xf32, #tpu.memory_space<vmem>>, %arg25: memref<1x1x32xf32, #tpu.memory_space<vmem>>, %arg26: memref<1x1x32xf32, #tpu.memory_space<vmem>>, %arg27: memref<1x1x32xf32, #tpu.memory_space<vmem>>, %arg28: memref<1x1x32xf32, #tpu.memory_space<vmem>>, %arg29: memref<16x32xf32, #tpu.memory_space<vmem>>, %arg30: memref<16x32xf32, #tpu.memory_space<vmem>>) attributes {dimension_semantics = [#tpu.dimension_semantics<arbitrary>], iteration_bounds = array<i64: 2>, scalar_prefetch = 0 : i64, scratch_operands = 1 : i64, tpu.core_type = #tpu.core_type<tc>, window_params = [{pipeline_mode = #tpu.pipeline_mode<synchronous>, transform_indices = @transform_0, window_bounds = array<i64: 16, 32>}, {pipeline_mode = #tpu.pipeline_mode<synchronous>, transform_indices = @transform_1, window_bounds = array<i64: 32, 32>}, {transform_indices = @transform_2, window_bounds = array<i64: 1, 32, 32>}, {transform_indices = @transform_3, window_bounds = array<i64: 1, 32, 32>}, {transform_indices = @transform_4, window_bounds = array<i64: 1, 32, 32>}, {transform_indices = @transform_5, window_bounds = array<i64: 1, 1, 32>}, {transform_indices = @transform_6, window_bounds = array<i64: 1, 1, 32>}, {transform_indices = @transform_7, window_bounds = array<i64: 1, 1, 32>}, {transform_indices = @transform_8, window_bounds = array<i64: 1, 32, 32>}, {transform_indices = @transform_9, window_bounds = array<i64: 1, 1, 32>}, {transform_indices = @transform_10, window_bounds = array<i64: 1, 32, 32>}, {transform_indices = @transform_11, window_bounds = array<i64: 1, 32, 32>}, {transform_indices = @transform_12, window_bounds = array<i64: 1, 32, 32>}, {transform_indices = @transform_13, window_bounds = array<i64: 1, 1, 32>}, {transform_indices = @transform_14, window_bounds = array<i64: 1, 1, 32>}, {transform_indices = @transform_15, window_bounds = array<i64: 1, 1, 32>}, {transform_indices = @transform_16, window_bounds = array<i64: 1, 32, 32>}, {transform_indices = @transform_17, window_bounds = array<i64: 1, 1, 32>}, {transform_indices = @transform_18, window_bounds = array<i64: 1, 32, 64>}, {transform_indices = @transform_19, window_bounds = array<i64: 1, 1, 64>}, {transform_indices = @transform_20, window_bounds = array<i64: 1, 64, 32>}, {transform_indices = @transform_21, window_bounds = array<i64: 1, 1, 32>}, {transform_indices = @transform_22, window_bounds = array<i64: 1, 1, 32>}, {transform_indices = @transform_23, window_bounds = array<i64: 1, 1, 32>}, {transform_indices = @transform_24, window_bounds = array<i64: 1, 1, 32>}, {transform_indices = @transform_25, window_bounds = array<i64: 1, 1, 32>}, {transform_indices = @transform_26, window_bounds = array<i64: 1, 1, 32>}, {transform_indices = @transform_27, window_bounds = array<i64: 1, 1, 32>}, {pipeline_mode = #tpu.pipeline_mode<synchronous>, transform_indices = @transform_28, window_bounds = array<i64: 16, 32>}]} {
    %c0_i32 = arith.constant 0 : i32
    %0 = arith.cmpi eq, %arg0, %c0_i32 : i32
    %1 = arith.extui %0 : i1 to i32
    %c0_i32_0 = arith.constant 0 : i32
    %2 = arith.cmpi ne, %1, %c0_i32_0 : i32
    scf.if %2 {
      %c0_154 = arith.constant 0 : index
      %c0_155 = arith.constant 0 : index
      %315 = vector.load %arg1[%c0_154, %c0_155] : memref<16x32xf32, #tpu.memory_space<vmem>>, vector<16x32xf32>
      %c0_156 = arith.constant 0 : index
      %c0_157 = arith.constant 0 : index
      %316 = vector.load %arg30[%c0_156, %c0_157] : memref<16x32xf32, #tpu.memory_space<vmem>>, vector<16x32xf32>
      tpu.vector_store %arg30[%c0_156, %c0_157], %315 {strides = array<i32>} : memref<16x32xf32, #tpu.memory_space<vmem>>, vector<16x32xf32>,
    } else {
    }
    %c0 = arith.constant 0 : index
    %c0_1 = arith.constant 0 : index
    %3 = vector.load %arg30[%c0, %c0_1] : memref<16x32xf32, #tpu.memory_space<vmem>>, vector<16x32xf32>
    %c0_2 = arith.constant 0 : index
    %c0_3 = arith.constant 0 : index
    %c0_4 = arith.constant 0 : index
    %4 = vector.load %arg3[%c0_2, %c0_3, %c0_4] : memref<1x32x32xf32, #tpu.memory_space<vmem>>, vector<1x32x32xf32>
    %5 = vector.shape_cast %4 : vector<1x32x32xf32> to vector<32x32xf32>
    %cst = arith.constant dense<0.000000e+00> : vector<16x32xf32>
    %6 = tpu.matmul %3, %5, %cst {dimension_numbers = #tpu.dot_dimension_numbers<[1], [0], [0], [1], [0, 0, 1, 1], [], []>} : vector<16x32xf32>, vector<32x32xf32>, vector<16x32xf32> -> vector<16x32xf32>
    %c0_5 = arith.constant 0 : index
    %c0_6 = arith.constant 0 : index
    %c0_7 = arith.constant 0 : index
    %7 = vector.load %arg6[%c0_5, %c0_6, %c0_7] : memref<1x1x32xf32, #tpu.memory_space<vmem>>, vector<1x1x32xf32>
    %8 = vector.shape_cast %7 : vector<1x1x32xf32> to vector<1x32xf32>
    %9 = vector.broadcast %8 : vector<1x32xf32> to vector<16x32xf32>
    %10 = arith.addf %6, %9 : vector<16x32xf32>
    %c0_8 = arith.constant 0 : index
    %c0_9 = arith.constant 0 : index
    %c0_10 = arith.constant 0 : index
    %11 = vector.load %arg4[%c0_8, %c0_9, %c0_10] : memref<1x32x32xf32, #tpu.memory_space<vmem>>, vector<1x32x32xf32>
    %12 = vector.shape_cast %11 : vector<1x32x32xf32> to vector<32x32xf32>
    %cst_11 = arith.constant dense<0.000000e+00> : vector<16x32xf32>
    %13 = tpu.matmul %3, %12, %cst_11 {dimension_numbers = #tpu.dot_dimension_numbers<[1], [0], [0], [1], [0, 0, 1, 1], [], []>} : vector<16x32xf32>, vector<32x32xf32>, vector<16x32xf32> -> vector<16x32xf32>
    %c0_12 = arith.constant 0 : index
    %c0_13 = arith.constant 0 : index
    %c0_14 = arith.constant 0 : index
    %14 = vector.load %arg7[%c0_12, %c0_13, %c0_14] : memref<1x1x32xf32, #tpu.memory_space<vmem>>, vector<1x1x32xf32>
    %15 = vector.shape_cast %14 : vector<1x1x32xf32> to vector<1x32xf32>
    %16 = vector.broadcast %15 : vector<1x32xf32> to vector<16x32xf32>
    %17 = arith.addf %13, %16 : vector<16x32xf32>
    %c0_15 = arith.constant 0 : index
    %c0_16 = arith.constant 0 : index
    %c0_17 = arith.constant 0 : index
    %18 = vector.load %arg5[%c0_15, %c0_16, %c0_17] : memref<1x32x32xf32, #tpu.memory_space<vmem>>, vector<1x32x32xf32>
    %19 = vector.shape_cast %18 : vector<1x32x32xf32> to vector<32x32xf32>
    %cst_18 = arith.constant dense<0.000000e+00> : vector<16x32xf32>
    %20 = tpu.matmul %3, %19, %cst_18 {dimension_numbers = #tpu.dot_dimension_numbers<[1], [0], [0], [1], [0, 0, 1, 1], [], []>} : vector<16x32xf32>, vector<32x32xf32>, vector<16x32xf32> -> vector<16x32xf32>
    %c0_19 = arith.constant 0 : index
    %c0_20 = arith.constant 0 : index
    %c0_21 = arith.constant 0 : index
    %21 = vector.load %arg8[%c0_19, %c0_20, %c0_21] : memref<1x1x32xf32, #tpu.memory_space<vmem>>, vector<1x1x32xf32>
    %22 = vector.shape_cast %21 : vector<1x1x32xf32> to vector<1x32xf32>
    %23 = vector.broadcast %22 : vector<1x32xf32> to vector<16x32xf32>
    %24 = arith.addf %20, %23 : vector<16x32xf32>
    %25 = vector.shape_cast %10 : vector<16x32xf32> to vector<2x8x32xf32>
    %26 = vector.shape_cast %17 : vector<16x32xf32> to vector<2x8x32xf32>
    %27 = vector.shape_cast %24 : vector<16x32xf32> to vector<2x8x32xf32>
    %28 = vector.extract_strided_slice %25 {offsets = [0, 0, 0], sizes = [2, 8, 8], strides = [1, 1, 1]} : vector<2x8x32xf32> to vector<2x8x8xf32>
    %29 = vector.extract_strided_slice %26 {offsets = [0, 0, 0], sizes = [2, 8, 8], strides = [1, 1, 1]} : vector<2x8x32xf32> to vector<2x8x8xf32>
    %cst_22 = arith.constant dense<0.000000e+00> : vector<2x8x8xf32>
    %30 = tpu.matmul %28, %29, %cst_22 {dimension_numbers = #tpu.dot_dimension_numbers<[2], [2], [1], [1], [0, 0, 0, 1, 1, 1], [0], [0]>} : vector<2x8x8xf32>, vector<2x8x8xf32>, vector<2x8x8xf32> -> vector<2x8x8xf32>
    %cst_23 = arith.constant 0.353553385 : f32
    %31 = vector.broadcast %cst_23 : f32 to vector<2x8x8xf32>
    %32 = arith.mulf %30, %31 : vector<2x8x8xf32>
    %cst_24 = arith.constant dense<0xFF800000> : vector<2x8xf32>
    %33 = vector.multi_reduction <maximumf>, %32, %cst_24 [2] : vector<2x8x8xf32> to vector<2x8xf32>
    %34 = vector.shape_cast %33 : vector<2x8xf32> to vector<2x8x1xf32>
    %35 = vector.broadcast %34 : vector<2x8x1xf32> to vector<2x8x8xf32>
    %36 = arith.subf %32, %35 : vector<2x8x8xf32>
    %37 = math.exp %36 : vector<2x8x8xf32>
    %cst_25 = arith.constant dense<0.000000e+00> : vector<2x8xf32>
    %38 = vector.multi_reduction <add>, %37, %cst_25 [2] : vector<2x8x8xf32> to vector<2x8xf32>
    %39 = vector.shape_cast %38 : vector<2x8xf32> to vector<2x8x1xf32>
    %40 = vector.broadcast %39 : vector<2x8x1xf32> to vector<2x8x8xf32>
    %41 = arith.divf %37, %40 : vector<2x8x8xf32>
    %42 = vector.extract_strided_slice %27 {offsets = [0, 0, 0], sizes = [2, 8, 8], strides = [1, 1, 1]} : vector<2x8x32xf32> to vector<2x8x8xf32>
    %cst_26 = arith.constant dense<0.000000e+00> : vector<2x8x8xf32>
    %43 = tpu.matmul %41, %42, %cst_26 {dimension_numbers = #tpu.dot_dimension_numbers<[2], [1], [1], [2], [0, 0, 0, 1, 1, 2], [0], [0]>} : vector<2x8x8xf32>, vector<2x8x8xf32>, vector<2x8x8xf32> -> vector<2x8x8xf32>
    %44 = vector.extract_strided_slice %25 {offsets = [0, 0, 8], sizes = [2, 8, 8], strides = [1, 1, 1]} : vector<2x8x32xf32> to vector<2x8x8xf32>
    %45 = vector.extract_strided_slice %26 {offsets = [0, 0, 8], sizes = [2, 8, 8], strides = [1, 1, 1]} : vector<2x8x32xf32> to vector<2x8x8xf32>
    %cst_27 = arith.constant dense<0.000000e+00> : vector<2x8x8xf32>
    %46 = tpu.matmul %44, %45, %cst_27 {dimension_numbers = #tpu.dot_dimension_numbers<[2], [2], [1], [1], [0, 0, 0, 1, 1, 1], [0], [0]>} : vector<2x8x8xf32>, vector<2x8x8xf32>, vector<2x8x8xf32> -> vector<2x8x8xf32>
    %cst_28 = arith.constant 0.353553385 : f32
    %47 = vector.broadcast %cst_28 : f32 to vector<2x8x8xf32>
    %48 = arith.mulf %46, %47 : vector<2x8x8xf32>
    %cst_29 = arith.constant dense<0xFF800000> : vector<2x8xf32>
    %49 = vector.multi_reduction <maximumf>, %48, %cst_29 [2] : vector<2x8x8xf32> to vector<2x8xf32>
    %50 = vector.shape_cast %49 : vector<2x8xf32> to vector<2x8x1xf32>
    %51 = vector.broadcast %50 : vector<2x8x1xf32> to vector<2x8x8xf32>
    %52 = arith.subf %48, %51 : vector<2x8x8xf32>
    %53 = math.exp %52 : vector<2x8x8xf32>
    %cst_30 = arith.constant dense<0.000000e+00> : vector<2x8xf32>
    %54 = vector.multi_reduction <add>, %53, %cst_30 [2] : vector<2x8x8xf32> to vector<2x8xf32>
    %55 = vector.shape_cast %54 : vector<2x8xf32> to vector<2x8x1xf32>
    %56 = vector.broadcast %55 : vector<2x8x1xf32> to vector<2x8x8xf32>
    %57 = arith.divf %53, %56 : vector<2x8x8xf32>
    %58 = vector.extract_strided_slice %27 {offsets = [0, 0, 8], sizes = [2, 8, 8], strides = [1, 1, 1]} : vector<2x8x32xf32> to vector<2x8x8xf32>
    %cst_31 = arith.constant dense<0.000000e+00> : vector<2x8x8xf32>
    %59 = tpu.matmul %57, %58, %cst_31 {dimension_numbers = #tpu.dot_dimension_numbers<[2], [1], [1], [2], [0, 0, 0, 1, 1, 2], [0], [0]>} : vector<2x8x8xf32>, vector<2x8x8xf32>, vector<2x8x8xf32> -> vector<2x8x8xf32>
    %60 = vector.extract_strided_slice %25 {offsets = [0, 0, 16], sizes = [2, 8, 8], strides = [1, 1, 1]} : vector<2x8x32xf32> to vector<2x8x8xf32>
    %61 = vector.extract_strided_slice %26 {offsets = [0, 0, 16], sizes = [2, 8, 8], strides = [1, 1, 1]} : vector<2x8x32xf32> to vector<2x8x8xf32>
    %cst_32 = arith.constant dense<0.000000e+00> : vector<2x8x8xf32>
    %62 = tpu.matmul %60, %61, %cst_32 {dimension_numbers = #tpu.dot_dimension_numbers<[2], [2], [1], [1], [0, 0, 0, 1, 1, 1], [0], [0]>} : vector<2x8x8xf32>, vector<2x8x8xf32>, vector<2x8x8xf32> -> vector<2x8x8xf32>
    %cst_33 = arith.constant 0.353553385 : f32
    %63 = vector.broadcast %cst_33 : f32 to vector<2x8x8xf32>
    %64 = arith.mulf %62, %63 : vector<2x8x8xf32>
    %cst_34 = arith.constant dense<0xFF800000> : vector<2x8xf32>
    %65 = vector.multi_reduction <maximumf>, %64, %cst_34 [2] : vector<2x8x8xf32> to vector<2x8xf32>
    %66 = vector.shape_cast %65 : vector<2x8xf32> to vector<2x8x1xf32>
    %67 = vector.broadcast %66 : vector<2x8x1xf32> to vector<2x8x8xf32>
    %68 = arith.subf %64, %67 : vector<2x8x8xf32>
    %69 = math.exp %68 : vector<2x8x8xf32>
    %cst_35 = arith.constant dense<0.000000e+00> : vector<2x8xf32>
    %70 = vector.multi_reduction <add>, %69, %cst_35 [2] : vector<2x8x8xf32> to vector<2x8xf32>
    %71 = vector.shape_cast %70 : vector<2x8xf32> to vector<2x8x1xf32>
    %72 = vector.broadcast %71 : vector<2x8x1xf32> to vector<2x8x8xf32>
    %73 = arith.divf %69, %72 : vector<2x8x8xf32>
    %74 = vector.extract_strided_slice %27 {offsets = [0, 0, 16], sizes = [2, 8, 8], strides = [1, 1, 1]} : vector<2x8x32xf32> to vector<2x8x8xf32>
    %cst_36 = arith.constant dense<0.000000e+00> : vector<2x8x8xf32>
    %75 = tpu.matmul %73, %74, %cst_36 {dimension_numbers = #tpu.dot_dimension_numbers<[2], [1], [1], [2], [0, 0, 0, 1, 1, 2], [0], [0]>} : vector<2x8x8xf32>, vector<2x8x8xf32>, vector<2x8x8xf32> -> vector<2x8x8xf32>
    %76 = vector.extract_strided_slice %25 {offsets = [0, 0, 24], sizes = [2, 8, 8], strides = [1, 1, 1]} : vector<2x8x32xf32> to vector<2x8x8xf32>
    %77 = vector.extract_strided_slice %26 {offsets = [0, 0, 24], sizes = [2, 8, 8], strides = [1, 1, 1]} : vector<2x8x32xf32> to vector<2x8x8xf32>
    %cst_37 = arith.constant dense<0.000000e+00> : vector<2x8x8xf32>
    %78 = tpu.matmul %76, %77, %cst_37 {dimension_numbers = #tpu.dot_dimension_numbers<[2], [2], [1], [1], [0, 0, 0, 1, 1, 1], [0], [0]>} : vector<2x8x8xf32>, vector<2x8x8xf32>, vector<2x8x8xf32> -> vector<2x8x8xf32>
    %cst_38 = arith.constant 0.353553385 : f32
    %79 = vector.broadcast %cst_38 : f32 to vector<2x8x8xf32>
    %80 = arith.mulf %78, %79 : vector<2x8x8xf32>
    %cst_39 = arith.constant dense<0xFF800000> : vector<2x8xf32>
    %81 = vector.multi_reduction <maximumf>, %80, %cst_39 [2] : vector<2x8x8xf32> to vector<2x8xf32>
    %82 = vector.shape_cast %81 : vector<2x8xf32> to vector<2x8x1xf32>
    %83 = vector.broadcast %82 : vector<2x8x1xf32> to vector<2x8x8xf32>
    %84 = arith.subf %80, %83 : vector<2x8x8xf32>
    %85 = math.exp %84 : vector<2x8x8xf32>
    %cst_40 = arith.constant dense<0.000000e+00> : vector<2x8xf32>
    %86 = vector.multi_reduction <add>, %85, %cst_40 [2] : vector<2x8x8xf32> to vector<2x8xf32>
    %87 = vector.shape_cast %86 : vector<2x8xf32> to vector<2x8x1xf32>
    %88 = vector.broadcast %87 : vector<2x8x1xf32> to vector<2x8x8xf32>
    %89 = arith.divf %85, %88 : vector<2x8x8xf32>
    %90 = vector.extract_strided_slice %27 {offsets = [0, 0, 24], sizes = [2, 8, 8], strides = [1, 1, 1]} : vector<2x8x32xf32> to vector<2x8x8xf32>
    %cst_41 = arith.constant dense<0.000000e+00> : vector<2x8x8xf32>
    %91 = tpu.matmul %89, %90, %cst_41 {dimension_numbers = #tpu.dot_dimension_numbers<[2], [1], [1], [2], [0, 0, 0, 1, 1, 2], [0], [0]>} : vector<2x8x8xf32>, vector<2x8x8xf32>, vector<2x8x8xf32> -> vector<2x8x8xf32>
    %92 = tpu.concatenate %43, %59, %75, %91 in 2 : vector<2x8x8xf32>, vector<2x8x8xf32>, vector<2x8x8xf32>, vector<2x8x8xf32> -> vector<2x8x32xf32>
    %93 = vector.shape_cast %92 : vector<2x8x32xf32> to vector<16x32xf32>
    %c0_42 = arith.constant 0 : index
    %c0_43 = arith.constant 0 : index
    %c0_44 = arith.constant 0 : index
    %94 = vector.load %arg9[%c0_42, %c0_43, %c0_44] : memref<1x32x32xf32, #tpu.memory_space<vmem>>, vector<1x32x32xf32>
    %95 = vector.shape_cast %94 : vector<1x32x32xf32> to vector<32x32xf32>
    %cst_45 = arith.constant dense<0.000000e+00> : vector<16x32xf32>
    %96 = tpu.matmul %93, %95, %cst_45 {dimension_numbers = #tpu.dot_dimension_numbers<[1], [0], [0], [1], [0, 0, 1, 1], [], []>} : vector<16x32xf32>, vector<32x32xf32>, vector<16x32xf32> -> vector<16x32xf32>
    %c0_46 = arith.constant 0 : index
    %c0_47 = arith.constant 0 : index
    %c0_48 = arith.constant 0 : index
    %97 = vector.load %arg10[%c0_46, %c0_47, %c0_48] : memref<1x1x32xf32, #tpu.memory_space<vmem>>, vector<1x1x32xf32>
    %98 = vector.shape_cast %97 : vector<1x1x32xf32> to vector<1x32xf32>
    %99 = vector.broadcast %98 : vector<1x32xf32> to vector<16x32xf32>
    %100 = arith.addf %96, %99 : vector<16x32xf32>
    %101 = arith.addf %3, %100 : vector<16x32xf32>
    %cst_49 = arith.constant dense<0.000000e+00> : vector<16xf32>
    %102 = vector.multi_reduction <add>, %101, %cst_49 [1] : vector<16x32xf32> to vector<16xf32>
    %103 = vector.shape_cast %102 : vector<16xf32> to vector<16x1xf32>
    %cst_50 = arith.constant 3.200000e+01 : f32
    %104 = vector.broadcast %cst_50 : f32 to vector<16x1xf32>
    %105 = arith.divf %103, %104 : vector<16x1xf32>
    %106 = vector.broadcast %105 : vector<16x1xf32> to vector<16x32xf32>
    %107 = arith.subf %101, %106 : vector<16x32xf32>
    %108 = arith.mulf %107, %107 : vector<16x32xf32>
    %cst_51 = arith.constant dense<0.000000e+00> : vector<16xf32>
    %109 = vector.multi_reduction <add>, %108, %cst_51 [1] : vector<16x32xf32> to vector<16xf32>
    %110 = vector.shape_cast %109 : vector<16xf32> to vector<16x1xf32>
    %cst_52 = arith.constant 3.200000e+01 : f32
    %111 = vector.broadcast %cst_52 : f32 to vector<16x1xf32>
    %112 = arith.divf %110, %111 : vector<16x1xf32>
    %cst_53 = arith.constant 9.99999974E-6 : f32
    %113 = vector.broadcast %cst_53 : f32 to vector<16x1xf32>
    %114 = arith.addf %112, %113 : vector<16x1xf32>
    %115 = math.rsqrt %114 : vector<16x1xf32>
    %116 = vector.broadcast %115 : vector<16x1xf32> to vector<16x32xf32>
    %117 = arith.mulf %107, %116 : vector<16x32xf32>
    %c0_54 = arith.constant 0 : index
    %c0_55 = arith.constant 0 : index
    %c0_56 = arith.constant 0 : index
    %118 = vector.load %arg23[%c0_54, %c0_55, %c0_56] : memref<1x1x32xf32, #tpu.memory_space<vmem>>, vector<1x1x32xf32>
    %119 = vector.shape_cast %118 : vector<1x1x32xf32> to vector<1x32xf32>
    %120 = vector.broadcast %119 : vector<1x32xf32> to vector<16x32xf32>
    %121 = arith.mulf %117, %120 : vector<16x32xf32>
    %c0_57 = arith.constant 0 : index
    %c0_58 = arith.constant 0 : index
    %c0_59 = arith.constant 0 : index
    %122 = vector.load %arg24[%c0_57, %c0_58, %c0_59] : memref<1x1x32xf32, #tpu.memory_space<vmem>>, vector<1x1x32xf32>
    %123 = vector.shape_cast %122 : vector<1x1x32xf32> to vector<1x32xf32>
    %124 = vector.broadcast %123 : vector<1x32xf32> to vector<16x32xf32>
    %125 = arith.addf %121, %124 : vector<16x32xf32>
    %c0_60 = arith.constant 0 : index
    %c0_61 = arith.constant 0 : index
    %126 = vector.load %arg2[%c0_60, %c0_61] : memref<32x32xf32, #tpu.memory_space<vmem>>, vector<32x32xf32>
    %c0_62 = arith.constant 0 : index
    %c0_63 = arith.constant 0 : index
    %c0_64 = arith.constant 0 : index
    %127 = vector.load %arg11[%c0_62, %c0_63, %c0_64] : memref<1x32x32xf32, #tpu.memory_space<vmem>>, vector<1x32x32xf32>
    %128 = vector.shape_cast %127 : vector<1x32x32xf32> to vector<32x32xf32>
    %cst_65 = arith.constant dense<0.000000e+00> : vector<16x32xf32>
    %129 = tpu.matmul %125, %128, %cst_65 {dimension_numbers = #tpu.dot_dimension_numbers<[1], [0], [0], [1], [0, 0, 1, 1], [], []>} : vector<16x32xf32>, vector<32x32xf32>, vector<16x32xf32> -> vector<16x32xf32>
    %c0_66 = arith.constant 0 : index
    %c0_67 = arith.constant 0 : index
    %c0_68 = arith.constant 0 : index
    %130 = vector.load %arg14[%c0_66, %c0_67, %c0_68] : memref<1x1x32xf32, #tpu.memory_space<vmem>>, vector<1x1x32xf32>
    %131 = vector.shape_cast %130 : vector<1x1x32xf32> to vector<1x32xf32>
    %132 = vector.broadcast %131 : vector<1x32xf32> to vector<16x32xf32>
    %133 = arith.addf %129, %132 : vector<16x32xf32>
    %c0_69 = arith.constant 0 : index
    %c0_70 = arith.constant 0 : index
    %c0_71 = arith.constant 0 : index
    %134 = vector.load %arg12[%c0_69, %c0_70, %c0_71] : memref<1x32x32xf32, #tpu.memory_space<vmem>>, vector<1x32x32xf32>
    %135 = vector.shape_cast %134 : vector<1x32x32xf32> to vector<32x32xf32>
    %cst_72 = arith.constant dense<0.000000e+00> : vector<32x32xf32>
    %136 = tpu.matmul %126, %135, %cst_72 {dimension_numbers = #tpu.dot_dimension_numbers<[1], [0], [0], [1], [0, 0, 1, 1], [], []>} : vector<32x32xf32>, vector<32x32xf32>, vector<32x32xf32> -> vector<32x32xf32>
    %c0_73 = arith.constant 0 : index
    %c0_74 = arith.constant 0 : index
    %c0_75 = arith.constant 0 : index
    %137 = vector.load %arg15[%c0_73, %c0_74, %c0_75] : memref<1x1x32xf32, #tpu.memory_space<vmem>>, vector<1x1x32xf32>
    %138 = vector.shape_cast %137 : vector<1x1x32xf32> to vector<1x32xf32>
    %139 = vector.broadcast %138 : vector<1x32xf32> to vector<32x32xf32>
    %140 = arith.addf %136, %139 : vector<32x32xf32>
    %c0_76 = arith.constant 0 : index
    %c0_77 = arith.constant 0 : index
    %c0_78 = arith.constant 0 : index
    %141 = vector.load %arg13[%c0_76, %c0_77, %c0_78] : memref<1x32x32xf32, #tpu.memory_space<vmem>>, vector<1x32x32xf32>
    %142 = vector.shape_cast %141 : vector<1x32x32xf32> to vector<32x32xf32>
    %cst_79 = arith.constant dense<0.000000e+00> : vector<32x32xf32>
    %143 = tpu.matmul %126, %142, %cst_79 {dimension_numbers = #tpu.dot_dimension_numbers<[1], [0], [0], [1], [0, 0, 1, 1], [], []>} : vector<32x32xf32>, vector<32x32xf32>, vector<32x32xf32> -> vector<32x32xf32>
    %c0_80 = arith.constant 0 : index
    %c0_81 = arith.constant 0 : index
    %c0_82 = arith.constant 0 : index
    %144 = vector.load %arg16[%c0_80, %c0_81, %c0_82] : memref<1x1x32xf32, #tpu.memory_space<vmem>>, vector<1x1x32xf32>
    %145 = vector.shape_cast %144 : vector<1x1x32xf32> to vector<1x32xf32>
    %146 = vector.broadcast %145 : vector<1x32xf32> to vector<32x32xf32>
    %147 = arith.addf %143, %146 : vector<32x32xf32>
    %148 = vector.shape_cast %133 : vector<16x32xf32> to vector<2x8x32xf32>
    %149 = vector.shape_cast %140 : vector<32x32xf32> to vector<2x16x32xf32>
    %150 = vector.shape_cast %147 : vector<32x32xf32> to vector<2x16x32xf32>
    %151 = tpu.iota {dimensions = array<i32: 2>} : vector<1x8x16xi32>
    %c12_i32 = arith.constant 12 : i32
    %152 = vector.broadcast %c12_i32 : i32 to vector<1x8x16xi32>
    %153 = arith.cmpi slt, %151, %152 : vector<1x8x16xi32>
    %154 = vector.extract_strided_slice %148 {offsets = [0, 0, 0], sizes = [2, 8, 8], strides = [1, 1, 1]} : vector<2x8x32xf32> to vector<2x8x8xf32>
    %155 = vector.extract_strided_slice %149 {offsets = [0, 0, 0], sizes = [2, 16, 8], strides = [1, 1, 1]} : vector<2x16x32xf32> to vector<2x16x8xf32>
    %cst_83 = arith.constant dense<0.000000e+00> : vector<2x8x16xf32>
    %156 = tpu.matmul %154, %155, %cst_83 {dimension_numbers = #tpu.dot_dimension_numbers<[2], [2], [1], [1], [0, 0, 0, 1, 1, 1], [0], [0]>} : vector<2x8x8xf32>, vector<2x16x8xf32>, vector<2x8x16xf32> -> vector<2x8x16xf32>
    %cst_84 = arith.constant 0.353553385 : f32
    %157 = vector.broadcast %cst_84 : f32 to vector<2x8x16xf32>
    %158 = arith.mulf %156, %157 : vector<2x8x16xf32>
    %cst_85 = arith.constant -1.000000e+30 : f32
    %159 = vector.shape_cast %153 : vector<1x8x16xi1> to vector<1x8x16xi1>
    %160 = vector.broadcast %159 : vector<1x8x16xi1> to vector<2x8x16xi1>
    %161 = vector.broadcast %cst_85 : f32 to vector<2x8x16xf32>
    %162 = arith.select %160, %158, %161 : vector<2x8x16xi1>, vector<2x8x16xf32>
    %cst_86 = arith.constant dense<0xFF800000> : vector<2x8xf32>
    %163 = vector.multi_reduction <maximumf>, %162, %cst_86 [2] : vector<2x8x16xf32> to vector<2x8xf32>
    %164 = vector.shape_cast %163 : vector<2x8xf32> to vector<2x8x1xf32>
    %165 = vector.broadcast %164 : vector<2x8x1xf32> to vector<2x8x16xf32>
    %166 = arith.subf %162, %165 : vector<2x8x16xf32>
    %167 = math.exp %166 : vector<2x8x16xf32>
    %cst_87 = arith.constant dense<0.000000e+00> : vector<2x8xf32>
    %168 = vector.multi_reduction <add>, %167, %cst_87 [2] : vector<2x8x16xf32> to vector<2x8xf32>
    %169 = vector.shape_cast %168 : vector<2x8xf32> to vector<2x8x1xf32>
    %170 = vector.broadcast %169 : vector<2x8x1xf32> to vector<2x8x16xf32>
    %171 = arith.divf %167, %170 : vector<2x8x16xf32>
    %172 = vector.extract_strided_slice %150 {offsets = [0, 0, 0], sizes = [2, 16, 8], strides = [1, 1, 1]} : vector<2x16x32xf32> to vector<2x16x8xf32>
    %cst_88 = arith.constant dense<0.000000e+00> : vector<2x8x8xf32>
    %173 = tpu.matmul %171, %172, %cst_88 {dimension_numbers = #tpu.dot_dimension_numbers<[2], [1], [1], [2], [0, 0, 0, 1, 1, 2], [0], [0]>} : vector<2x8x16xf32>, vector<2x16x8xf32>, vector<2x8x8xf32> -> vector<2x8x8xf32>
    %174 = vector.extract_strided_slice %148 {offsets = [0, 0, 8], sizes = [2, 8, 8], strides = [1, 1, 1]} : vector<2x8x32xf32> to vector<2x8x8xf32>
    %175 = vector.extract_strided_slice %149 {offsets = [0, 0, 8], sizes = [2, 16, 8], strides = [1, 1, 1]} : vector<2x16x32xf32> to vector<2x16x8xf32>
    %cst_89 = arith.constant dense<0.000000e+00> : vector<2x8x16xf32>
    %176 = tpu.matmul %174, %175, %cst_89 {dimension_numbers = #tpu.dot_dimension_numbers<[2], [2], [1], [1], [0, 0, 0, 1, 1, 1], [0], [0]>} : vector<2x8x8xf32>, vector<2x16x8xf32>, vector<2x8x16xf32> -> vector<2x8x16xf32>
    %cst_90 = arith.constant 0.353553385 : f32
    %177 = vector.broadcast %cst_90 : f32 to vector<2x8x16xf32>
    %178 = arith.mulf %176, %177 : vector<2x8x16xf32>
    %cst_91 = arith.constant -1.000000e+30 : f32
    %179 = vector.shape_cast %153 : vector<1x8x16xi1> to vector<1x8x16xi1>
    %180 = vector.broadcast %179 : vector<1x8x16xi1> to vector<2x8x16xi1>
    %181 = vector.broadcast %cst_91 : f32 to vector<2x8x16xf32>
    %182 = arith.select %180, %178, %181 : vector<2x8x16xi1>, vector<2x8x16xf32>
    %cst_92 = arith.constant dense<0xFF800000> : vector<2x8xf32>
    %183 = vector.multi_reduction <maximumf>, %182, %cst_92 [2] : vector<2x8x16xf32> to vector<2x8xf32>
    %184 = vector.shape_cast %183 : vector<2x8xf32> to vector<2x8x1xf32>
    %185 = vector.broadcast %184 : vector<2x8x1xf32> to vector<2x8x16xf32>
    %186 = arith.subf %182, %185 : vector<2x8x16xf32>
    %187 = math.exp %186 : vector<2x8x16xf32>
    %cst_93 = arith.constant dense<0.000000e+00> : vector<2x8xf32>
    %188 = vector.multi_reduction <add>, %187, %cst_93 [2] : vector<2x8x16xf32> to vector<2x8xf32>
    %189 = vector.shape_cast %188 : vector<2x8xf32> to vector<2x8x1xf32>
    %190 = vector.broadcast %189 : vector<2x8x1xf32> to vector<2x8x16xf32>
    %191 = arith.divf %187, %190 : vector<2x8x16xf32>
    %192 = vector.extract_strided_slice %150 {offsets = [0, 0, 8], sizes = [2, 16, 8], strides = [1, 1, 1]} : vector<2x16x32xf32> to vector<2x16x8xf32>
    %cst_94 = arith.constant dense<0.000000e+00> : vector<2x8x8xf32>
    %193 = tpu.matmul %191, %192, %cst_94 {dimension_numbers = #tpu.dot_dimension_numbers<[2], [1], [1], [2], [0, 0, 0, 1, 1, 2], [0], [0]>} : vector<2x8x16xf32>, vector<2x16x8xf32>, vector<2x8x8xf32> -> vector<2x8x8xf32>
    %194 = vector.extract_strided_slice %148 {offsets = [0, 0, 16], sizes = [2, 8, 8], strides = [1, 1, 1]} : vector<2x8x32xf32> to vector<2x8x8xf32>
    %195 = vector.extract_strided_slice %149 {offsets = [0, 0, 16], sizes = [2, 16, 8], strides = [1, 1, 1]} : vector<2x16x32xf32> to vector<2x16x8xf32>
    %cst_95 = arith.constant dense<0.000000e+00> : vector<2x8x16xf32>
    %196 = tpu.matmul %194, %195, %cst_95 {dimension_numbers = #tpu.dot_dimension_numbers<[2], [2], [1], [1], [0, 0, 0, 1, 1, 1], [0], [0]>} : vector<2x8x8xf32>, vector<2x16x8xf32>, vector<2x8x16xf32> -> vector<2x8x16xf32>
    %cst_96 = arith.constant 0.353553385 : f32
    %197 = vector.broadcast %cst_96 : f32 to vector<2x8x16xf32>
    %198 = arith.mulf %196, %197 : vector<2x8x16xf32>
    %cst_97 = arith.constant -1.000000e+30 : f32
    %199 = vector.shape_cast %153 : vector<1x8x16xi1> to vector<1x8x16xi1>
    %200 = vector.broadcast %199 : vector<1x8x16xi1> to vector<2x8x16xi1>
    %201 = vector.broadcast %cst_97 : f32 to vector<2x8x16xf32>
    %202 = arith.select %200, %198, %201 : vector<2x8x16xi1>, vector<2x8x16xf32>
    %cst_98 = arith.constant dense<0xFF800000> : vector<2x8xf32>
    %203 = vector.multi_reduction <maximumf>, %202, %cst_98 [2] : vector<2x8x16xf32> to vector<2x8xf32>
    %204 = vector.shape_cast %203 : vector<2x8xf32> to vector<2x8x1xf32>
    %205 = vector.broadcast %204 : vector<2x8x1xf32> to vector<2x8x16xf32>
    %206 = arith.subf %202, %205 : vector<2x8x16xf32>
    %207 = math.exp %206 : vector<2x8x16xf32>
    %cst_99 = arith.constant dense<0.000000e+00> : vector<2x8xf32>
    %208 = vector.multi_reduction <add>, %207, %cst_99 [2] : vector<2x8x16xf32> to vector<2x8xf32>
    %209 = vector.shape_cast %208 : vector<2x8xf32> to vector<2x8x1xf32>
    %210 = vector.broadcast %209 : vector<2x8x1xf32> to vector<2x8x16xf32>
    %211 = arith.divf %207, %210 : vector<2x8x16xf32>
    %212 = vector.extract_strided_slice %150 {offsets = [0, 0, 16], sizes = [2, 16, 8], strides = [1, 1, 1]} : vector<2x16x32xf32> to vector<2x16x8xf32>
    %cst_100 = arith.constant dense<0.000000e+00> : vector<2x8x8xf32>
    %213 = tpu.matmul %211, %212, %cst_100 {dimension_numbers = #tpu.dot_dimension_numbers<[2], [1], [1], [2], [0, 0, 0, 1, 1, 2], [0], [0]>} : vector<2x8x16xf32>, vector<2x16x8xf32>, vector<2x8x8xf32> -> vector<2x8x8xf32>
    %214 = vector.extract_strided_slice %148 {offsets = [0, 0, 24], sizes = [2, 8, 8], strides = [1, 1, 1]} : vector<2x8x32xf32> to vector<2x8x8xf32>
    %215 = vector.extract_strided_slice %149 {offsets = [0, 0, 24], sizes = [2, 16, 8], strides = [1, 1, 1]} : vector<2x16x32xf32> to vector<2x16x8xf32>
    %cst_101 = arith.constant dense<0.000000e+00> : vector<2x8x16xf32>
    %216 = tpu.matmul %214, %215, %cst_101 {dimension_numbers = #tpu.dot_dimension_numbers<[2], [2], [1], [1], [0, 0, 0, 1, 1, 1], [0], [0]>} : vector<2x8x8xf32>, vector<2x16x8xf32>, vector<2x8x16xf32> -> vector<2x8x16xf32>
    %cst_102 = arith.constant 0.353553385 : f32
    %217 = vector.broadcast %cst_102 : f32 to vector<2x8x16xf32>
    %218 = arith.mulf %216, %217 : vector<2x8x16xf32>
    %cst_103 = arith.constant -1.000000e+30 : f32
    %219 = vector.shape_cast %153 : vector<1x8x16xi1> to vector<1x8x16xi1>
    %220 = vector.broadcast %219 : vector<1x8x16xi1> to vector<2x8x16xi1>
    %221 = vector.broadcast %cst_103 : f32 to vector<2x8x16xf32>
    %222 = arith.select %220, %218, %221 : vector<2x8x16xi1>, vector<2x8x16xf32>
    %cst_104 = arith.constant dense<0xFF800000> : vector<2x8xf32>
    %223 = vector.multi_reduction <maximumf>, %222, %cst_104 [2] : vector<2x8x16xf32> to vector<2x8xf32>
    %224 = vector.shape_cast %223 : vector<2x8xf32> to vector<2x8x1xf32>
    %225 = vector.broadcast %224 : vector<2x8x1xf32> to vector<2x8x16xf32>
    %226 = arith.subf %222, %225 : vector<2x8x16xf32>
    %227 = math.exp %226 : vector<2x8x16xf32>
    %cst_105 = arith.constant dense<0.000000e+00> : vector<2x8xf32>
    %228 = vector.multi_reduction <add>, %227, %cst_105 [2] : vector<2x8x16xf32> to vector<2x8xf32>
    %229 = vector.shape_cast %228 : vector<2x8xf32> to vector<2x8x1xf32>
    %230 = vector.broadcast %229 : vector<2x8x1xf32> to vector<2x8x16xf32>
    %231 = arith.divf %227, %230 : vector<2x8x16xf32>
    %232 = vector.extract_strided_slice %150 {offsets = [0, 0, 24], sizes = [2, 16, 8], strides = [1, 1, 1]} : vector<2x16x32xf32> to vector<2x16x8xf32>
    %cst_106 = arith.constant dense<0.000000e+00> : vector<2x8x8xf32>
    %233 = tpu.matmul %231, %232, %cst_106 {dimension_numbers = #tpu.dot_dimension_numbers<[2], [1], [1], [2], [0, 0, 0, 1, 1, 2], [0], [0]>} : vector<2x8x16xf32>, vector<2x16x8xf32>, vector<2x8x8xf32> -> vector<2x8x8xf32>
    %234 = tpu.concatenate %173, %193, %213, %233 in 2 : vector<2x8x8xf32>, vector<2x8x8xf32>, vector<2x8x8xf32>, vector<2x8x8xf32> -> vector<2x8x32xf32>
    %235 = vector.shape_cast %234 : vector<2x8x32xf32> to vector<16x32xf32>
    %c0_107 = arith.constant 0 : index
    %c0_108 = arith.constant 0 : index
    %c0_109 = arith.constant 0 : index
    %236 = vector.load %arg17[%c0_107, %c0_108, %c0_109] : memref<1x32x32xf32, #tpu.memory_space<vmem>>, vector<1x32x32xf32>
    %237 = vector.shape_cast %236 : vector<1x32x32xf32> to vector<32x32xf32>
    %cst_110 = arith.constant dense<0.000000e+00> : vector<16x32xf32>
    %238 = tpu.matmul %235, %237, %cst_110 {dimension_numbers = #tpu.dot_dimension_numbers<[1], [0], [0], [1], [0, 0, 1, 1], [], []>} : vector<16x32xf32>, vector<32x32xf32>, vector<16x32xf32> -> vector<16x32xf32>
    %c0_111 = arith.constant 0 : index
    %c0_112 = arith.constant 0 : index
    %c0_113 = arith.constant 0 : index
    %239 = vector.load %arg18[%c0_111, %c0_112, %c0_113] : memref<1x1x32xf32, #tpu.memory_space<vmem>>, vector<1x1x32xf32>
    %240 = vector.shape_cast %239 : vector<1x1x32xf32> to vector<1x32xf32>
    %241 = vector.broadcast %240 : vector<1x32xf32> to vector<16x32xf32>
    %242 = arith.addf %238, %241 : vector<16x32xf32>
    %243 = arith.addf %125, %242 : vector<16x32xf32>
    %cst_114 = arith.constant dense<0.000000e+00> : vector<16xf32>
    %244 = vector.multi_reduction <add>, %243, %cst_114 [1] : vector<16x32xf32> to vector<16xf32>
    %245 = vector.shape_cast %244 : vector<16xf32> to vector<16x1xf32>
    %cst_115 = arith.constant 3.200000e+01 : f32
    %246 = vector.broadcast %cst_115 : f32 to vector<16x1xf32>
    %247 = arith.divf %245, %246 : vector<16x1xf32>
    %248 = vector.broadcast %247 : vector<16x1xf32> to vector<16x32xf32>
    %249 = arith.subf %243, %248 : vector<16x32xf32>
    %250 = arith.mulf %249, %249 : vector<16x32xf32>
    %cst_116 = arith.constant dense<0.000000e+00> : vector<16xf32>
    %251 = vector.multi_reduction <add>, %250, %cst_116 [1] : vector<16x32xf32> to vector<16xf32>
    %252 = vector.shape_cast %251 : vector<16xf32> to vector<16x1xf32>
    %cst_117 = arith.constant 3.200000e+01 : f32
    %253 = vector.broadcast %cst_117 : f32 to vector<16x1xf32>
    %254 = arith.divf %252, %253 : vector<16x1xf32>
    %cst_118 = arith.constant 9.99999974E-6 : f32
    %255 = vector.broadcast %cst_118 : f32 to vector<16x1xf32>
    %256 = arith.addf %254, %255 : vector<16x1xf32>
    %257 = math.rsqrt %256 : vector<16x1xf32>
    %258 = vector.broadcast %257 : vector<16x1xf32> to vector<16x32xf32>
    %259 = arith.mulf %249, %258 : vector<16x32xf32>
    %c0_119 = arith.constant 0 : index
    %c0_120 = arith.constant 0 : index
    %c0_121 = arith.constant 0 : index
    %260 = vector.load %arg25[%c0_119, %c0_120, %c0_121] : memref<1x1x32xf32, #tpu.memory_space<vmem>>, vector<1x1x32xf32>
    %261 = vector.shape_cast %260 : vector<1x1x32xf32> to vector<1x32xf32>
    %262 = vector.broadcast %261 : vector<1x32xf32> to vector<16x32xf32>
    %263 = arith.mulf %259, %262 : vector<16x32xf32>
    %c0_122 = arith.constant 0 : index
    %c0_123 = arith.constant 0 : index
    %c0_124 = arith.constant 0 : index
    %264 = vector.load %arg26[%c0_122, %c0_123, %c0_124] : memref<1x1x32xf32, #tpu.memory_space<vmem>>, vector<1x1x32xf32>
    %265 = vector.shape_cast %264 : vector<1x1x32xf32> to vector<1x32xf32>
    %266 = vector.broadcast %265 : vector<1x32xf32> to vector<16x32xf32>
    %267 = arith.addf %263, %266 : vector<16x32xf32>
    %c0_125 = arith.constant 0 : index
    %c0_126 = arith.constant 0 : index
    %c0_127 = arith.constant 0 : index
    %268 = vector.load %arg19[%c0_125, %c0_126, %c0_127] : memref<1x32x64xf32, #tpu.memory_space<vmem>>, vector<1x32x64xf32>
    %269 = vector.shape_cast %268 : vector<1x32x64xf32> to vector<32x64xf32>
    %cst_128 = arith.constant dense<0.000000e+00> : vector<16x64xf32>
    %270 = tpu.matmul %267, %269, %cst_128 {dimension_numbers = #tpu.dot_dimension_numbers<[1], [0], [0], [1], [0, 0, 1, 1], [], []>} : vector<16x32xf32>, vector<32x64xf32>, vector<16x64xf32> -> vector<16x64xf32>
    %c0_129 = arith.constant 0 : index
    %c0_130 = arith.constant 0 : index
    %c0_131 = arith.constant 0 : index
    %271 = vector.load %arg20[%c0_129, %c0_130, %c0_131] : memref<1x1x64xf32, #tpu.memory_space<vmem>>, vector<1x1x64xf32>
    %272 = vector.shape_cast %271 : vector<1x1x64xf32> to vector<1x64xf32>
    %273 = vector.broadcast %272 : vector<1x64xf32> to vector<16x64xf32>
    %274 = arith.addf %270, %273 : vector<16x64xf32>
    %cst_132 = arith.constant 0.000000e+00 : f32
    %275 = vector.broadcast %cst_132 : f32 to vector<16x64xf32>
    %276 = arith.maximumf %274, %275 : vector<16x64xf32>
    %c0_133 = arith.constant 0 : index
    %c0_134 = arith.constant 0 : index
    %c0_135 = arith.constant 0 : index
    %277 = vector.load %arg21[%c0_133, %c0_134, %c0_135] : memref<1x64x32xf32, #tpu.memory_space<vmem>>, vector<1x64x32xf32>
    %278 = vector.shape_cast %277 : vector<1x64x32xf32> to vector<64x32xf32>
    %cst_136 = arith.constant dense<0.000000e+00> : vector<16x32xf32>
    %279 = tpu.matmul %276, %278, %cst_136 {dimension_numbers = #tpu.dot_dimension_numbers<[1], [0], [0], [1], [0, 0, 1, 1], [], []>} : vector<16x64xf32>, vector<64x32xf32>, vector<16x32xf32> -> vector<16x32xf32>
    %c0_137 = arith.constant 0 : index
    %c0_138 = arith.constant 0 : index
    %c0_139 = arith.constant 0 : index
    %280 = vector.load %arg22[%c0_137, %c0_138, %c0_139] : memref<1x1x32xf32, #tpu.memory_space<vmem>>, vector<1x1x32xf32>
    %281 = vector.shape_cast %280 : vector<1x1x32xf32> to vector<1x32xf32>
    %282 = vector.broadcast %281 : vector<1x32xf32> to vector<16x32xf32>
    %283 = arith.addf %279, %282 : vector<16x32xf32>
    %284 = arith.addf %267, %283 : vector<16x32xf32>
    %cst_140 = arith.constant dense<0.000000e+00> : vector<16xf32>
    %285 = vector.multi_reduction <add>, %284, %cst_140 [1] : vector<16x32xf32> to vector<16xf32>
    %286 = vector.shape_cast %285 : vector<16xf32> to vector<16x1xf32>
    %cst_141 = arith.constant 3.200000e+01 : f32
    %287 = vector.broadcast %cst_141 : f32 to vector<16x1xf32>
    %288 = arith.divf %286, %287 : vector<16x1xf32>
    %289 = vector.broadcast %288 : vector<16x1xf32> to vector<16x32xf32>
    %290 = arith.subf %284, %289 : vector<16x32xf32>
    %291 = arith.mulf %290, %290 : vector<16x32xf32>
    %cst_142 = arith.constant dense<0.000000e+00> : vector<16xf32>
    %292 = vector.multi_reduction <add>, %291, %cst_142 [1] : vector<16x32xf32> to vector<16xf32>
    %293 = vector.shape_cast %292 : vector<16xf32> to vector<16x1xf32>
    %cst_143 = arith.constant 3.200000e+01 : f32
    %294 = vector.broadcast %cst_143 : f32 to vector<16x1xf32>
    %295 = arith.divf %293, %294 : vector<16x1xf32>
    %cst_144 = arith.constant 9.99999974E-6 : f32
    %296 = vector.broadcast %cst_144 : f32 to vector<16x1xf32>
    %297 = arith.addf %295, %296 : vector<16x1xf32>
    %298 = math.rsqrt %297 : vector<16x1xf32>
    %299 = vector.broadcast %298 : vector<16x1xf32> to vector<16x32xf32>
    %300 = arith.mulf %290, %299 : vector<16x32xf32>
    %c0_145 = arith.constant 0 : index
    %c0_146 = arith.constant 0 : index
    %c0_147 = arith.constant 0 : index
    %301 = vector.load %arg27[%c0_145, %c0_146, %c0_147] : memref<1x1x32xf32, #tpu.memory_space<vmem>>, vector<1x1x32xf32>
    %302 = vector.shape_cast %301 : vector<1x1x32xf32> to vector<1x32xf32>
    %303 = vector.broadcast %302 : vector<1x32xf32> to vector<16x32xf32>
    %304 = arith.mulf %300, %303 : vector<16x32xf32>
    %c0_148 = arith.constant 0 : index
    %c0_149 = arith.constant 0 : index
    %c0_150 = arith.constant 0 : index
    %305 = vector.load %arg28[%c0_148, %c0_149, %c0_150] : memref<1x1x32xf32, #tpu.memory_space<vmem>>, vector<1x1x32xf32>
    %306 = vector.shape_cast %305 : vector<1x1x32xf32> to vector<1x32xf32>
    %307 = vector.broadcast %306 : vector<1x32xf32> to vector<16x32xf32>
    %308 = arith.addf %304, %307 : vector<16x32xf32>
    %c1_i32 = arith.constant 1 : i32
    %309 = arith.cmpi slt, %arg0, %c1_i32 : i32
    %310 = arith.extui %309 : i1 to i32
    %c0_i32_151 = arith.constant 0 : i32
    %311 = arith.cmpi ne, %310, %c0_i32_151 : i32
    scf.if %311 {
      %c0_154 = arith.constant 0 : index
      %c0_155 = arith.constant 0 : index
      %315 = vector.load %arg30[%c0_154, %c0_155] : memref<16x32xf32, #tpu.memory_space<vmem>>, vector<16x32xf32>
      tpu.vector_store %arg30[%c0_154, %c0_155], %308 {strides = array<i32>} : memref<16x32xf32, #tpu.memory_space<vmem>>, vector<16x32xf32>,
    } else {
    }
    %c1_i32_152 = arith.constant 1 : i32
    %312 = arith.cmpi eq, %arg0, %c1_i32_152 : i32
    %313 = arith.extui %312 : i1 to i32
    %c0_i32_153 = arith.constant 0 : i32
    %314 = arith.cmpi ne, %313, %c0_i32_153 : i32
    scf.if %314 {
      %c0_154 = arith.constant 0 : index
      %c0_155 = arith.constant 0 : index
      %315 = vector.load %arg29[%c0_154, %c0_155] : memref<16x32xf32, #tpu.memory_space<vmem>>, vector<16x32xf32>
      tpu.vector_store %arg29[%c0_154, %c0_155], %308 {strides = array<i32>} : memref<16x32xf32, #tpu.memory_space<vmem>>, vector<16x32xf32>,
    } else {
    }
    return
  }
  func.func @transform_0(%arg0: i32) -> (i32, i32) {
    %c0_i32 = arith.constant 0 : i32
    %c0_i32_0 = arith.constant 0 : i32
    %c0_i32_1 = arith.constant 0 : i32
    return %c0_i32, %c0_i32_0 : i32, i32
  }
  func.func @transform_1(%arg0: i32) -> (i32, i32) {
    %c0_i32 = arith.constant 0 : i32
    %c0_i32_0 = arith.constant 0 : i32
    %c0_i32_1 = arith.constant 0 : i32
    return %c0_i32, %c0_i32_0 : i32, i32
  }
  func.func @transform_2(%arg0: i32) -> (i32, i32, i32) {
    %c0_i32 = arith.constant 0 : i32
    %c0_i32_0 = arith.constant 0 : i32
    %c0_i32_1 = arith.constant 0 : i32
    return %arg0, %c0_i32, %c0_i32_0 : i32, i32, i32
  }
  func.func @transform_3(%arg0: i32) -> (i32, i32, i32) {
    %c0_i32 = arith.constant 0 : i32
    %c0_i32_0 = arith.constant 0 : i32
    %c0_i32_1 = arith.constant 0 : i32
    return %arg0, %c0_i32, %c0_i32_0 : i32, i32, i32
  }
  func.func @transform_4(%arg0: i32) -> (i32, i32, i32) {
    %c0_i32 = arith.constant 0 : i32
    %c0_i32_0 = arith.constant 0 : i32
    %c0_i32_1 = arith.constant 0 : i32
    return %arg0, %c0_i32, %c0_i32_0 : i32, i32, i32
  }
  func.func @transform_5(%arg0: i32) -> (i32, i32, i32) {
    %c0_i32 = arith.constant 0 : i32
    %c0_i32_0 = arith.constant 0 : i32
    %c0_i32_1 = arith.constant 0 : i32
    return %arg0, %c0_i32, %c0_i32_0 : i32, i32, i32
  }
  func.func @transform_6(%arg0: i32) -> (i32, i32, i32) {
    %c0_i32 = arith.constant 0 : i32
    %c0_i32_0 = arith.constant 0 : i32
    %c0_i32_1 = arith.constant 0 : i32
    return %arg0, %c0_i32, %c0_i32_0 : i32, i32, i32
  }
  func.func @transform_7(%arg0: i32) -> (i32, i32, i32) {
    %c0_i32 = arith.constant 0 : i32
    %c0_i32_0 = arith.constant 0 : i32
    %c0_i32_1 = arith.constant 0 : i32
    return %arg0, %c0_i32, %c0_i32_0 : i32, i32, i32
  }
  func.func @transform_8(%arg0: i32) -> (i32, i32, i32) {
    %c0_i32 = arith.constant 0 : i32
    %c0_i32_0 = arith.constant 0 : i32
    %c0_i32_1 = arith.constant 0 : i32
    return %arg0, %c0_i32, %c0_i32_0 : i32, i32, i32
  }
  func.func @transform_9(%arg0: i32) -> (i32, i32, i32) {
    %c0_i32 = arith.constant 0 : i32
    %c0_i32_0 = arith.constant 0 : i32
    %c0_i32_1 = arith.constant 0 : i32
    return %arg0, %c0_i32, %c0_i32_0 : i32, i32, i32
  }
  func.func @transform_10(%arg0: i32) -> (i32, i32, i32) {
    %c0_i32 = arith.constant 0 : i32
    %c0_i32_0 = arith.constant 0 : i32
    %c0_i32_1 = arith.constant 0 : i32
    return %arg0, %c0_i32, %c0_i32_0 : i32, i32, i32
  }
  func.func @transform_11(%arg0: i32) -> (i32, i32, i32) {
    %c0_i32 = arith.constant 0 : i32
    %c0_i32_0 = arith.constant 0 : i32
    %c0_i32_1 = arith.constant 0 : i32
    return %arg0, %c0_i32, %c0_i32_0 : i32, i32, i32
  }
  func.func @transform_12(%arg0: i32) -> (i32, i32, i32) {
    %c0_i32 = arith.constant 0 : i32
    %c0_i32_0 = arith.constant 0 : i32
    %c0_i32_1 = arith.constant 0 : i32
    return %arg0, %c0_i32, %c0_i32_0 : i32, i32, i32
  }
  func.func @transform_13(%arg0: i32) -> (i32, i32, i32) {
    %c0_i32 = arith.constant 0 : i32
    %c0_i32_0 = arith.constant 0 : i32
    %c0_i32_1 = arith.constant 0 : i32
    return %arg0, %c0_i32, %c0_i32_0 : i32, i32, i32
  }
  func.func @transform_14(%arg0: i32) -> (i32, i32, i32) {
    %c0_i32 = arith.constant 0 : i32
    %c0_i32_0 = arith.constant 0 : i32
    %c0_i32_1 = arith.constant 0 : i32
    return %arg0, %c0_i32, %c0_i32_0 : i32, i32, i32
  }
  func.func @transform_15(%arg0: i32) -> (i32, i32, i32) {
    %c0_i32 = arith.constant 0 : i32
    %c0_i32_0 = arith.constant 0 : i32
    %c0_i32_1 = arith.constant 0 : i32
    return %arg0, %c0_i32, %c0_i32_0 : i32, i32, i32
  }
  func.func @transform_16(%arg0: i32) -> (i32, i32, i32) {
    %c0_i32 = arith.constant 0 : i32
    %c0_i32_0 = arith.constant 0 : i32
    %c0_i32_1 = arith.constant 0 : i32
    return %arg0, %c0_i32, %c0_i32_0 : i32, i32, i32
  }
  func.func @transform_17(%arg0: i32) -> (i32, i32, i32) {
    %c0_i32 = arith.constant 0 : i32
    %c0_i32_0 = arith.constant 0 : i32
    %c0_i32_1 = arith.constant 0 : i32
    return %arg0, %c0_i32, %c0_i32_0 : i32, i32, i32
  }
  func.func @transform_18(%arg0: i32) -> (i32, i32, i32) {
    %c0_i32 = arith.constant 0 : i32
    %c0_i32_0 = arith.constant 0 : i32
    %c0_i32_1 = arith.constant 0 : i32
    return %arg0, %c0_i32, %c0_i32_0 : i32, i32, i32
  }
  func.func @transform_19(%arg0: i32) -> (i32, i32, i32) {
    %c0_i32 = arith.constant 0 : i32
    %c0_i32_0 = arith.constant 0 : i32
    %c0_i32_1 = arith.constant 0 : i32
    return %arg0, %c0_i32, %c0_i32_0 : i32, i32, i32
  }
  func.func @transform_20(%arg0: i32) -> (i32, i32, i32) {
    %c0_i32 = arith.constant 0 : i32
    %c0_i32_0 = arith.constant 0 : i32
    %c0_i32_1 = arith.constant 0 : i32
    return %arg0, %c0_i32, %c0_i32_0 : i32, i32, i32
  }
  func.func @transform_21(%arg0: i32) -> (i32, i32, i32) {
    %c0_i32 = arith.constant 0 : i32
    %c0_i32_0 = arith.constant 0 : i32
    %c0_i32_1 = arith.constant 0 : i32
    return %arg0, %c0_i32, %c0_i32_0 : i32, i32, i32
  }
  func.func @transform_22(%arg0: i32) -> (i32, i32, i32) {
    %c0_i32 = arith.constant 0 : i32
    %c0_i32_0 = arith.constant 0 : i32
    %c0_i32_1 = arith.constant 0 : i32
    return %arg0, %c0_i32, %c0_i32_0 : i32, i32, i32
  }
  func.func @transform_23(%arg0: i32) -> (i32, i32, i32) {
    %c0_i32 = arith.constant 0 : i32
    %c0_i32_0 = arith.constant 0 : i32
    %c0_i32_1 = arith.constant 0 : i32
    return %arg0, %c0_i32, %c0_i32_0 : i32, i32, i32
  }
  func.func @transform_24(%arg0: i32) -> (i32, i32, i32) {
    %c0_i32 = arith.constant 0 : i32
    %c0_i32_0 = arith.constant 0 : i32
    %c0_i32_1 = arith.constant 0 : i32
    return %arg0, %c0_i32, %c0_i32_0 : i32, i32, i32
  }
  func.func @transform_25(%arg0: i32) -> (i32, i32, i32) {
    %c0_i32 = arith.constant 0 : i32
    %c0_i32_0 = arith.constant 0 : i32
    %c0_i32_1 = arith.constant 0 : i32
    return %arg0, %c0_i32, %c0_i32_0 : i32, i32, i32
  }
  func.func @transform_26(%arg0: i32) -> (i32, i32, i32) {
    %c0_i32 = arith.constant 0 : i32
    %c0_i32_0 = arith.constant 0 : i32
    %c0_i32_1 = arith.constant 0 : i32
    return %arg0, %c0_i32, %c0_i32_0 : i32, i32, i32
  }
  func.func @transform_27(%arg0: i32) -> (i32, i32, i32) {
    %c0_i32 = arith.constant 0 : i32
    %c0_i32_0 = arith.constant 0 : i32
    %c0_i32_1 = arith.constant 0 : i32
    return %arg0, %c0_i32, %c0_i32_0 : i32, i32, i32
  }
  func.func @transform_28(%arg0: i32) -> (i32, i32) {
    %c0_i32 = arith.constant 0 : i32
    %c0_i32_0 = arith.constant 0 : i32
    %c0_i32_1 = arith.constant 0 : i32
    return %c0_i32, %c0_i32_0 : i32, i32
  }
}

</mosaic_0001>

<llo_original>
// kernel: _lambda_.1
$region0: #{_lambda_.1}
  #allocation0 [shape = 'u32[]', space=smem, size = 0x4, offset = 0x4, fixed_abs, tag = 'smem constant byte address 0x4 - core index']
  #allocation1 [shape = 'u32[144,128]{1,0:T(1,128)}', space=vmem, size = 0x12000, scoped, tag = 'internal scratch']
  #allocation2 [shape = 'f32[16,32]{1,0:T(8,128)}', space=vmem, size = 0x2000, scoped, tag = 'scratch operand']
  %s0 = inlined_call_operand.vmem [shape: f32[16,32], index: 0, kind: input, shape index: {}]
  %s1 = inlined_call_operand.vmem [shape: f32[32,32], index: 1, kind: input, shape index: {}]
  %s2 = inlined_call_operand.vmem [shape: f32[2,32,32], index: 2, kind: input, shape index: {}]
  %s3 = inlined_call_operand.vmem [shape: f32[2,32,32], index: 3, kind: input, shape index: {}]
  %s4 = inlined_call_operand.vmem [shape: f32[2,32,32], index: 4, kind: input, shape index: {}]
  %s5 = inlined_call_operand.vmem [shape: f32[2,1,32], index: 5, kind: input, shape index: {}]
  %s6 = inlined_call_operand.vmem [shape: f32[2,1,32], index: 6, kind: input, shape index: {}]
  %s7 = inlined_call_operand.vmem [shape: f32[2,1,32], index: 7, kind: input, shape index: {}]
  %s8 = inlined_call_operand.vmem [shape: f32[2,32,32], index: 8, kind: input, shape index: {}]
  %s9 = inlined_call_operand.hbm [shape: f32[2,1,32], index: 9, kind: input, shape index: {}]
  %s10 = inlined_call_operand.vmem [shape: f32[2,32,32], index: 10, kind: input, shape index: {}]
  %s11 = inlined_call_operand.hbm [shape: f32[2,32,32], index: 11, kind: input, shape index: {}]
  %s12 = inlined_call_operand.hbm [shape: f32[2,32,32], index: 12, kind: input, shape index: {}]
  %s13 = inlined_call_operand.hbm [shape: f32[2,1,32], index: 13, kind: input, shape index: {}]
  %s14 = inlined_call_operand.hbm [shape: f32[2,1,32], index: 14, kind: input, shape index: {}]
  %s15 = inlined_call_operand.hbm [shape: f32[2,1,32], index: 15, kind: input, shape index: {}]
  %s16 = inlined_call_operand.hbm [shape: f32[2,32,32], index: 16, kind: input, shape index: {}]
  %s17 = inlined_call_operand.hbm [shape: f32[2,1,32], index: 17, kind: input, shape index: {}]
  %s18 = inlined_call_operand.vmem [shape: f32[2,32,64], index: 18, kind: input, shape index: {}]
  %s19 = inlined_call_operand.hbm [shape: f32[2,1,64], index: 19, kind: input, shape index: {}]
  %s20 = inlined_call_operand.vmem [shape: f32[2,64,32], index: 20, kind: input, shape index: {}]
  %s21 = inlined_call_operand.hbm [shape: f32[2,1,32], index: 21, kind: input, shape index: {}]
  %s22 = inlined_call_operand.hbm [shape: f32[2,1,32], index: 22, kind: input, shape index: {}]
  %s23 = inlined_call_operand.hbm [shape: f32[2,1,32], index: 23, kind: input, shape index: {}]
  %s24 = inlined_call_operand.hbm [shape: f32[2,1,32], index: 24, kind: input, shape index: {}]
  %s25 = inlined_call_operand.hbm [shape: f32[2,1,32], index: 25, kind: input, shape index: {}]
  %s26 = inlined_call_operand.hbm [shape: f32[2,1,32], index: 26, kind: input, shape index: {}]
  %s27 = inlined_call_operand.hbm [shape: f32[2,1,32], index: 27, kind: input, shape index: {}]
  %s28 = inlined_call_operand.vmem [shape: f32[16,32], index: 28, kind: output, shape index: {}]
  %s29 = sld [smem:[#allocation0]]
  $region221: #{_lambda_.1} parent=0
    _
  %s31 = ssub.s32 1, %s29
  %s32 = scalar_select 0, %s31, %s29
  $region1: #{_lambda_.1} parent=0
    #allocation3 [shape = 'u8[1024]{0}', space=vmem, size = 0x400, scoped, tag = 'input window, operand 9']
    #allocation4 [shape = 's32[2]{0}', space=sflag, size = 0x8, scoped, tag = 'scoped memory for _lambda_.1']
    #allocation5 [shape = 'u8[32768]{0}', space=vmem, size = 0x8000, scoped, tag = 'input window, operand 11']
    #allocation6 [shape = 's32[2]{0}', space=sflag, size = 0x8, scoped, tag = 'scoped memory for _lambda_.1']
    #allocation7 [shape = 'u8[32768]{0}', space=vmem, size = 0x8000, scoped, tag = 'input window, operand 12']
    #allocation8 [shape = 'u8[1024]{0}', space=vmem, size = 0x400, scoped, tag = 'input window, operand 13']
    #allocation9 [shape = 's32[2]{0}', space=sflag, size = 0x8, scoped, tag = 'scoped memory for _lambda_.1']
    #allocation10 [shape = 'u8[1024]{0}', space=vmem, size = 0x400, scoped, tag = 'input window, operand 14']
    #allocation11 [shape = 'u8[1024]{0}', space=vmem, size = 0x400, scoped, tag = 'input window, operand 15']
    #allocation12 [shape = 's32[2]{0}', space=sflag, size = 0x8, scoped, tag = 'scoped memory for _lambda_.1']
    #allocation13 [shape = 'u8[32768]{0}', space=vmem, size = 0x8000, scoped, tag = 'input window, operand 16']
    #allocation14 [shape = 'u8[1024]{0}', space=vmem, size = 0x400, scoped, tag = 'input window, operand 17']
    #allocation15 [shape = 's32[2]{0}', space=sflag, size = 0x8, scoped, tag = 'scoped memory for _lambda_.1']
    #allocation16 [shape = 'u8[1024]{0}', space=vmem, size = 0x400, scoped, tag = 'input window, operand 19']
    #allocation17 [shape = 'u8[1024]{0}', space=vmem, size = 0x400, scoped, tag = 'input window, operand 21']
    #allocation18 [shape = 's32[2]{0}', space=sflag, size = 0x8, scoped, tag = 'scoped memory for _lambda_.1']
    #allocation19 [shape = 'u8[1024]{0}', space=vmem, size = 0x400, scoped, tag = 'input window, operand 22']
    #allocation20 [shape = 'u8[1024]{0}', space=vmem, size = 0x400, scoped, tag = 'input window, operand 23']
    #allocation21 [shape = 's32[2]{0}', space=sflag, size = 0x8, scoped, tag = 'scoped memory for _lambda_.1']
    #allocation22 [shape = 'u8[1024]{0}', space=vmem, size = 0x400, scoped, tag = 'input window, operand 24']
    #allocation23 [shape = 'u8[1024]{0}', space=vmem, size = 0x400, scoped, tag = 'input window, operand 25']
    #allocation24 [shape = 's32[2]{0}', space=sflag, size = 0x8, scoped, tag = 'scoped memory for _lambda_.1']
    #allocation25 [shape = 'u8[1024]{0}', space=vmem, size = 0x400, scoped, tag = 'input window, operand 26']
    #allocation26 [shape = 'u8[1024]{0}', space=vmem, size = 0x400, scoped, tag = 'input window, operand 27']
    #allocation27 [shape = 's32[2]{0}', space=sflag, size = 0x8, scoped, tag = 'scoped memory for _lambda_.1']
    %33 = vsyncpa [#allocation4], 0
    %s34 = scalar_lea.sflag [#allocation4], 1
    %35 = vsyncpa %s34, 0
    %36 = vsyncpa [#allocation6], 0
    %s37 = scalar_lea.sflag [#allocation6], 1
    %38 = vsyncpa %s37, 0
    %39 = vsyncpa [#allocation9], 0
    %s40 = scalar_lea.sflag [#allocation9], 1
    %41 = vsyncpa %s40, 0
    %42 = vsyncpa [#allocation12], 0
    %s43 = scalar_lea.sflag [#allocation12], 1
    %44 = vsyncpa %s43, 0
    %45 = vsyncpa [#allocation15], 0
    %s46 = scalar_lea.sflag [#allocation15], 1
    %47 = vsyncpa %s46, 0
    %48 = vsyncpa [#allocation18], 0
    %s49 = scalar_lea.sflag [#allocation18], 1
    %50 = vsyncpa %s49, 0
    %51 = vsyncpa [#allocation21], 0
    %s52 = scalar_lea.sflag [#allocation21], 1
    %53 = vsyncpa %s52, 0
    %54 = vsyncpa [#allocation24], 0
    %s55 = scalar_lea.sflag [#allocation24], 1
    %56 = vsyncpa %s55, 0
    %57 = vsyncpa [#allocation27], 0
    %s58 = scalar_lea.sflag [#allocation27], 1
    %59 = vsyncpa %s58, 0
    loop: start=0, step=1, limit=4
    $region2: #{_lambda_.1} parent=1 // loop_pre_header
      _
    $region3: #{_lambda_.1} parent=1 // loop_header
      %s61 = sphi 0, %s65
      %p62 = scmp.ge.s32.totalorder %s61, 4
      %s69 = sphi 0, %s69
      %s71 = sphi 0, %s69
      %s72 = sphi 0, %s71
      %s86 = sphi 0, %s72
      %s90 = sphi 0, %s90
      %s92 = sphi 0, %s90
      %s93 = sphi 0, %s92
      %s107 = sphi 0, %s93
      %s113 = sphi 0, %s115
      %s116 = sphi 0, %s113
      %s117 = sphi 0, %s116
      %s133 = sphi 0, %s117
      %s139 = sphi 0, %s141
      %s142 = sphi 0, %s139
      %s143 = sphi 0, %s142
      %s159 = sphi 0, %s143
      %s165 = sphi 0, %s167
      %s168 = sphi 0, %s165
      %s169 = sphi 0, %s168
      %s185 = sphi 0, %s169
      %s191 = sphi 0, %s193
      %s194 = sphi 0, %s191
      %s195 = sphi 0, %s194
      %s211 = sphi 0, %s195
      %s217 = sphi 0, %s219
      %s220 = sphi 0, %s217
      %s221 = sphi 0, %s220
      %s237 = sphi 0, %s221
      %s243 = sphi 0, %s245
      %s246 = sphi 0, %s243
      %s247 = sphi 0, %s246
      %s263 = sphi 0, %s247
      %s269 = sphi 0, %s271
      %s272 = sphi 0, %s269
      %s273 = sphi 0, %s272
      %s289 = sphi 0, %s273
      %s295 = sphi 0, %s297
      %s298 = sphi 0, %s295
      %s299 = sphi 0, %s298
      %s315 = sphi 0, %s299
      %s321 = sphi 0, %s323
      %s324 = sphi 0, %s321
      %s325 = sphi 0, %s324
      %s341 = sphi 0, %s325
      %s347 = sphi 0, %s349
      %s350 = sphi 0, %s347
      %s351 = sphi 0, %s350
      %s367 = sphi 0, %s351
      %s373 = sphi 0, %s375
      %s376 = sphi 0, %s373
      %s377 = sphi 0, %s376
      %s393 = sphi 0, %s377
      %s399 = sphi 0, %s401
      %s402 = sphi 0, %s399
      %s403 = sphi 0, %s402
      %s419 = sphi 0, %s403
      %s425 = sphi 0, %s427
      %s428 = sphi 0, %s425
      %s429 = sphi 0, %s428
      %s445 = sphi 0, %s429
      %s451 = sphi 0, %s453
      %s454 = sphi 0, %s451
      %s455 = sphi 0, %s454
      %s471 = sphi 0, %s455
      %s477 = sphi 0, %s479
      %s480 = sphi 0, %s477
      %s481 = sphi 0, %s480
      %s497 = sphi 0, %s481
      %s503 = sphi 0, %s505
      %s506 = sphi 0, %s503
      %s507 = sphi 0, %s506
      %s523 = sphi 0, %s507
      %s529 = sphi 0, %s531
      %s532 = sphi 0, %s529
      %s533 = sphi 0, %s532
      %s549 = sphi 0, %s533
      %s555 = sphi 0, %s557
      %s558 = sphi 0, %s555
      %s559 = sphi 0, %s558
      %s575 = sphi 0, %s559
      %s581 = sphi 0, %s583
      %s584 = sphi 0, %s581
      %s585 = sphi 0, %s584
      %s601 = sphi 0, %s585
      %s607 = sphi 0, %s609
      %s610 = sphi 0, %s607
      %s611 = sphi 0, %s610
      %s627 = sphi 0, %s611
      %s633 = sphi 0, %s635
      %s636 = sphi 0, %s633
      %s637 = sphi 0, %s636
      %s653 = sphi 0, %s637
      %s659 = sphi 0, %s661
      %s662 = sphi 0, %s659
      %s663 = sphi 0, %s662
      %s679 = sphi 0, %s663
      %s685 = sphi 0, %s687
      %s688 = sphi 0, %s685
      %s689 = sphi 0, %s688
      %s705 = sphi 0, %s689
      %s711 = sphi 0, %s713
      %s714 = sphi 0, %s711
      %s715 = sphi 0, %s714
      %s731 = sphi 0, %s715
      %s737 = sphi 0, %s739
      %s740 = sphi 0, %s737
      %s741 = sphi 0, %s740
      %s757 = sphi 0, %s741
      %s763 = sphi 0, %s765
      %s766 = sphi 0, %s763
      %s767 = sphi 0, %s766
      %s783 = sphi 0, %s767
      %s787 = sphi 0, %s787
      %s789 = sphi 0, %s787
      %s790 = sphi 0, %s789
      %s804 = sphi 0, %s790
    $region4: #{_lambda_.1} parent=1 // loop_header_branch
      %64 = sbr.rel (%p62) target = $region8
    $region5: #{_lambda_.1} parent=1 // loop_body
      %s66 = ssub.s32 %s61, 1
      %s67 = ssub.s32 %s61, 2
      %s68 = sadd.s32 %s61, 1
      %s70 = sadd.s32 %s69, 1
      %p73 = scmp.eq.s32.totalorder %s61, 1
      %p74 = scmp.ne.s32.totalorder %s69, %s71
      %p75 = scmp.eq.s32.totalorder %s61, 0
      %p76 = por %p74, %p75
      %p77 = scmp.ne.s32.totalorder %s69, %s71
      %p78 = scmp.eq.s32.totalorder %s66, 1
      %p79 = por %p77, %p78
      %p80 = scmp.ne.s32.totalorder %s71, %s72
      %p81 = scmp.eq.s32.totalorder %s66, 0
      %p82 = por %p80, %p81
      %p83 = scmp.ne.s32.totalorder %s71, %s72
      %p84 = scmp.eq.s32.totalorder %s67, 1
      %p85 = por %p83, %p84
      %p87 = scmp.ne.s32.totalorder %s72, %s86
      %p88 = scmp.eq.s32.totalorder %s67, 0
      %p89 = por %p87, %p88
      %s91 = sadd.s32 %s90, 1
      %p94 = scmp.eq.s32.totalorder %s61, 1
      %p95 = scmp.ne.s32.totalorder %s90, %s92
      %p96 = scmp.eq.s32.totalorder %s61, 0
      %p97 = por %p95, %p96
      %p98 = scmp.ne.s32.totalorder %s90, %s92
      %p99 = scmp.eq.s32.totalorder %s66, 1
      %p100 = por %p98, %p99
      %p101 = scmp.ne.s32.totalorder %s92, %s93
      %p102 = scmp.eq.s32.totalorder %s66, 0
      %p103 = por %p101, %p102
      %p104 = scmp.ne.s32.totalorder %s92, %s93
      %p105 = scmp.eq.s32.totalorder %s67, 1
      %p106 = por %p104, %p105
      %p108 = scmp.ne.s32.totalorder %s93, %s107
      %p109 = scmp.eq.s32.totalorder %s67, 0
      %p110 = por %p108, %p109
      %s111 = ssub.s32 %s61, %s68
      %p112 = scmp.eq.s32.totalorder %s111, 0
      %s114 = sadd.s32 %s113, 1
      %s115 = scalar_select %p112, %s113, %s114
      %p118 = pneg %p112
      %p119 = scmp.eq.s32.totalorder %s61, 1
      %p120 = por %p118, %p119
      %p121 = scmp.ne.s32.totalorder %s113, %s116
      %p122 = scmp.eq.s32.totalorder %s61, 0
      %p123 = por %p121, %p122
      %p124 = scmp.ne.s32.totalorder %s113, %s116
      %p125 = scmp.eq.s32.totalorder %s66, 1
      %p126 = por %p124, %p125
      %p127 = scmp.ne.s32.totalorder %s116, %s117
      %p128 = scmp.eq.s32.totalorder %s66, 0
      %p129 = por %p127, %p128
      %p130 = scmp.ne.s32.totalorder %s116, %s117
      %p131 = scmp.eq.s32.totalorder %s67, 1
      %p132 = por %p130, %p131
      %p134 = scmp.ne.s32.totalorder %s117, %s133
      %p135 = scmp.eq.s32.totalorder %s67, 0
      %p136 = por %p134, %p135
      %s137 = ssub.s32 %s61, %s68
      %p138 = scmp.eq.s32.totalorder %s137, 0
      %s140 = sadd.s32 %s139, 1
      %s141 = scalar_select %p138, %s139, %s140
      %p144 = pneg %p138
      %p145 = scmp.eq.s32.totalorder %s61, 1
      %p146 = por %p144, %p145
      %p147 = scmp.ne.s32.totalorder %s139, %s142
      %p148 = scmp.eq.s32.totalorder %s61, 0
      %p149 = por %p147, %p148
      %p150 = scmp.ne.s32.totalorder %s139, %s142
      %p151 = scmp.eq.s32.totalorder %s66, 1
      %p152 = por %p150, %p151
      %p153 = scmp.ne.s32.totalorder %s142, %s143
      %p154 = scmp.eq.s32.totalorder %s66, 0
      %p155 = por %p153, %p154
      %p156 = scmp.ne.s32.totalorder %s142, %s143
      %p157 = scmp.eq.s32.totalorder %s67, 1
      %p158 = por %p156, %p157
      %p160 = scmp.ne.s32.totalorder %s143, %s159
      %p161 = scmp.eq.s32.totalorder %s67, 0
      %p162 = por %p160, %p161
      %s163 = ssub.s32 %s61, %s68
      %p164 = scmp.eq.s32.totalorder %s163, 0
      %s166 = sadd.s32 %s165, 1
      %s167 = scalar_select %p164, %s165, %s166
      %p170 = pneg %p164
      %p171 = scmp.eq.s32.totalorder %s61, 1
      %p172 = por %p170, %p171
      %p173 = scmp.ne.s32.totalorder %s165, %s168
      %p174 = scmp.eq.s32.totalorder %s61, 0
      %p175 = por %p173, %p174
      %p176 = scmp.ne.s32.totalorder %s165, %s168
      %p177 = scmp.eq.s32.totalorder %s66, 1
      %p178 = por %p176, %p177
      %p179 = scmp.ne.s32.totalorder %s168, %s169
      %p180 = scmp.eq.s32.totalorder %s66, 0
      %p181 = por %p179, %p180
      %p182 = scmp.ne.s32.totalorder %s168, %s169
      %p183 = scmp.eq.s32.totalorder %s67, 1
      %p184 = por %p182, %p183
      %p186 = scmp.ne.s32.totalorder %s169, %s185
      %p187 = scmp.eq.s32.totalorder %s67, 0
      %p188 = por %p186, %p187
      %s189 = ssub.s32 %s61, %s68
      %p190 = scmp.eq.s32.totalorder %s189, 0
      %s192 = sadd.s32 %s191, 1
      %s193 = scalar_select %p190, %s191, %s192
      %p196 = pneg %p190
      %p197 = scmp.eq.s32.totalorder %s61, 1
      %p198 = por %p196, %p197
      %p199 = scmp.ne.s32.totalorder %s191, %s194
      %p200 = scmp.eq.s32.totalorder %s61, 0
      %p201 = por %p199, %p200
      %p202 = scmp.ne.s32.totalorder %s191, %s194
      %p203 = scmp.eq.s32.totalorder %s66, 1
      %p204 = por %p202, %p203
      %p205 = scmp.ne.s32.totalorder %s194, %s195
      %p206 = scmp.eq.s32.totalorder %s66, 0
      %p207 = por %p205, %p206
      %p208 = scmp.ne.s32.totalorder %s194, %s195
      %p209 = scmp.eq.s32.totalorder %s67, 1
      %p210 = por %p208, %p209
      %p212 = scmp.ne.s32.totalorder %s195, %s211
      %p213 = scmp.eq.s32.totalorder %s67, 0
      %p214 = por %p212, %p213
      %s215 = ssub.s32 %s61, %s68
      %p216 = scmp.eq.s32.totalorder %s215, 0
      %s218 = sadd.s32 %s217, 1
      %s219 = scalar_select %p216, %s217, %s218
      %p222 = pneg %p216
      %p223 = scmp.eq.s32.totalorder %s61, 1
      %p224 = por %p222, %p223
      %p225 = scmp.ne.s32.totalorder %s217, %s220
      %p226 = scmp.eq.s32.totalorder %s61, 0
      %p227 = por %p225, %p226
      %p228 = scmp.ne.s32.totalorder %s217, %s220
      %p229 = scmp.eq.s32.totalorder %s66, 1
      %p230 = por %p228, %p229
      %p231 = scmp.ne.s32.totalorder %s220, %s221
      %p232 = scmp.eq.s32.totalorder %s66, 0
      %p233 = por %p231, %p232
      %p234 = scmp.ne.s32.totalorder %s220, %s221
      %p235 = scmp.eq.s32.totalorder %s67, 1
      %p236 = por %p234, %p235
      %p238 = scmp.ne.s32.totalorder %s221, %s237
      %p239 = scmp.eq.s32.totalorder %s67, 0
      %p240 = por %p238, %p239
      %s241 = ssub.s32 %s61, %s68
      %p242 = scmp.eq.s32.totalorder %s241, 0
      %s244 = sadd.s32 %s243, 1
      %s245 = scalar_select %p242, %s243, %s244
      %p248 = pneg %p242
      %p249 = scmp.eq.s32.totalorder %s61, 1
      %p250 = por %p248, %p249
      %p251 = scmp.ne.s32.totalorder %s243, %s246
      %p252 = scmp.eq.s32.totalorder %s61, 0
      %p253 = por %p251, %p252
      %p254 = scmp.ne.s32.totalorder %s243, %s246
      %p255 = scmp.eq.s32.totalorder %s66, 1
      %p256 = por %p254, %p255
      %p257 = scmp.ne.s32.totalorder %s246, %s247
      %p258 = scmp.eq.s32.totalorder %s66, 0
      %p259 = por %p257, %p258
      %p260 = scmp.ne.s32.totalorder %s246, %s247
      %p261 = scmp.eq.s32.totalorder %s67, 1
      %p262 = por %p260, %p261
      %p264 = scmp.ne.s32.totalorder %s247, %s263
      %p265 = scmp.eq.s32.totalorder %s67, 0
      %p266 = por %p264, %p265
      %s267 = ssub.s32 %s61, %s68
      %p268 = scmp.eq.s32.totalorder %s267, 0
      %s270 = sadd.s32 %s269, 1
      %s271 = scalar_select %p268, %s269, %s270
      %p274 = pneg %p268
      %p275 = scmp.eq.s32.totalorder %s61, 1
      %p276 = por %p274, %p275
      %p277 = scmp.ne.s32.totalorder %s269, %s272
      %p278 = scmp.eq.s32.totalorder %s61, 0
      %p279 = por %p277, %p278
      %p280 = scmp.ne.s32.totalorder %s269, %s272
      %p281 = scmp.eq.s32.totalorder %s66, 1
      %p282 = por %p280, %p281
      %p283 = scmp.ne.s32.totalorder %s272, %s273
      %p284 = scmp.eq.s32.totalorder %s66, 0
      %p285 = por %p283, %p284
      %p286 = scmp.ne.s32.totalorder %s272, %s273
      %p287 = scmp.eq.s32.totalorder %s67, 1
      %p288 = por %p286, %p287
      %p290 = scmp.ne.s32.totalorder %s273, %s289
      %p291 = scmp.eq.s32.totalorder %s67, 0
      %p292 = por %p290, %p291
      %s293 = ssub.s32 %s61, %s68
      %p294 = scmp.eq.s32.totalorder %s293, 0
      %s296 = sadd.s32 %s295, 1
      %s297 = scalar_select %p294, %s295, %s296
      %p300 = pneg %p294
      %p301 = scmp.eq.s32.totalorder %s61, 1
      %p302 = por %p300, %p301
      %p303 = scmp.ne.s32.totalorder %s295, %s298
      %p304 = scmp.eq.s32.totalorder %s61, 0
      %p305 = por %p303, %p304
      %p306 = scmp.ne.s32.totalorder %s295, %s298
      %p307 = scmp.eq.s32.totalorder %s66, 1
      %p308 = por %p306, %p307
      %p309 = scmp.ne.s32.totalorder %s298, %s299
      %p310 = scmp.eq.s32.totalorder %s66, 0
      %p311 = por %p309, %p310
      %p312 = scmp.ne.s32.totalorder %s298, %s299
      %p313 = scmp.eq.s32.totalorder %s67, 1
      %p314 = por %p312, %p313
      %p316 = scmp.ne.s32.totalorder %s299, %s315
      %p317 = scmp.eq.s32.totalorder %s67, 0
      %p318 = por %p316, %p317
      %s319 = ssub.s32 %s61, %s68
      %p320 = scmp.eq.s32.totalorder %s319, 0
      %s322 = sadd.s32 %s321, 1
      %s323 = scalar_select %p320, %s321, %s322
      %p326 = pneg %p320
      %p327 = scmp.eq.s32.totalorder %s61, 1
      %p328 = por %p326, %p327
      %p329 = scmp.ne.s32.totalorder %s321, %s324
      %p330 = scmp.eq.s32.totalorder %s61, 0
      %p331 = por %p329, %p330
      %p332 = scmp.ne.s32.totalorder %s321, %s324
      %p333 = scmp.eq.s32.totalorder %s66, 1
      %p334 = por %p332, %p333
      %p335 = scmp.ne.s32.totalorder %s324, %s325
      %p336 = scmp.eq.s32.totalorder %s66, 0
      %p337 = por %p335, %p336
      %p338 = scmp.ne.s32.totalorder %s324, %s325
      %p339 = scmp.eq.s32.totalorder %s67, 1
      %p340 = por %p338, %p339
      %p342 = scmp.ne.s32.totalorder %s325, %s341
      %p343 = scmp.eq.s32.totalorder %s67, 0
      %p344 = por %p342, %p343
      %s345 = ssub.s32 %s61, %s68
      %p346 = scmp.eq.s32.totalorder %s345, 0
      %s348 = sadd.s32 %s347, 1
      %s349 = scalar_select %p346, %s347, %s348
      %p352 = pneg %p346
      %p353 = scmp.eq.s32.totalorder %s61, 1
      %p354 = por %p352, %p353
      %p355 = scmp.ne.s32.totalorder %s347, %s350
      %p356 = scmp.eq.s32.totalorder %s61, 0
      %p357 = por %p355, %p356
      %p358 = scmp.ne.s32.totalorder %s347, %s350
      %p359 = scmp.eq.s32.totalorder %s66, 1
      %p360 = por %p358, %p359
      %p361 = scmp.ne.s32.totalorder %s350, %s351
      %p362 = scmp.eq.s32.totalorder %s66, 0
      %p363 = por %p361, %p362
      %p364 = scmp.ne.s32.totalorder %s350, %s351
      %p365 = scmp.eq.s32.totalorder %s67, 1
      %p366 = por %p364, %p365
      %p368 = scmp.ne.s32.totalorder %s351, %s367
      %p369 = scmp.eq.s32.totalorder %s67, 0
      %p370 = por %p368, %p369
      %s371 = ssub.s32 %s61, %s68
      %p372 = scmp.eq.s32.totalorder %s371, 0
      %s374 = sadd.s32 %s373, 1
      %s375 = scalar_select %p372, %s373, %s374
      %p378 = pneg %p372
      %p379 = scmp.eq.s32.totalorder %s61, 1
      %p380 = por %p378, %p379
      %p381 = scmp.ne.s32.totalorder %s373, %s376
      %p382 = scmp.eq.s32.totalorder %s61, 0
      %p383 = por %p381, %p382
      %p384 = scmp.ne.s32.totalorder %s373, %s376
      %p385 = scmp.eq.s32.totalorder %s66, 1
      %p386 = por %p384, %p385
      %p387 = scmp.ne.s32.totalorder %s376, %s377
      %p388 = scmp.eq.s32.totalorder %s66, 0
      %p389 = por %p387, %p388
      %p390 = scmp.ne.s32.totalorder %s376, %s377
      %p391 = scmp.eq.s32.totalorder %s67, 1
      %p392 = por %p390, %p391
      %p394 = scmp.ne.s32.totalorder %s377, %s393
      %p395 = scmp.eq.s32.totalorder %s67, 0
      %p396 = por %p394, %p395
      %s397 = ssub.s32 %s61, %s68
      %p398 = scmp.eq.s32.totalorder %s397, 0
      %s400 = sadd.s32 %s399, 1
      %s401 = scalar_select %p398, %s399, %s400
      %p404 = pneg %p398
      %p405 = scmp.eq.s32.totalorder %s61, 1
      %p406 = por %p404, %p405
      %p407 = scmp.ne.s32.totalorder %s399, %s402
      %p408 = scmp.eq.s32.totalorder %s61, 0
      %p409 = por %p407, %p408
      %p410 = scmp.ne.s32.totalorder %s399, %s402
      %p411 = scmp.eq.s32.totalorder %s66, 1
      %p412 = por %p410, %p411
      %p413 = scmp.ne.s32.totalorder %s402, %s403
      %p414 = scmp.eq.s32.totalorder %s66, 0
      %p415 = por %p413, %p414
      %p416 = scmp.ne.s32.totalorder %s402, %s403
      %p417 = scmp.eq.s32.totalorder %s67, 1
      %p418 = por %p416, %p417
      %p420 = scmp.ne.s32.totalorder %s403, %s419
      %p421 = scmp.eq.s32.totalorder %s67, 0
      %p422 = por %p420, %p421
      %s423 = ssub.s32 %s61, %s68
      %p424 = scmp.eq.s32.totalorder %s423, 0
      %s426 = sadd.s32 %s425, 1
      %s427 = scalar_select %p424, %s425, %s426
      %p430 = pneg %p424
      %p431 = scmp.eq.s32.totalorder %s61, 1
      %p432 = por %p430, %p431
      %p433 = scmp.ne.s32.totalorder %s425, %s428
      %p434 = scmp.eq.s32.totalorder %s61, 0
      %p435 = por %p433, %p434
      %p436 = scmp.ne.s32.totalorder %s425, %s428
      %p437 = scmp.eq.s32.totalorder %s66, 1
      %p438 = por %p436, %p437
      %p439 = scmp.ne.s32.totalorder %s428, %s429
      %p440 = scmp.eq.s32.totalorder %s66, 0
      %p441 = por %p439, %p440
      %p442 = scmp.ne.s32.totalorder %s428, %s429
      %p443 = scmp.eq.s32.totalorder %s67, 1
      %p444 = por %p442, %p443
      %p446 = scmp.ne.s32.totalorder %s429, %s445
      %p447 = scmp.eq.s32.totalorder %s67, 0
      %p448 = por %p446, %p447
      %s449 = ssub.s32 %s61, %s68
      %p450 = scmp.eq.s32.totalorder %s449, 0
      %s452 = sadd.s32 %s451, 1
      %s453 = scalar_select %p450, %s451, %s452
      %p456 = pneg %p450
      %p457 = scmp.eq.s32.totalorder %s61, 1
      %p458 = por %p456, %p457
      %p459 = scmp.ne.s32.totalorder %s451, %s454
      %p460 = scmp.eq.s32.totalorder %s61, 0
      %p461 = por %p459, %p460
      %p462 = scmp.ne.s32.totalorder %s451, %s454
      %p463 = scmp.eq.s32.totalorder %s66, 1
      %p464 = por %p462, %p463
      %p465 = scmp.ne.s32.totalorder %s454, %s455
      %p466 = scmp.eq.s32.totalorder %s66, 0
      %p467 = por %p465, %p466
      %p468 = scmp.ne.s32.totalorder %s454, %s455
      %p469 = scmp.eq.s32.totalorder %s67, 1
      %p470 = por %p468, %p469
      %p472 = scmp.ne.s32.totalorder %s455, %s471
      %p473 = scmp.eq.s32.totalorder %s67, 0
      %p474 = por %p472, %p473
      %s475 = ssub.s32 %s61, %s68
      %p476 = scmp.eq.s32.totalorder %s475, 0
      %s478 = sadd.s32 %s477, 1
      %s479 = scalar_select %p476, %s477, %s478
      %p482 = pneg %p476
      %p483 = scmp.eq.s32.totalorder %s61, 1
      %p484 = por %p482, %p483
      %p485 = scmp.ne.s32.totalorder %s477, %s480
      %p486 = scmp.eq.s32.totalorder %s61, 0
      %p487 = por %p485, %p486
      %p488 = scmp.ne.s32.totalorder %s477, %s480
      %p489 = scmp.eq.s32.totalorder %s66, 1
      %p490 = por %p488, %p489
      %p491 = scmp.ne.s32.totalorder %s480, %s481
      %p492 = scmp.eq.s32.totalorder %s66, 0
      %p493 = por %p491, %p492
      %p494 = scmp.ne.s32.totalorder %s480, %s481
      %p495 = scmp.eq.s32.totalorder %s67, 1
      %p496 = por %p494, %p495
      %p498 = scmp.ne.s32.totalorder %s481, %s497
      %p499 = scmp.eq.s32.totalorder %s67, 0
      %p500 = por %p498, %p499
      %s501 = ssub.s32 %s61, %s68
      %p502 = scmp.eq.s32.totalorder %s501, 0
      %s504 = sadd.s32 %s503, 1
      %s505 = scalar_select %p502, %s503, %s504
      %p508 = pneg %p502
      %p509 = scmp.eq.s32.totalorder %s61, 1
      %p510 = por %p508, %p509
      %p511 = scmp.ne.s32.totalorder %s503, %s506
      %p512 = scmp.eq.s32.totalorder %s61, 0
      %p513 = por %p511, %p512
      %p514 = scmp.ne.s32.totalorder %s503, %s506
      %p515 = scmp.eq.s32.totalorder %s66, 1
      %p516 = por %p514, %p515
      %p517 = scmp.ne.s32.totalorder %s506, %s507
      %p518 = scmp.eq.s32.totalorder %s66, 0
      %p519 = por %p517, %p518
      %p520 = scmp.ne.s32.totalorder %s506, %s507
      %p521 = scmp.eq.s32.totalorder %s67, 1
      %p522 = por %p520, %p521
      %p524 = scmp.ne.s32.totalorder %s507, %s523
      %p525 = scmp.eq.s32.totalorder %s67, 0
      %p526 = por %p524, %p525
      %s527 = ssub.s32 %s61, %s68
      %p528 = scmp.eq.s32.totalorder %s527, 0
      %s530 = sadd.s32 %s529, 1
      %s531 = scalar_select %p528, %s529, %s530
      %p534 = pneg %p528
      %p535 = scmp.eq.s32.totalorder %s61, 1
      %p536 = por %p534, %p535
      %p537 = scmp.ne.s32.totalorder %s529, %s532
      %p538 = scmp.eq.s32.totalorder %s61, 0
      %p539 = por %p537, %p538
      %p540 = scmp.ne.s32.totalorder %s529, %s532
      %p541 = scmp.eq.s32.totalorder %s66, 1
      %p542 = por %p540, %p541
      %p543 = scmp.ne.s32.totalorder %s532, %s533
      %p544 = scmp.eq.s32.totalorder %s66, 0
      %p545 = por %p543, %p544
      %p546 = scmp.ne.s32.totalorder %s532, %s533
      %p547 = scmp.eq.s32.totalorder %s67, 1
      %p548 = por %p546, %p547
      %p550 = scmp.ne.s32.totalorder %s533, %s549
      %p551 = scmp.eq.s32.totalorder %s67, 0
      %p552 = por %p550, %p551
      %s553 = ssub.s32 %s61, %s68
      %p554 = scmp.eq.s32.totalorder %s553, 0
      %s556 = sadd.s32 %s555, 1
      %s557 = scalar_select %p554, %s555, %s556
      %p560 = pneg %p554
      %p561 = scmp.eq.s32.totalorder %s61, 1
      %p562 = por %p560, %p561
      %p563 = scmp.ne.s32.totalorder %s555, %s558
      %p564 = scmp.eq.s32.totalorder %s61, 0
      %p565 = por %p563, %p564
      %p566 = scmp.ne.s32.totalorder %s555, %s558
      %p567 = scmp.eq.s32.totalorder %s66, 1
      %p568 = por %p566, %p567
      %p569 = scmp.ne.s32.totalorder %s558, %s559
      %p570 = scmp.eq.s32.totalorder %s66, 0
      %p571 = por %p569, %p570
      %p572 = scmp.ne.s32.totalorder %s558, %s559
      %p573 = scmp.eq.s32.totalorder %s67, 1
      %p574 = por %p572, %p573
      %p576 = scmp.ne.s32.totalorder %s559, %s575
      %p577 = scmp.eq.s32.totalorder %s67, 0
      %p578 = por %p576, %p577
      %s579 = ssub.s32 %s61, %s68
      %p580 = scmp.eq.s32.totalorder %s579, 0
      %s582 = sadd.s32 %s581, 1
      %s583 = scalar_select %p580, %s581, %s582
      %p586 = pneg %p580
      %p587 = scmp.eq.s32.totalorder %s61, 1
      %p588 = por %p586, %p587
      %p589 = scmp.ne.s32.totalorder %s581, %s584
      %p590 = scmp.eq.s32.totalorder %s61, 0
      %p591 = por %p589, %p590
      %p592 = scmp.ne.s32.totalorder %s581, %s584
      %p593 = scmp.eq.s32.totalorder %s66, 1
      %p594 = por %p592, %p593
      %p595 = scmp.ne.s32.totalorder %s584, %s585
      %p596 = scmp.eq.s32.totalorder %s66, 0
      %p597 = por %p595, %p596
      %p598 = scmp.ne.s32.totalorder %s584, %s585
      %p599 = scmp.eq.s32.totalorder %s67, 1
      %p600 = por %p598, %p599
      %p602 = scmp.ne.s32.totalorder %s585, %s601
      %p603 = scmp.eq.s32.totalorder %s67, 0
      %p604 = por %p602, %p603
      %s605 = ssub.s32 %s61, %s68
      %p606 = scmp.eq.s32.totalorder %s605, 0
      %s608 = sadd.s32 %s607, 1
      %s609 = scalar_select %p606, %s607, %s608
      %p612 = pneg %p606
      %p613 = scmp.eq.s32.totalorder %s61, 1
      %p614 = por %p612, %p613
      %p615 = scmp.ne.s32.totalorder %s607, %s610
      %p616 = scmp.eq.s32.totalorder %s61, 0
      %p617 = por %p615, %p616
      %p618 = scmp.ne.s32.totalorder %s607, %s610
      %p619 = scmp.eq.s32.totalorder %s66, 1
      %p620 = por %p618, %p619
      %p621 = scmp.ne.s32.totalorder %s610, %s611
      %p622 = scmp.eq.s32.totalorder %s66, 0
      %p623 = por %p621, %p622
      %p624 = scmp.ne.s32.totalorder %s610, %s611
      %p625 = scmp.eq.s32.totalorder %s67, 1
      %p626 = por %p624, %p625
      %p628 = scmp.ne.s32.totalorder %s611, %s627
      %p629 = scmp.eq.s32.totalorder %s67, 0
      %p630 = por %p628, %p629
      %s631 = ssub.s32 %s61, %s68
      %p632 = scmp.eq.s32.totalorder %s631, 0
      %s634 = sadd.s32 %s633, 1
      %s635 = scalar_select %p632, %s633, %s634
      %p638 = pneg %p632
      %p639 = scmp.eq.s32.totalorder %s61, 1
      %p640 = por %p638, %p639
      %p641 = scmp.ne.s32.totalorder %s633, %s636
      %p642 = scmp.eq.s32.totalorder %s61, 0
      %p643 = por %p641, %p642
      %p644 = scmp.ne.s32.totalorder %s633, %s636
      %p645 = scmp.eq.s32.totalorder %s66, 1
      %p646 = por %p644, %p645
      %p647 = scmp.ne.s32.totalorder %s636, %s637
      %p648 = scmp.eq.s32.totalorder %s66, 0
      %p649 = por %p647, %p648
      %p650 = scmp.ne.s32.totalorder %s636, %s637
      %p651 = scmp.eq.s32.totalorder %s67, 1
      %p652 = por %p650, %p651
      %p654 = scmp.ne.s32.totalorder %s637, %s653
      %p655 = scmp.eq.s32.totalorder %s67, 0
      %p656 = por %p654, %p655
      %s657 = ssub.s32 %s61, %s68
      %p658 = scmp.eq.s32.totalorder %s657, 0
      %s660 = sadd.s32 %s659, 1
      %s661 = scalar_select %p658, %s659, %s660
      %p664 = pneg %p658
      %p665 = scmp.eq.s32.totalorder %s61, 1
      %p666 = por %p664, %p665
      %p667 = scmp.ne.s32.totalorder %s659, %s662
      %p668 = scmp.eq.s32.totalorder %s61, 0
      %p669 = por %p667, %p668
      %p670 = scmp.ne.s32.totalorder %s659, %s662
      %p671 = scmp.eq.s32.totalorder %s66, 1
      %p672 = por %p670, %p671
      %p673 = scmp.ne.s32.totalorder %s662, %s663
      %p674 = scmp.eq.s32.totalorder %s66, 0
      %p675 = por %p673, %p674
      %p676 = scmp.ne.s32.totalorder %s662, %s663
      %p677 = scmp.eq.s32.totalorder %s67, 1
      %p678 = por %p676, %p677
      %p680 = scmp.ne.s32.totalorder %s663, %s679
      %p681 = scmp.eq.s32.totalorder %s67, 0
      %p682 = por %p680, %p681
      %s683 = ssub.s32 %s61, %s68
      %p684 = scmp.eq.s32.totalorder %s683, 0
      %s686 = sadd.s32 %s685, 1
      %s687 = scalar_select %p684, %s685, %s686
      %p690 = pneg %p684
      %p691 = scmp.eq.s32.totalorder %s61, 1
      %p692 = por %p690, %p691
      %p693 = scmp.ne.s32.totalorder %s685, %s688
      %p694 = scmp.eq.s32.totalorder %s61, 0
      %p695 = por %p693, %p694
      %p696 = scmp.ne.s32.totalorder %s685, %s688
      %p697 = scmp.eq.s32.totalorder %s66, 1
      %p698 = por %p696, %p697
      %p699 = scmp.ne.s32.totalorder %s688, %s689
      %p700 = scmp.eq.s32.totalorder %s66, 0
      %p701 = por %p699, %p700
      %p702 = scmp.ne.s32.totalorder %s688, %s689
      %p703 = scmp.eq.s32.totalorder %s67, 1
      %p704 = por %p702, %p703
      %p706 = scmp.ne.s32.totalorder %s689, %s705
      %p707 = scmp.eq.s32.totalorder %s67, 0
      %p708 = por %p706, %p707
      %s709 = ssub.s32 %s61, %s68
      %p710 = scmp.eq.s32.totalorder %s709, 0
      %s712 = sadd.s32 %s711, 1
      %s713 = scalar_select %p710, %s711, %s712
      %p716 = pneg %p710
      %p717 = scmp.eq.s32.totalorder %s61, 1
      %p718 = por %p716, %p717
      %p719 = scmp.ne.s32.totalorder %s711, %s714
      %p720 = scmp.eq.s32.totalorder %s61, 0
      %p721 = por %p719, %p720
      %p722 = scmp.ne.s32.totalorder %s711, %s714
      %p723 = scmp.eq.s32.totalorder %s66, 1
      %p724 = por %p722, %p723
      %p725 = scmp.ne.s32.totalorder %s714, %s715
      %p726 = scmp.eq.s32.totalorder %s66, 0
      %p727 = por %p725, %p726
      %p728 = scmp.ne.s32.totalorder %s714, %s715
      %p729 = scmp.eq.s32.totalorder %s67, 1
      %p730 = por %p728, %p729
      %p732 = scmp.ne.s32.totalorder %s715, %s731
      %p733 = scmp.eq.s32.totalorder %s67, 0
      %p734 = por %p732, %p733
      %s735 = ssub.s32 %s61, %s68
      %p736 = scmp.eq.s32.totalorder %s735, 0
      %s738 = sadd.s32 %s737, 1
      %s739 = scalar_select %p736, %s737, %s738
      %p742 = pneg %p736
      %p743 = scmp.eq.s32.totalorder %s61, 1
      %p744 = por %p742, %p743
      %p745 = scmp.ne.s32.totalorder %s737, %s740
      %p746 = scmp.eq.s32.totalorder %s61, 0
      %p747 = por %p745, %p746
      %p748 = scmp.ne.s32.totalorder %s737, %s740
      %p749 = scmp.eq.s32.totalorder %s66, 1
      %p750 = por %p748, %p749
      %p751 = scmp.ne.s32.totalorder %s740, %s741
      %p752 = scmp.eq.s32.totalorder %s66, 0
      %p753 = por %p751, %p752
      %p754 = scmp.ne.s32.totalorder %s740, %s741
      %p755 = scmp.eq.s32.totalorder %s67, 1
      %p756 = por %p754, %p755
      %p758 = scmp.ne.s32.totalorder %s741, %s757
      %p759 = scmp.eq.s32.totalorder %s67, 0
      %p760 = por %p758, %p759
      %s761 = ssub.s32 %s61, %s68
      %p762 = scmp.eq.s32.totalorder %s761, 0
      %s764 = sadd.s32 %s763, 1
      %s765 = scalar_select %p762, %s763, %s764
      %p768 = pneg %p762
      %p769 = scmp.eq.s32.totalorder %s61, 1
      %p770 = por %p768, %p769
      %p771 = scmp.ne.s32.totalorder %s763, %s766
      %p772 = scmp.eq.s32.totalorder %s61, 0
      %p773 = por %p771, %p772
      %p774 = scmp.ne.s32.totalorder %s763, %s766
      %p775 = scmp.eq.s32.totalorder %s66, 1
      %p776 = por %p774, %p775
      %p777 = scmp.ne.s32.totalorder %s766, %s767
      %p778 = scmp.eq.s32.totalorder %s66, 0
      %p779 = por %p777, %p778
      %p780 = scmp.ne.s32.totalorder %s766, %s767
      %p781 = scmp.eq.s32.totalorder %s67, 1
      %p782 = por %p780, %p781
      %p784 = scmp.ne.s32.totalorder %s767, %s783
      %p785 = scmp.eq.s32.totalorder %s67, 0
      %p786 = por %p784, %p785
      %s788 = sadd.s32 %s787, 1
      %p791 = scmp.eq.s32.totalorder %s61, 1
      %p792 = scmp.ne.s32.totalorder %s787, %s789
      %p793 = scmp.eq.s32.totalorder %s61, 0
      %p794 = por %p792, %p793
      %p795 = scmp.ne.s32.totalorder %s787, %s789
      %p796 = scmp.eq.s32.totalorder %s66, 1
      %p797 = por %p795, %p796
      %p798 = scmp.ne.s32.totalorder %s789, %s790
      %p799 = scmp.eq.s32.totalorder %s66, 0
      %p800 = por %p798, %p799
      %p801 = scmp.ne.s32.totalorder %s789, %s790
      %p802 = scmp.eq.s32.totalorder %s67, 1
      %p803 = por %p801, %p802
      %p805 = scmp.ne.s32.totalorder %s790, %s804
      %p806 = scmp.eq.s32.totalorder %s67, 0
      %p807 = por %p805, %p806
      %p808 = scmp.le.s32.totalorder 1, %s61
      %p809 = scmp.lt.s32.totalorder %s61, 3
      %p810 = pnand %p808, %p809
      %p811 = pneg %p810
      // Predicated region
      $region9: #{_lambda_.1} parent=5 // pred_check
        _
      $region10: #{_lambda_.1} parent=5 // pred_check_branch
        %813 = sbr.rel (%p810) target = $region12
      $region11: #{_lambda_.1} parent=5 // pred_region
        %s814 = ssub.s32 %s61, 1
        // Predicated region
        $region13: #{_lambda_.1} parent=11 // pred_check
          %p815 = pneg %p82
        $region14: #{_lambda_.1} parent=11 // pred_check_branch
          %817 = sbr.rel (%p815) target = $region16
        $region15: #{_lambda_.1} parent=11 // pred_region
          _
        $region16: #{_lambda_.1} parent=11 // pred_fallthru
          _
        // Predicated region
        $region17: #{_lambda_.1} parent=11 // pred_check
          %p818 = pneg %p103
        $region18: #{_lambda_.1} parent=11 // pred_check_branch
          %820 = sbr.rel (%p818) target = $region20
        $region19: #{_lambda_.1} parent=11 // pred_region
          _
        $region20: #{_lambda_.1} parent=11 // pred_fallthru
          _
      $region12: #{_lambda_.1} parent=5 // pred_fallthru
        _
      %p821 = scmp.lt.s32.totalorder %s61, 2
      // Predicated region
      $region21: #{_lambda_.1} parent=5 // pred_check
        %p822 = pneg %p821
      $region22: #{_lambda_.1} parent=5 // pred_check_branch
        %824 = sbr.rel (%p822) target = $region24
      $region23: #{_lambda_.1} parent=5 // pred_region
        // Predicated region
        $region25: #{_lambda_.1} parent=23 // pred_check
          %p825 = pneg %p123
        $region26: #{_lambda_.1} parent=23 // pred_check_branch
          %827 = sbr.rel (%p825) target = $region28
        $region27: #{_lambda_.1} parent=23 // pred_region
          %p828 = scmp.lt.s32.totalorder %s61, 1
          %s829 = scalar_select %p828, %s61, 1
          %s830 = smul.addr %s829, 4
          %s831 = smul.addr %s830, 8
          %s832 = scalar_lea.vmem %s2, %s831
        $region28: #{_lambda_.1} parent=23 // pred_fallthru
          _
        // Predicated region
        $region29: #{_lambda_.1} parent=23 // pred_check
          %p833 = pneg %p149
        $region30: #{_lambda_.1} parent=23 // pred_check_branch
          %835 = sbr.rel (%p833) target = $region32
        $region31: #{_lambda_.1} parent=23 // pred_region
          %p836 = scmp.lt.s32.totalorder %s61, 1
          %s837 = scalar_select %p836, %s61, 1
          %s838 = smul.addr %s837, 4
          %s839 = smul.addr %s838, 8
          %s840 = scalar_lea.vmem %s3, %s839
        $region32: #{_lambda_.1} parent=23 // pred_fallthru
          _
        // Predicated region
        $region33: #{_lambda_.1} parent=23 // pred_check
          %p841 = pneg %p175
        $region34: #{_lambda_.1} parent=23 // pred_check_branch
          %843 = sbr.rel (%p841) target = $region36
        $region35: #{_lambda_.1} parent=23 // pred_region
          %p844 = scmp.lt.s32.totalorder %s61, 1
          %s845 = scalar_select %p844, %s61, 1
          %s846 = smul.addr %s845, 4
          %s847 = smul.addr %s846, 8
          %s848 = scalar_lea.vmem %s4, %s847
        $region36: #{_lambda_.1} parent=23 // pred_fallthru
          _
        // Predicated region
        $region37: #{_lambda_.1} parent=23 // pred_check
          %p849 = pneg %p201
        $region38: #{_lambda_.1} parent=23 // pred_check_branch
          %851 = sbr.rel (%p849) target = $region40
        $region39: #{_lambda_.1} parent=23 // pred_region
          %p852 = scmp.lt.s32.totalorder %s61, 1
          %s853 = scalar_select %p852, %s61, 1
          %s854 = scalar_lea.vmem %s5, %s853
        $region40: #{_lambda_.1} parent=23 // pred_fallthru
          _
        // Predicated region
        $region41: #{_lambda_.1} parent=23 // pred_check
          %p855 = pneg %p227
        $region42: #{_lambda_.1} parent=23 // pred_check_branch
          %857 = sbr.rel (%p855) target = $region44
        $region43: #{_lambda_.1} parent=23 // pred_region
          %p858 = scmp.lt.s32.totalorder %s61, 1
          %s859 = scalar_select %p858, %s61, 1
          %s860 = scalar_lea.vmem %s6, %s859
        $region44: #{_lambda_.1} parent=23 // pred_fallthru
          _
        // Predicated region
        $region45: #{_lambda_.1} parent=23 // pred_check
          %p861 = pneg %p253
        $region46: #{_lambda_.1} parent=23 // pred_check_branch
          %863 = sbr.rel (%p861) target = $region48
        $region47: #{_lambda_.1} parent=23 // pred_region
          %p864 = scmp.lt.s32.totalorder %s61, 1
          %s865 = scalar_select %p864, %s61, 1
          %s866 = scalar_lea.vmem %s7, %s865
        $region48: #{_lambda_.1} parent=23 // pred_fallthru
          _
        // Predicated region
        $region49: #{_lambda_.1} parent=23 // pred_check
          %p867 = pneg %p279
        $region50: #{_lambda_.1} parent=23 // pred_check_branch
          %869 = sbr.rel (%p867) target = $region52
        $region51: #{_lambda_.1} parent=23 // pred_region
          %p870 = scmp.lt.s32.totalorder %s61, 1
          %s871 = scalar_select %p870, %s61, 1
          %s872 = smul.addr %s871, 4
          %s873 = smul.addr %s872, 8
          %s874 = scalar_lea.vmem %s8, %s873
        $region52: #{_lambda_.1} parent=23 // pred_fallthru
          _
        // Predicated region
        $region53: #{_lambda_.1} parent=23 // pred_check
          %p875 = pneg %p305
        $region54: #{_lambda_.1} parent=23 // pred_check_branch
          %877 = sbr.rel (%p875) target = $region56
        $region55: #{_lambda_.1} parent=23 // pred_region
          %s878 = sand.u32 %s295, 1
          %s879 = scalar_lea.sflag [#allocation4], %s878
          %s880 = sand.u32 %s295, 1
          %s881 = scalar_lea.vmem [#allocation3], %s880
          %s883 = ssub.s32 16, 16
          %884 = vsyncadd %s879, %s883
          %s885 = smul.addr %s61, 16
          %s886 = scalar_lea.hbm %s9, %s885
          %s888 = sshll.u32 %s881, 4
          %s889 = int_to_ptr.vmem [resolvable:$true] %s888
          %891 = dma.hbm_to_vmem [thread:$0]  %s886, 16, %s889, %s879
        $region56: #{_lambda_.1} parent=23 // pred_fallthru
          _
        // Predicated region
        $region57: #{_lambda_.1} parent=23 // pred_check
          %p892 = pneg %p331
        $region58: #{_lambda_.1} parent=23 // pred_check_branch
          %894 = sbr.rel (%p892) target = $region60
        $region59: #{_lambda_.1} parent=23 // pred_region
          %p895 = scmp.lt.s32.totalorder %s61, 1
          %s896 = scalar_select %p895, %s61, 1
          %s897 = smul.addr %s896, 4
          %s898 = smul.addr %s897, 8
          %s899 = scalar_lea.vmem %s10, %s898
        $region60: #{_lambda_.1} parent=23 // pred_fallthru
          _
        // Predicated region
        $region61: #{_lambda_.1} parent=23 // pred_check
          %p900 = pneg %p357
        $region62: #{_lambda_.1} parent=23 // pred_check_branch
          %902 = sbr.rel (%p900) target = $region64
        $region63: #{_lambda_.1} parent=23 // pred_region
          %s903 = sand.u32 %s61, 1
          %s904 = scalar_lea.sflag [#allocation6], %s903
          %s905 = sand.u32 %s347, 1
          %s906 = smul.addr %s905, 32
          %s907 = scalar_lea.vmem [#allocation5], %s906
          %s909 = ssub.s32 512, 512
          %910 = vsyncadd %s904, %s909
          %s911 = smul.addr %s61, 4
          %s912 = smul.addr %s911, 128
          %s913 = scalar_lea.hbm %s11, %s912
          %s914 = sshll.u32 %s907, 4
          %s915 = int_to_ptr.vmem [resolvable:$true] %s914
          %920 = dma.hbm_to_vmem [thread:$0]  %s913, 512, %s915, %s904, 128, 128, 8
        $region64: #{_lambda_.1} parent=23 // pred_fallthru
          _
        // Predicated region
        $region65: #{_lambda_.1} parent=23 // pred_check
          %p921 = pneg %p383
        $region66: #{_lambda_.1} parent=23 // pred_check_branch
          %923 = sbr.rel (%p921) target = $region68
        $region67: #{_lambda_.1} parent=23 // pred_region
          %s924 = sand.u32 %s61, 1
          %s925 = scalar_lea.sflag [#allocation6], %s924
          %s926 = sand.u32 %s373, 1
          %s927 = smul.addr %s926, 32
          %s928 = scalar_lea.vmem [#allocation7], %s927
          %s930 = ssub.s32 512, 512
          %931 = vsyncadd %s925, %s930
          %s932 = smul.addr %s61, 4
          %s933 = smul.addr %s932, 128
          %s934 = scalar_lea.hbm %s12, %s933
          %s935 = sshll.u32 %s928, 4
          %s936 = int_to_ptr.vmem [resolvable:$true] %s935
          %941 = dma.hbm_to_vmem [thread:$0]  %s934, 512, %s936, %s925, 128, 128, 8
        $region68: #{_lambda_.1} parent=23 // pred_fallthru
          _
        // Predicated region
        $region69: #{_lambda_.1} parent=23 // pred_check
          %p942 = pneg %p409
        $region70: #{_lambda_.1} parent=23 // pred_check_branch
          %944 = sbr.rel (%p942) target = $region72
        $region71: #{_lambda_.1} parent=23 // pred_region
          %s945 = sand.u32 %s61, 1
          %s946 = scalar_lea.sflag [#allocation9], %s945
          %s947 = sand.u32 %s399, 1
          %s948 = scalar_lea.vmem [#allocation8], %s947
          %s950 = ssub.s32 16, 16
          %951 = vsyncadd %s946, %s950
          %s952 = smul.addr %s61, 16
          %s953 = scalar_lea.hbm %s13, %s952
          %s955 = sshll.u32 %s948, 4
          %s956 = int_to_ptr.vmem [resolvable:$true] %s955
          %958 = dma.hbm_to_vmem [thread:$0]  %s953, 16, %s956, %s946
        $region72: #{_lambda_.1} parent=23 // pred_fallthru
          _
        // Predicated region
        $region73: #{_lambda_.1} parent=23 // pred_check
          %p959 = pneg %p435
        $region74: #{_lambda_.1} parent=23 // pred_check_branch
          %961 = sbr.rel (%p959) target = $region76
        $region75: #{_lambda_.1} parent=23 // pred_region
          %s962 = sand.u32 %s61, 1
          %s963 = scalar_lea.sflag [#allocation9], %s962
          %s964 = sand.u32 %s425, 1
          %s965 = scalar_lea.vmem [#allocation10], %s964
          %s967 = ssub.s32 16, 16
          %968 = vsyncadd %s963, %s967
          %s969 = smul.addr %s61, 16
          %s970 = scalar_lea.hbm %s14, %s969
          %s972 = sshll.u32 %s965, 4
          %s973 = int_to_ptr.vmem [resolvable:$true] %s972
          %975 = dma.hbm_to_vmem [thread:$0]  %s970, 16, %s973, %s963
        $region76: #{_lambda_.1} parent=23 // pred_fallthru
          _
        // Predicated region
        $region77: #{_lambda_.1} parent=23 // pred_check
          %p976 = pneg %p461
        $region78: #{_lambda_.1} parent=23 // pred_check_branch
          %978 = sbr.rel (%p976) target = $region80
        $region79: #{_lambda_.1} parent=23 // pred_region
          %s979 = sand.u32 %s61, 1
          %s980 = scalar_lea.sflag [#allocation12], %s979
          %s981 = sand.u32 %s451, 1
          %s982 = scalar_lea.vmem [#allocation11], %s981
          %s984 = ssub.s32 16, 16
          %985 = vsyncadd %s980, %s984
          %s986 = smul.addr %s61, 16
          %s987 = scalar_lea.hbm %s15, %s986
          %s989 = sshll.u32 %s982, 4
          %s990 = int_to_ptr.vmem [resolvable:$true] %s989
          %992 = dma.hbm_to_vmem [thread:$0]  %s987, 16, %s990, %s980
        $region80: #{_lambda_.1} parent=23 // pred_fallthru
          _
        // Predicated region
        $region81: #{_lambda_.1} parent=23 // pred_check
          %p993 = pneg %p487
        $region82: #{_lambda_.1} parent=23 // pred_check_branch
          %995 = sbr.rel (%p993) target = $region84
        $region83: #{_lambda_.1} parent=23 // pred_region
          %s996 = sand.u32 %s61, 1
          %s997 = scalar_lea.sflag [#allocation12], %s996
          %s998 = sand.u32 %s477, 1
          %s999 = smul.addr %s998, 32
          %s1000 = scalar_lea.vmem [#allocation13], %s999
          %s1002 = ssub.s32 512, 512
          %1003 = vsyncadd %s997, %s1002
          %s1004 = smul.addr %s61, 4
          %s1005 = smul.addr %s1004, 128
          %s1006 = scalar_lea.hbm %s16, %s1005
          %s1007 = sshll.u32 %s1000, 4
          %s1008 = int_to_ptr.vmem [resolvable:$true] %s1007
          %1013 = dma.hbm_to_vmem [thread:$0]  %s1006, 512, %s1008, %s997, 128, 128, 8
        $region84: #{_lambda_.1} parent=23 // pred_fallthru
          _
        // Predicated region
        $region85: #{_lambda_.1} parent=23 // pred_check
          %p1014 = pneg %p513
        $region86: #{_lambda_.1} parent=23 // pred_check_branch
          %1016 = sbr.rel (%p1014) target = $region88
        $region87: #{_lambda_.1} parent=23 // pred_region
          %s1017 = sand.u32 %s61, 1
          %s1018 = scalar_lea.sflag [#allocation15], %s1017
          %s1019 = sand.u32 %s503, 1
          %s1020 = scalar_lea.vmem [#allocation14], %s1019
          %s1022 = ssub.s32 16, 16
          %1023 = vsyncadd %s1018, %s1022
          %s1024 = smul.addr %s61, 16
          %s1025 = scalar_lea.hbm %s17, %s1024
          %s1027 = sshll.u32 %s1020, 4
          %s1028 = int_to_ptr.vmem [resolvable:$true] %s1027
          %1030 = dma.hbm_to_vmem [thread:$0]  %s1025, 16, %s1028, %s1018
        $region88: #{_lambda_.1} parent=23 // pred_fallthru
          _
        // Predicated region
        $region89: #{_lambda_.1} parent=23 // pred_check
          %p1031 = pneg %p539
        $region90: #{_lambda_.1} parent=23 // pred_check_branch
          %1033 = sbr.rel (%p1031) target = $region92
        $region91: #{_lambda_.1} parent=23 // pred_region
          %p1034 = scmp.lt.s32.totalorder %s61, 1
          %s1035 = scalar_select %p1034, %s61, 1
          %s1036 = smul.addr %s1035, 4
          %s1037 = smul.addr %s1036, 8
          %s1038 = scalar_lea.vmem %s18, %s1037
        $region92: #{_lambda_.1} parent=23 // pred_fallthru
          _
        // Predicated region
        $region93: #{_lambda_.1} parent=23 // pred_check
          %p1039 = pneg %p565
        $region94: #{_lambda_.1} parent=23 // pred_check_branch
          %1041 = sbr.rel (%p1039) target = $region96
        $region95: #{_lambda_.1} parent=23 // pred_region
          %s1042 = sand.u32 %s61, 1
          %s1043 = scalar_lea.sflag [#allocation15], %s1042
          %s1044 = sand.u32 %s555, 1
          %s1045 = scalar_lea.vmem [#allocation16], %s1044
          %s1047 = ssub.s32 16, 16
          %1048 = vsyncadd %s1043, %s1047
          %s1049 = smul.addr %s61, 16
          %s1050 = scalar_lea.hbm %s19, %s1049
          %s1052 = sshll.u32 %s1045, 4
          %s1053 = int_to_ptr.vmem [resolvable:$true] %s1052
          %1055 = dma.hbm_to_vmem [thread:$0]  %s1050, 16, %s1053, %s1043
        $region96: #{_lambda_.1} parent=23 // pred_fallthru
          _
        // Predicated region
        $region97: #{_lambda_.1} parent=23 // pred_check
          %p1056 = pneg %p591
        $region98: #{_lambda_.1} parent=23 // pred_check_branch
          %1058 = sbr.rel (%p1056) target = $region100
        $region99: #{_lambda_.1} parent=23 // pred_region
          %p1059 = scmp.lt.s32.totalorder %s61, 1
          %s1060 = scalar_select %p1059, %s61, 1
          %s1061 = smul.addr %s1060, 8
          %s1062 = smul.addr %s1061, 8
          %s1063 = scalar_lea.vmem %s20, %s1062
        $region100: #{_lambda_.1} parent=23 // pred_fallthru
          _
        // Predicated region
        $region101: #{_lambda_.1} parent=23 // pred_check
          %p1064 = pneg %p617
        $region102: #{_lambda_.1} parent=23 // pred_check_branch
          %1066 = sbr.rel (%p1064) target = $region104
        $region103: #{_lambda_.1} parent=23 // pred_region
          %s1067 = sand.u32 %s61, 1
          %s1068 = scalar_lea.sflag [#allocation18], %s1067
          %s1069 = sand.u32 %s607, 1
          %s1070 = scalar_lea.vmem [#allocation17], %s1069
          %s1072 = ssub.s32 16, 16
          %1073 = vsyncadd %s1068, %s1072
          %s1074 = smul.addr %s61, 16
          %s1075 = scalar_lea.hbm %s21, %s1074
          %s1077 = sshll.u32 %s1070, 4
          %s1078 = int_to_ptr.vmem [resolvable:$true] %s1077
          %1080 = dma.hbm_to_vmem [thread:$0]  %s1075, 16, %s1078, %s1068
        $region104: #{_lambda_.1} parent=23 // pred_fallthru
          _
        // Predicated region
        $region105: #{_lambda_.1} parent=23 // pred_check
          %p1081 = pneg %p643
        $region106: #{_lambda_.1} parent=23 // pred_check_branch
          %1083 = sbr.rel (%p1081) target = $region108
        $region107: #{_lambda_.1} parent=23 // pred_region
          %s1084 = sand.u32 %s61, 1
          %s1085 = scalar_lea.sflag [#allocation18], %s1084
          %s1086 = sand.u32 %s633, 1
          %s1087 = scalar_lea.vmem [#allocation19], %s1086
          %s1089 = ssub.s32 16, 16
          %1090 = vsyncadd %s1085, %s1089
          %s1091 = smul.addr %s61, 16
          %s1092 = scalar_lea.hbm %s22, %s1091
          %s1094 = sshll.u32 %s1087, 4
          %s1095 = int_to_ptr.vmem [resolvable:$true] %s1094
          %1097 = dma.hbm_to_vmem [thread:$0]  %s1092, 16, %s1095, %s1085
        $region108: #{_lambda_.1} parent=23 // pred_fallthru
          _
        // Predicated region
        $region109: #{_lambda_.1} parent=23 // pred_check
          %p1098 = pneg %p669
        $region110: #{_lambda_.1} parent=23 // pred_check_branch
          %1100 = sbr.rel (%p1098) target = $region112
        $region111: #{_lambda_.1} parent=23 // pred_region
          %s1101 = sand.u32 %s61, 1
          %s1102 = scalar_lea.sflag [#allocation21], %s1101
          %s1103 = sand.u32 %s659, 1
          %s1104 = scalar_lea.vmem [#allocation20], %s1103
          %s1106 = ssub.s32 16, 16
          %1107 = vsyncadd %s1102, %s1106
          %s1108 = smul.addr %s61, 16
          %s1109 = scalar_lea.hbm %s23, %s1108
          %s1111 = sshll.u32 %s1104, 4
          %s1112 = int_to_ptr.vmem [resolvable:$true] %s1111
          %1114 = dma.hbm_to_vmem [thread:$0]  %s1109, 16, %s1112, %s1102
        $region112: #{_lambda_.1} parent=23 // pred_fallthru
          _
        // Predicated region
        $region113: #{_lambda_.1} parent=23 // pred_check
          %p1115 = pneg %p695
        $region114: #{_lambda_.1} parent=23 // pred_check_branch
          %1117 = sbr.rel (%p1115) target = $region116
        $region115: #{_lambda_.1} parent=23 // pred_region
          %s1118 = sand.u32 %s61, 1
          %s1119 = scalar_lea.sflag [#allocation21], %s1118
          %s1120 = sand.u32 %s685, 1
          %s1121 = scalar_lea.vmem [#allocation22], %s1120
          %s1123 = ssub.s32 16, 16
          %1124 = vsyncadd %s1119, %s1123
          %s1125 = smul.addr %s61, 16
          %s1126 = scalar_lea.hbm %s24, %s1125
          %s1128 = sshll.u32 %s1121, 4
          %s1129 = int_to_ptr.vmem [resolvable:$true] %s1128
          %1131 = dma.hbm_to_vmem [thread:$0]  %s1126, 16, %s1129, %s1119
        $region116: #{_lambda_.1} parent=23 // pred_fallthru
          _
        // Predicated region
        $region117: #{_lambda_.1} parent=23 // pred_check
          %p1132 = pneg %p721
        $region118: #{_lambda_.1} parent=23 // pred_check_branch
          %1134 = sbr.rel (%p1132) target = $region120
        $region119: #{_lambda_.1} parent=23 // pred_region
          %s1135 = sand.u32 %s61, 1
          %s1136 = scalar_lea.sflag [#allocation24], %s1135
          %s1137 = sand.u32 %s711, 1
          %s1138 = scalar_lea.vmem [#allocation23], %s1137
          %s1140 = ssub.s32 16, 16
          %1141 = vsyncadd %s1136, %s1140
          %s1142 = smul.addr %s61, 16
          %s1143 = scalar_lea.hbm %s25, %s1142
          %s1145 = sshll.u32 %s1138, 4
          %s1146 = int_to_ptr.vmem [resolvable:$true] %s1145
          %1148 = dma.hbm_to_vmem [thread:$0]  %s1143, 16, %s1146, %s1136
        $region120: #{_lambda_.1} parent=23 // pred_fallthru
          _
        // Predicated region
        $region121: #{_lambda_.1} parent=23 // pred_check
          %p1149 = pneg %p747
        $region122: #{_lambda_.1} parent=23 // pred_check_branch
          %1151 = sbr.rel (%p1149) target = $region124
        $region123: #{_lambda_.1} parent=23 // pred_region
          %s1152 = sand.u32 %s61, 1
          %s1153 = scalar_lea.sflag [#allocation24], %s1152
          %s1154 = sand.u32 %s737, 1
          %s1155 = scalar_lea.vmem [#allocation25], %s1154
          %s1157 = ssub.s32 16, 16
          %1158 = vsyncadd %s1153, %s1157
          %s1159 = smul.addr %s61, 16
          %s1160 = scalar_lea.hbm %s26, %s1159
          %s1162 = sshll.u32 %s1155, 4
          %s1163 = int_to_ptr.vmem [resolvable:$true] %s1162
          %1165 = dma.hbm_to_vmem [thread:$0]  %s1160, 16, %s1163, %s1153
        $region124: #{_lambda_.1} parent=23 // pred_fallthru
          _
        // Predicated region
        $region125: #{_lambda_.1} parent=23 // pred_check
          %p1166 = pneg %p773
        $region126: #{_lambda_.1} parent=23 // pred_check_branch
          %1168 = sbr.rel (%p1166) target = $region128
        $region127: #{_lambda_.1} parent=23 // pred_region
          %s1169 = sand.u32 %s763, 1
          %s1170 = scalar_lea.sflag [#allocation27], %s1169
          %s1171 = sand.u32 %s763, 1
          %s1172 = scalar_lea.vmem [#allocation26], %s1171
          %s1174 = ssub.s32 16, 16
          %1175 = vsyncadd %s1170, %s1174
          %s1176 = smul.addr %s61, 16
          %s1177 = scalar_lea.hbm %s27, %s1176
          %s1179 = sshll.u32 %s1172, 4
          %s1180 = int_to_ptr.vmem [resolvable:$true] %s1179
          %1182 = dma.hbm_to_vmem [thread:$0]  %s1177, 16, %s1180, %s1170
        $region128: #{_lambda_.1} parent=23 // pred_fallthru
          _
      $region24: #{_lambda_.1} parent=5 // pred_fallthru
        _
      %p1183 = scmp.le.s32.totalorder 1, %s61
      %p1184 = scmp.lt.s32.totalorder %s61, 3
      %p1185 = pnand %p1183, %p1184
      %p1186 = pneg %p1185
      // Predicated region
      $region129: #{_lambda_.1} parent=5 // pred_check
        _
      $region130: #{_lambda_.1} parent=5 // pred_check_branch
        %1188 = sbr.rel (%p1185) target = $region132
      $region131: #{_lambda_.1} parent=5 // pred_region
        %s1189 = ssub.s32 %s61, 1
        %s1190 = sand.u32 %s298, 1
        %s1191 = scalar_lea.sflag [#allocation4], %s1190
        %s1192 = sand.u32 %s298, 1
        %s1193 = scalar_lea.vmem [#allocation3], %s1192
        // Predicated region
        $region133: #{_lambda_.1} parent=131 // pred_check
          %p1194 = pneg %p311
        $region134: #{_lambda_.1} parent=131 // pred_check_branch
          %1196 = sbr.rel (%p1194) target = $region136
        $region135: #{_lambda_.1} parent=131 // pred_region
          %1197 = dma.done %s1191, 16
        $region136: #{_lambda_.1} parent=131 // pred_fallthru
          _
        %s1198 = sand.u32 %s66, 1
        %s1199 = scalar_lea.sflag [#allocation6], %s1198
        %s1200 = sand.u32 %s350, 1
        %s1201 = smul.addr %s1200, 32
        %s1202 = scalar_lea.vmem [#allocation5], %s1201
        // Predicated region
        $region137: #{_lambda_.1} parent=131 // pred_check
          %p1203 = pneg %p363
        $region138: #{_lambda_.1} parent=131 // pred_check_branch
          %1205 = sbr.rel (%p1203) target = $region140
        $region139: #{_lambda_.1} parent=131 // pred_region
          %1206 = dma.done %s1199, 512
        $region140: #{_lambda_.1} parent=131 // pred_fallthru
          _
        %s1207 = sand.u32 %s66, 1
        %s1208 = scalar_lea.sflag [#allocation6], %s1207
        %s1209 = sand.u32 %s376, 1
        %s1210 = smul.addr %s1209, 32
        %s1211 = scalar_lea.vmem [#allocation7], %s1210
        // Predicated region
        $region141: #{_lambda_.1} parent=131 // pred_check
          %p1212 = pneg %p389
        $region142: #{_lambda_.1} parent=131 // pred_check_branch
          %1214 = sbr.rel (%p1212) target = $region144
        $region143: #{_lambda_.1} parent=131 // pred_region
          %1215 = dma.done %s1208, 512
        $region144: #{_lambda_.1} parent=131 // pred_fallthru
          _
        %s1216 = sand.u32 %s66, 1
        %s1217 = scalar_lea.sflag [#allocation9], %s1216
        %s1218 = sand.u32 %s402, 1
        %s1219 = scalar_lea.vmem [#allocation8], %s1218
        // Predicated region
        $region145: #{_lambda_.1} parent=131 // pred_check
          %p1220 = pneg %p415
        $region146: #{_lambda_.1} parent=131 // pred_check_branch
          %1222 = sbr.rel (%p1220) target = $region148
        $region147: #{_lambda_.1} parent=131 // pred_region
          %1223 = dma.done %s1217, 16
        $region148: #{_lambda_.1} parent=131 // pred_fallthru
          _
        %s1224 = sand.u32 %s66, 1
        %s1225 = scalar_lea.sflag [#allocation9], %s1224
        %s1226 = sand.u32 %s428, 1
        %s1227 = scalar_lea.vmem [#allocation10], %s1226
        // Predicated region
        $region149: #{_lambda_.1} parent=131 // pred_check
          %p1228 = pneg %p441
        $region150: #{_lambda_.1} parent=131 // pred_check_branch
          %1230 = sbr.rel (%p1228) target = $region152
        $region151: #{_lambda_.1} parent=131 // pred_region
          %1231 = dma.done %s1225, 16
        $region152: #{_lambda_.1} parent=131 // pred_fallthru
          _
        %s1232 = sand.u32 %s66, 1
        %s1233 = scalar_lea.sflag [#allocation12], %s1232
        %s1234 = sand.u32 %s454, 1
        %s1235 = scalar_lea.vmem [#allocation11], %s1234
        // Predicated region
        $region153: #{_lambda_.1} parent=131 // pred_check
          %p1236 = pneg %p467
        $region154: #{_lambda_.1} parent=131 // pred_check_branch
          %1238 = sbr.rel (%p1236) target = $region156
        $region155: #{_lambda_.1} parent=131 // pred_region
          %1239 = dma.done %s1233, 16
        $region156: #{_lambda_.1} parent=131 // pred_fallthru
          _
        %s1240 = sand.u32 %s66, 1
        %s1241 = scalar_lea.sflag [#allocation12], %s1240
        %s1242 = sand.u32 %s480, 1
        %s1243 = smul.addr %s1242, 32
        %s1244 = scalar_lea.vmem [#allocation13], %s1243
        // Predicated region
        $region157: #{_lambda_.1} parent=131 // pred_check
          %p1245 = pneg %p493
        $region158: #{_lambda_.1} parent=131 // pred_check_branch
          %1247 = sbr.rel (%p1245) target = $region160
        $region159: #{_lambda_.1} parent=131 // pred_region
          %1248 = dma.done %s1241, 512
        $region160: #{_lambda_.1} parent=131 // pred_fallthru
          _
        %s1249 = sand.u32 %s66, 1
        %s1250 = scalar_lea.sflag [#allocation15], %s1249
        %s1251 = sand.u32 %s506, 1
        %s1252 = scalar_lea.vmem [#allocation14], %s1251
        // Predicated region
        $region161: #{_lambda_.1} parent=131 // pred_check
          %p1253 = pneg %p519
        $region162: #{_lambda_.1} parent=131 // pred_check_branch
          %1255 = sbr.rel (%p1253) target = $region164
        $region163: #{_lambda_.1} parent=131 // pred_region
          %1256 = dma.done %s1250, 16
        $region164: #{_lambda_.1} parent=131 // pred_fallthru
          _
        %s1257 = sand.u32 %s66, 1
        %s1258 = scalar_lea.sflag [#allocation15], %s1257
        %s1259 = sand.u32 %s558, 1
        %s1260 = scalar_lea.vmem [#allocation16], %s1259
        // Predicated region
        $region165: #{_lambda_.1} parent=131 // pred_check
          %p1261 = pneg %p571
        $region166: #{_lambda_.1} parent=131 // pred_check_branch
          %1263 = sbr.rel (%p1261) target = $region168
        $region167: #{_lambda_.1} parent=131 // pred_region
          %1264 = dma.done %s1258, 16
        $region168: #{_lambda_.1} parent=131 // pred_fallthru
          _
        %s1265 = sand.u32 %s66, 1
        %s1266 = scalar_lea.sflag [#allocation18], %s1265
        %s1267 = sand.u32 %s610, 1
        %s1268 = scalar_lea.vmem [#allocation17], %s1267
        // Predicated region
        $region169: #{_lambda_.1} parent=131 // pred_check
          %p1269 = pneg %p623
        $region170: #{_lambda_.1} parent=131 // pred_check_branch
          %1271 = sbr.rel (%p1269) target = $region172
        $region171: #{_lambda_.1} parent=131 // pred_region
          %1272 = dma.done %s1266, 16
        $region172: #{_lambda_.1} parent=131 // pred_fallthru
          _
        %s1273 = sand.u32 %s66, 1
        %s1274 = scalar_lea.sflag [#allocation18], %s1273
        %s1275 = sand.u32 %s636, 1
        %s1276 = scalar_lea.vmem [#allocation19], %s1275
        // Predicated region
        $region173: #{_lambda_.1} parent=131 // pred_check
          %p1277 = pneg %p649
        $region174: #{_lambda_.1} parent=131 // pred_check_branch
          %1279 = sbr.rel (%p1277) target = $region176
        $region175: #{_lambda_.1} parent=131 // pred_region
          %1280 = dma.done %s1274, 16
        $region176: #{_lambda_.1} parent=131 // pred_fallthru
          _
        %s1281 = sand.u32 %s66, 1
        %s1282 = scalar_lea.sflag [#allocation21], %s1281
        %s1283 = sand.u32 %s662, 1
        %s1284 = scalar_lea.vmem [#allocation20], %s1283
        // Predicated region
        $region177: #{_lambda_.1} parent=131 // pred_check
          %p1285 = pneg %p675
        $region178: #{_lambda_.1} parent=131 // pred_check_branch
          %1287 = sbr.rel (%p1285) target = $region180
        $region179: #{_lambda_.1} parent=131 // pred_region
          %1288 = dma.done %s1282, 16
        $region180: #{_lambda_.1} parent=131 // pred_fallthru
          _
        %s1289 = sand.u32 %s66, 1
        %s1290 = scalar_lea.sflag [#allocation21], %s1289
        %s1291 = sand.u32 %s688, 1
        %s1292 = scalar_lea.vmem [#allocation22], %s1291
        // Predicated region
        $region181: #{_lambda_.1} parent=131 // pred_check
          %p1293 = pneg %p701
        $region182: #{_lambda_.1} parent=131 // pred_check_branch
          %1295 = sbr.rel (%p1293) target = $region184
        $region183: #{_lambda_.1} parent=131 // pred_region
          %1296 = dma.done %s1290, 16
        $region184: #{_lambda_.1} parent=131 // pred_fallthru
          _
        %s1297 = sand.u32 %s66, 1
        %s1298 = scalar_lea.sflag [#allocation24], %s1297
        %s1299 = sand.u32 %s714, 1
        %s1300 = scalar_lea.vmem [#allocation23], %s1299
        // Predicated region
        $region185: #{_lambda_.1} parent=131 // pred_check
          %p1301 = pneg %p727
        $region186: #{_lambda_.1} parent=131 // pred_check_branch
          %1303 = sbr.rel (%p1301) target = $region188
        $region187: #{_lambda_.1} parent=131 // pred_region
          %1304 = dma.done %s1298, 16
        $region188: #{_lambda_.1} parent=131 // pred_fallthru
          _
        %s1305 = sand.u32 %s66, 1
        %s1306 = scalar_lea.sflag [#allocation24], %s1305
        %s1307 = sand.u32 %s740, 1
        %s1308 = scalar_lea.vmem [#allocation25], %s1307
        // Predicated region
        $region189: #{_lambda_.1} parent=131 // pred_check
          %p1309 = pneg %p753
        $region190: #{_lambda_.1} parent=131 // pred_check_branch
          %1311 = sbr.rel (%p1309) target = $region192
        $region191: #{_lambda_.1} parent=131 // pred_region
          %1312 = dma.done %s1306, 16
        $region192: #{_lambda_.1} parent=131 // pred_fallthru
          _
        %s1313 = sand.u32 %s766, 1
        %s1314 = scalar_lea.sflag [#allocation27], %s1313
        %s1315 = sand.u32 %s766, 1
        %s1316 = scalar_lea.vmem [#allocation26], %s1315
        // Predicated region
        $region193: #{_lambda_.1} parent=131 // pred_check
          %p1317 = pneg %p779
        $region194: #{_lambda_.1} parent=131 // pred_check_branch
          %1319 = sbr.rel (%p1317) target = $region196
        $region195: #{_lambda_.1} parent=131 // pred_region
          %1320 = dma.done %s1314, 16
        $region196: #{_lambda_.1} parent=131 // pred_fallthru
          _
        %p1321 = pneg %p82
        %p1322 = pneg %p79
        %p1323 = pneg %p103
        %p1324 = pneg %p100
        %p1325 = scmp.lt.s32.totalorder %s66, 1
        %s1326 = scalar_select %p1325, %s66, 1
        %s1327 = smul.addr %s1326, 4
        %s1328 = smul.addr %s1327, 8
        %s1329 = scalar_lea.vmem %s2, %s1328
        %p1330 = pneg %p129
        %p1331 = pneg %p126
        %p1332 = scmp.lt.s32.totalorder %s66, 1
        %s1333 = scalar_select %p1332, %s66, 1
        %s1334 = smul.addr %s1333, 4
        %s1335 = smul.addr %s1334, 8
        %s1336 = scalar_lea.vmem %s3, %s1335
        %p1337 = pneg %p155
        %p1338 = pneg %p152
        %p1339 = scmp.lt.s32.totalorder %s66, 1
        %s1340 = scalar_select %p1339, %s66, 1
        %s1341 = smul.addr %s1340, 4
        %s1342 = smul.addr %s1341, 8
        %s1343 = scalar_lea.vmem %s4, %s1342
        %p1344 = pneg %p181
        %p1345 = pneg %p178
        %p1346 = scmp.lt.s32.totalorder %s66, 1
        %s1347 = scalar_select %p1346, %s66, 1
        %s1348 = scalar_lea.vmem %s5, %s1347
        %p1349 = pneg %p207
        %p1350 = pneg %p204
        %p1351 = scmp.lt.s32.totalorder %s66, 1
        %s1352 = scalar_select %p1351, %s66, 1
        %s1353 = scalar_lea.vmem %s6, %s1352
        %p1354 = pneg %p233
        %p1355 = pneg %p230
        %p1356 = scmp.lt.s32.totalorder %s66, 1
        %s1357 = scalar_select %p1356, %s66, 1
        %s1358 = scalar_lea.vmem %s7, %s1357
        %p1359 = pneg %p259
        %p1360 = pneg %p256
        %p1361 = scmp.lt.s32.totalorder %s66, 1
        %s1362 = scalar_select %p1361, %s66, 1
        %s1363 = smul.addr %s1362, 4
        %s1364 = smul.addr %s1363, 8
        %s1365 = scalar_lea.vmem %s8, %s1364
        %p1366 = pneg %p285
        %p1367 = pneg %p282
        %s1368 = sand.u32 %s298, 1
        %s1369 = scalar_lea.sflag [#allocation4], %s1368
        %s1370 = sand.u32 %s298, 1
        %s1371 = scalar_lea.vmem [#allocation3], %s1370
        %p1372 = pneg %p311
        %p1373 = pneg %p308
        %p1374 = scmp.lt.s32.totalorder %s66, 1
        %s1375 = scalar_select %p1374, %s66, 1
        %s1376 = smul.addr %s1375, 4
        %s1377 = smul.addr %s1376, 8
        %s1378 = scalar_lea.vmem %s10, %s1377
        %p1379 = pneg %p337
        %p1380 = pneg %p334
        %s1381 = sand.u32 %s66, 1
        %s1382 = scalar_lea.sflag [#allocation6], %s1381
        %s1383 = sand.u32 %s350, 1
        %s1384 = smul.addr %s1383, 32
        %s1385 = scalar_lea.vmem [#allocation5], %s1384
        %p1386 = pneg %p363
        %p1387 = pneg %p360
        %s1388 = sand.u32 %s66, 1
        %s1389 = scalar_lea.sflag [#allocation6], %s1388
        %s1390 = sand.u32 %s376, 1
        %s1391 = smul.addr %s1390, 32
        %s1392 = scalar_lea.vmem [#allocation7], %s1391
        %p1393 = pneg %p389
        %p1394 = pneg %p386
        %s1395 = sand.u32 %s66, 1
        %s1396 = scalar_lea.sflag [#allocation9], %s1395
        %s1397 = sand.u32 %s402, 1
        %s1398 = scalar_lea.vmem [#allocation8], %s1397
        %p1399 = pneg %p415
        %p1400 = pneg %p412
        %s1401 = sand.u32 %s66, 1
        %s1402 = scalar_lea.sflag [#allocation9], %s1401
        %s1403 = sand.u32 %s428, 1
        %s1404 = scalar_lea.vmem [#allocation10], %s1403
        %p1405 = pneg %p441
        %p1406 = pneg %p438
        %s1407 = sand.u32 %s66, 1
        %s1408 = scalar_lea.sflag [#allocation12], %s1407
        %s1409 = sand.u32 %s454, 1
        %s1410 = scalar_lea.vmem [#allocation11], %s1409
        %p1411 = pneg %p467
        %p1412 = pneg %p464
        %s1413 = sand.u32 %s66, 1
        %s1414 = scalar_lea.sflag [#allocation12], %s1413
        %s1415 = sand.u32 %s480, 1
        %s1416 = smul.addr %s1415, 32
        %s1417 = scalar_lea.vmem [#allocation13], %s1416
        %p1418 = pneg %p493
        %p1419 = pneg %p490
        %s1420 = sand.u32 %s66, 1
        %s1421 = scalar_lea.sflag [#allocation15], %s1420
        %s1422 = sand.u32 %s506, 1
        %s1423 = scalar_lea.vmem [#allocation14], %s1422
        %p1424 = pneg %p519
        %p1425 = pneg %p516
        %p1426 = scmp.lt.s32.totalorder %s66, 1
        %s1427 = scalar_select %p1426, %s66, 1
        %s1428 = smul.addr %s1427, 4
        %s1429 = smul.addr %s1428, 8
        %s1430 = scalar_lea.vmem %s18, %s1429
        %p1431 = pneg %p545
        %p1432 = pneg %p542
        %s1433 = sand.u32 %s66, 1
        %s1434 = scalar_lea.sflag [#allocation15], %s1433
        %s1435 = sand.u32 %s558, 1
        %s1436 = scalar_lea.vmem [#allocation16], %s1435
        %p1437 = pneg %p571
        %p1438 = pneg %p568
        %p1439 = scmp.lt.s32.totalorder %s66, 1
        %s1440 = scalar_select %p1439, %s66, 1
        %s1441 = smul.addr %s1440, 8
        %s1442 = smul.addr %s1441, 8
        %s1443 = scalar_lea.vmem %s20, %s1442
        %p1444 = pneg %p597
        %p1445 = pneg %p594
        %s1446 = sand.u32 %s66, 1
        %s1447 = scalar_lea.sflag [#allocation18], %s1446
        %s1448 = sand.u32 %s610, 1
        %s1449 = scalar_lea.vmem [#allocation17], %s1448
        %p1450 = pneg %p623
        %p1451 = pneg %p620
        %s1452 = sand.u32 %s66, 1
        %s1453 = scalar_lea.sflag [#allocation18], %s1452
        %s1454 = sand.u32 %s636, 1
        %s1455 = scalar_lea.vmem [#allocation19], %s1454
        %p1456 = pneg %p649
        %p1457 = pneg %p646
        %s1458 = sand.u32 %s66, 1
        %s1459 = scalar_lea.sflag [#allocation21], %s1458
        %s1460 = sand.u32 %s662, 1
        %s1461 = scalar_lea.vmem [#allocation20], %s1460
        %p1462 = pneg %p675
        %p1463 = pneg %p672
        %s1464 = sand.u32 %s66, 1
        %s1465 = scalar_lea.sflag [#allocation21], %s1464
        %s1466 = sand.u32 %s688, 1
        %s1467 = scalar_lea.vmem [#allocation22], %s1466
        %p1468 = pneg %p701
        %p1469 = pneg %p698
        %s1470 = sand.u32 %s66, 1
        %s1471 = scalar_lea.sflag [#allocation24], %s1470
        %s1472 = sand.u32 %s714, 1
        %s1473 = scalar_lea.vmem [#allocation23], %s1472
        %p1474 = pneg %p727
        %p1475 = pneg %p724
        %s1476 = sand.u32 %s66, 1
        %s1477 = scalar_lea.sflag [#allocation24], %s1476
        %s1478 = sand.u32 %s740, 1
        %s1479 = scalar_lea.vmem [#allocation25], %s1478
        %p1480 = pneg %p753
        %p1481 = pneg %p750
        %s1482 = sand.u32 %s766, 1
        %s1483 = scalar_lea.sflag [#allocation27], %s1482
        %s1484 = sand.u32 %s766, 1
        %s1485 = scalar_lea.vmem [#allocation26], %s1484
        %p1486 = pneg %p779
        %p1487 = pneg %p776
        %p1488 = pneg %p800
        %p1489 = pneg %p797
        %p1490 = scmp.lt.s32.totalorder %s66, 1
        %s1491 = scalar_select %p1490, %s66, 1
        %s1492 = smul.addr %s1491, 4
        %s1493 = smul.addr %s1492, 8
        %s1494 = scalar_lea.vmem %s2, %s1493
        %p1495 = scmp.lt.s32.totalorder %s66, 1
        %s1496 = scalar_select %p1495, %s66, 1
        %s1497 = smul.addr %s1496, 4
        %s1498 = smul.addr %s1497, 8
        %s1499 = scalar_lea.vmem %s3, %s1498
        %p1500 = scmp.lt.s32.totalorder %s66, 1
        %s1501 = scalar_select %p1500, %s66, 1
        %s1502 = smul.addr %s1501, 4
        %s1503 = smul.addr %s1502, 8
        %s1504 = scalar_lea.vmem %s4, %s1503
        %p1505 = scmp.lt.s32.totalorder %s66, 1
        %s1506 = scalar_select %p1505, %s66, 1
        %s1507 = scalar_lea.vmem %s5, %s1506
        %p1508 = scmp.lt.s32.totalorder %s66, 1
        %s1509 = scalar_select %p1508, %s66, 1
        %s1510 = scalar_lea.vmem %s6, %s1509
        %p1511 = scmp.lt.s32.totalorder %s66, 1
        %s1512 = scalar_select %p1511, %s66, 1
        %s1513 = scalar_lea.vmem %s7, %s1512
        %p1514 = scmp.lt.s32.totalorder %s66, 1
        %s1515 = scalar_select %p1514, %s66, 1
        %s1516 = smul.addr %s1515, 4
        %s1517 = smul.addr %s1516, 8
        %s1518 = scalar_lea.vmem %s8, %s1517
        %p1519 = scmp.lt.s32.totalorder %s66, 1
        %s1520 = scalar_select %p1519, %s66, 1
        %s1521 = smul.addr %s1520, 4
        %s1522 = smul.addr %s1521, 8
        %s1523 = scalar_lea.vmem %s10, %s1522
        %p1524 = scmp.lt.s32.totalorder %s66, 1
        %s1525 = scalar_select %p1524, %s66, 1
        %s1526 = smul.addr %s1525, 4
        %s1527 = smul.addr %s1526, 8
        %s1528 = scalar_lea.vmem %s18, %s1527
        %p1529 = scmp.lt.s32.totalorder %s66, 1
        %s1530 = scalar_select %p1529, %s66, 1
        %s1531 = smul.addr %s1530, 8
        %s1532 = smul.addr %s1531, 8
        %s1533 = scalar_lea.vmem %s20, %s1532
        %p1534 = scmp.eq.s32.totalorder %s66, 0
        // Predicated region
        $region197: #{_lambda_.1} parent=131 // pred_check
          %p1535 = pneg %p1534
        $region198: #{_lambda_.1} parent=131 // pred_check_branch
          %1537 = sbr.rel (%p1535) target = $region200
        $region199: #{_lambda_.1} parent=131 // pred_region
          %v1538 = vld [vmem:[%s0] sm:$0xff]
          %v1539 = vld [vmem:[%s0 + $0x8] sm:$0xff]
          %vm1540 = vcmask 261120
          %1541 = vst.msk [vmem:[#allocation2] sm:$0xff] %vm1540, %v1538
          %1542 = vst.msk [vmem:[#allocation2 + $0x8] sm:$0xff] %vm1540, %v1539
        $region200: #{_lambda_.1} parent=131 // pred_fallthru
          _
        %v1543 = vld [vmem:[#allocation2] sm:$0xff]
        %v1544 = vld [vmem:[#allocation2 + $0x8] sm:$0xff]
        %v1545 = vld [vmem:[%s1494] sm:$0xff]
        %v1546 = vld [vmem:[%s1494 + $0x8] sm:$0xff]
        %v1547 = vld [vmem:[%s1494 + $0x10] sm:$0xff]
        %v1548 = vld [vmem:[%s1494 + $0x18] sm:$0xff]
        %v1549 = vld [vmem:[%s1507] sm:$0x1]
        %v1551 = vlaneseq
        %v1552 = vshrl.u32 %v1551, 7
        %v1553 = vsub.s32 0, %v1552
        %v1554 = vrot.slane %v1549, %v1553
        %vm1556 = vcmask 261120
        %v1558 = vsel %vm1556, %v1543, 0
        %v1561 = vsel %vm1556, %v1544, 0
        %1563 = vmatprep.subr.mxu0 0.0
        %1564 = vmatpush1.msra.mxu0 %v1545
        %1565 = vmatprep.subr.mxu0 0.0
        %1566 = vmatpush1.msra.mxu0 %v1546
        %1567 = vmatprep.subr.mxu0 0.0
        %1568 = vmatpush1.msra.mxu0 %v1547
        %1569 = vmatprep.subr.mxu0 0.0
        %1570 = vmatpush1.msra.mxu0 %v1548
        %1571 = vmatprep.subr.mxu0 0.0
        %1572 = vmatpush1.msra.mxu0 0.0
        %1573 = vmatprep.subr.mxu0 0.0
        %1574 = vmatpush1.msra.mxu0 0.0
        %1575 = vmatprep.subr.mxu0 0.0
        %1576 = vmatpush1.msra.mxu0 0.0
        %1577 = vmatprep.subr.mxu0 0.0
        %1578 = vmatpush1.msra.mxu0 0.0
        %1579 = vmatprep.subr.mxu0 0.0
        %1580 = vmatpush1.msra.mxu0 0.0
        %1581 = vmatprep.subr.mxu0 0.0
        %1582 = vmatpush1.msra.mxu0 0.0
        %1583 = vmatprep.subr.mxu0 0.0
        %1584 = vmatpush1.msra.mxu0 0.0
        %1585 = vmatprep.subr.mxu0 0.0
        %1586 = vmatpush1.msra.mxu0 0.0
        %1587 = vmatprep.subr.mxu0 0.0
        %1588 = vmatpush1.msra.mxu0 0.0
        %1589 = vmatprep.subr.mxu0 0.0
        %1590 = vmatpush1.msra.mxu0 0.0
        %1591 = vmatprep.subr.mxu0 0.0
        %1592 = vmatpush1.msra.mxu0 0.0
        %1593 = vmatprep.subr.mxu0 0.0
        %1594 = vmatpush1.msra.mxu0 0.0
        %1595 = vmatprep.subr.mxu0 0.0
        %1596 = vmatpush1.msra.mxu0 0.0
        %1597 = vmatprep.subr.mxu0 0.0
        %1598 = vmatpush1.msra.mxu0 0.0
        %1599 = vmatprep.subr.mxu0 0.0
        %1600 = vmatpush1.msra.mxu0 0.0
        %1601 = vmatprep.subr.mxu0 0.0
        %1602 = vmatpush1.msra.mxu0 0.0
        %1603 = vmatprep.subr.mxu0 0.0
        %1604 = vmatpush1.msra.mxu0 0.0
        %1605 = vmatprep.subr.mxu0 0.0
        %1606 = vmatpush1.msra.mxu0 0.0
        %1607 = vmatprep.subr.mxu0 0.0
        %1608 = vmatpush1.msra.mxu0 0.0
        %1609 = vmatprep.subr.mxu0 0.0
        %1610 = vmatpush1.msra.mxu0 0.0
        %1611 = vmatprep.subr.mxu0 0.0
        %1612 = vmatpush1.msra.mxu0 0.0
        %1613 = vmatprep.subr.mxu0 0.0
        %1614 = vmatpush1.msra.mxu0 0.0
        %1615 = vmatprep.subr.mxu0 0.0
        %1616 = vmatpush1.msra.mxu0 0.0
        %1617 = vmatprep.subr.mxu0 0.0
        %1618 = vmatpush1.msra.mxu0 0.0
        %1619 = vmatprep.subr.mxu0 0.0
        %1620 = vmatpush1.msra.mxu0 0.0
        %1621 = vmatprep.subr.mxu0 0.0
        %1622 = vmatpush1.msra.mxu0 0.0
        %1623 = vmatprep.subr.mxu0 0.0
        %1624 = vmatpush1.msra.mxu0 0.0
        %1625 = vmatprep.subr.mxu0 0.0
        %1626 = vmatpush1.msra.mxu0 0.0
        %1627 = vmatprep.mubr.f32.mxu0 0.0
        %1628 = vmatmul.mubr.f32.gmra.mrb[0].mxu0 %v1558
        %v1629 = vpop.f32.mrb[0].mxu0
        %v1630 = vadd.f32 %v1554, %v1629
        %v1631 = vpop.f32.mrb[0].mxu0
        %1632 = vmatprep.mubr.f32.mxu0 0.0
        %1633 = vmatmul.mubr.f32.gmra.mrb[0].mxu0 %v1561
        %v1634 = vpop.f32.mrb[0].mxu0
        %v1635 = vadd.f32 %v1554, %v1634
        %v1636 = vpop.f32.mrb[0].mxu0
        %1637 = vdwg.mxu0
        %v1638 = vld [vmem:[%s1499] sm:$0xff]
        %v1639 = vld [vmem:[%s1499 + $0x8] sm:$0xff]
        %v1640 = vld [vmem:[%s1499 + $0x10] sm:$0xff]
        %v1641 = vld [vmem:[%s1499 + $0x18] sm:$0xff]
        %v1642 = vld [vmem:[%s1510] sm:$0x1]
        %v1644 = vlaneseq
        %v1645 = vshrl.u32 %v1644, 7
        %v1646 = vsub.s32 0, %v1645
        %v1647 = vrot.slane %v1642, %v1646
        %1649 = vmatprep.subr.mxu0 0.0
        %1650 = vmatpush1.msra.mxu0 %v1638
        %1651 = vmatprep.subr.mxu0 0.0
        %1652 = vmatpush1.msra.mxu0 %v1639
        %1653 = vmatprep.subr.mxu0 0.0
        %1654 = vmatpush1.msra.mxu0 %v1640
        %1655 = vmatprep.subr.mxu0 0.0
        %1656 = vmatpush1.msra.mxu0 %v1641
        %1657 = vmatprep.subr.mxu0 0.0
        %1658 = vmatpush1.msra.mxu0 0.0
        %1659 = vmatprep.subr.mxu0 0.0
        %1660 = vmatpush1.msra.mxu0 0.0
        %1661 = vmatprep.subr.mxu0 0.0
        %1662 = vmatpush1.msra.mxu0 0.0
        %1663 = vmatprep.subr.mxu0 0.0
        %1664 = vmatpush1.msra.mxu0 0.0
        %1665 = vmatprep.subr.mxu0 0.0
        %1666 = vmatpush1.msra.mxu0 0.0
        %1667 = vmatprep.subr.mxu0 0.0
        %1668 = vmatpush1.msra.mxu0 0.0
        %1669 = vmatprep.subr.mxu0 0.0
        %1670 = vmatpush1.msra.mxu0 0.0
        %1671 = vmatprep.subr.mxu0 0.0
        %1672 = vmatpush1.msra.mxu0 0.0
        %1673 = vmatprep.subr.mxu0 0.0
        %1674 = vmatpush1.msra.mxu0 0.0
        %1675 = vmatprep.subr.mxu0 0.0
        %1676 = vmatpush1.msra.mxu0 0.0
        %1677 = vmatprep.subr.mxu0 0.0
        %1678 = vmatpush1.msra.mxu0 0.0
        %1679 = vmatprep.subr.mxu0 0.0
        %1680 = vmatpush1.msra.mxu0 0.0
        %1681 = vmatprep.subr.mxu0 0.0
        %1682 = vmatpush1.msra.mxu0 0.0
        %1683 = vmatprep.subr.mxu0 0.0
        %1684 = vmatpush1.msra.mxu0 0.0
        %1685 = vmatprep.subr.mxu0 0.0
        %1686 = vmatpush1.msra.mxu0 0.0
        %1687 = vmatprep.subr.mxu0 0.0
        %1688 = vmatpush1.msra.mxu0 0.0
        %1689 = vmatprep.subr.mxu0 0.0
        %1690 = vmatpush1.msra.mxu0 0.0
        %1691 = vmatprep.subr.mxu0 0.0
        %1692 = vmatpush1.msra.mxu0 0.0
        %1693 = vmatprep.subr.mxu0 0.0
        %1694 = vmatpush1.msra.mxu0 0.0
        %1695 = vmatprep.subr.mxu0 0.0
        %1696 = vmatpush1.msra.mxu0 0.0
        %1697 = vmatprep.subr.mxu0 0.0
        %1698 = vmatpush1.msra.mxu0 0.0
        %1699 = vmatprep.subr.mxu0 0.0
        %1700 = vmatpush1.msra.mxu0 0.0
        %1701 = vmatprep.subr.mxu0 0.0
        %1702 = vmatpush1.msra.mxu0 0.0
        %1703 = vmatprep.subr.mxu0 0.0
        %1704 = vmatpush1.msra.mxu0 0.0
        %1705 = vmatprep.subr.mxu0 0.0
        %1706 = vmatpush1.msra.mxu0 0.0
        %1707 = vmatprep.subr.mxu0 0.0
        %1708 = vmatpush1.msra.mxu0 0.0
        %1709 = vmatprep.subr.mxu0 0.0
        %1710 = vmatpush1.msra.mxu0 0.0
        %1711 = vmatprep.subr.mxu0 0.0
        %1712 = vmatpush1.msra.mxu0 0.0
        %1713 = vmatprep.mubr.f32.mxu0 0.0
        %1714 = vmatmul.mubr.f32.gmra.mrb[0].mxu0 %v1558
        %v1715 = vpop.f32.mrb[0].mxu0
        %v1716 = vadd.f32 %v1647, %v1715
        %v1717 = vpop.f32.mrb[0].mxu0
        %1718 = vmatprep.mubr.f32.mxu0 0.0
        %1719 = vmatmul.mubr.f32.gmra.mrb[0].mxu0 %v1561
        %v1720 = vpop.f32.mrb[0].mxu0
        %v1721 = vadd.f32 %v1647, %v1720
        %v1722 = vpop.f32.mrb[0].mxu0
        %1723 = vdwg.mxu0
        %v1724 = vld [vmem:[%s1504] sm:$0xff]
        %v1725 = vld [vmem:[%s1504 + $0x8] sm:$0xff]
        %v1726 = vld [vmem:[%s1504 + $0x10] sm:$0xff]
        %v1727 = vld [vmem:[%s1504 + $0x18] sm:$0xff]
        %v1728 = vld [vmem:[%s1513] sm:$0x1]
        %v1730 = vlaneseq
        %v1731 = vshrl.u32 %v1730, 7
        %v1732 = vsub.s32 0, %v1731
        %v1733 = vrot.slane %v1728, %v1732
        %1735 = vmatprep.subr.mxu0 0.0
        %1736 = vmatpush1.msra.mxu0 %v1724
        %1737 = vmatprep.subr.mxu0 0.0
        %1738 = vmatpush1.msra.mxu0 %v1725
        %1739 = vmatprep.subr.mxu0 0.0
        %1740 = vmatpush1.msra.mxu0 %v1726
        %1741 = vmatprep.subr.mxu0 0.0
        %1742 = vmatpush1.msra.mxu0 %v1727
        %1743 = vmatprep.subr.mxu0 0.0
        %1744 = vmatpush1.msra.mxu0 0.0
        %1745 = vmatprep.subr.mxu0 0.0
        %1746 = vmatpush1.msra.mxu0 0.0
        %1747 = vmatprep.subr.mxu0 0.0
        %1748 = vmatpush1.msra.mxu0 0.0
        %1749 = vmatprep.subr.mxu0 0.0
        %1750 = vmatpush1.msra.mxu0 0.0
        %1751 = vmatprep.subr.mxu0 0.0
        %1752 = vmatpush1.msra.mxu0 0.0
        %1753 = vmatprep.subr.mxu0 0.0
        %1754 = vmatpush1.msra.mxu0 0.0
        %1755 = vmatprep.subr.mxu0 0.0
        %1756 = vmatpush1.msra.mxu0 0.0
        %1757 = vmatprep.subr.mxu0 0.0
        %1758 = vmatpush1.msra.mxu0 0.0
        %1759 = vmatprep.subr.mxu0 0.0
        %1760 = vmatpush1.msra.mxu0 0.0
        %1761 = vmatprep.subr.mxu0 0.0
        %1762 = vmatpush1.msra.mxu0 0.0
        %1763 = vmatprep.subr.mxu0 0.0
        %1764 = vmatpush1.msra.mxu0 0.0
        %1765 = vmatprep.subr.mxu0 0.0
        %1766 = vmatpush1.msra.mxu0 0.0
        %1767 = vmatprep.subr.mxu0 0.0
        %1768 = vmatpush1.msra.mxu0 0.0
        %1769 = vmatprep.subr.mxu0 0.0
        %1770 = vmatpush1.msra.mxu0 0.0
        %1771 = vmatprep.subr.mxu0 0.0
        %1772 = vmatpush1.msra.mxu0 0.0
        %1773 = vmatprep.subr.mxu0 0.0
        %1774 = vmatpush1.msra.mxu0 0.0
        %1775 = vmatprep.subr.mxu0 0.0
        %1776 = vmatpush1.msra.mxu0 0.0
        %1777 = vmatprep.subr.mxu0 0.0
        %1778 = vmatpush1.msra.mxu0 0.0
        %1779 = vmatprep.subr.mxu0 0.0
        %1780 = vmatpush1.msra.mxu0 0.0
        %1781 = vmatprep.subr.mxu0 0.0
        %1782 = vmatpush1.msra.mxu0 0.0
        %1783 = vmatprep.subr.mxu0 0.0
        %1784 = vmatpush1.msra.mxu0 0.0
        %1785 = vmatprep.subr.mxu0 0.0
        %1786 = vmatpush1.msra.mxu0 0.0
        %1787 = vmatprep.subr.mxu0 0.0
        %1788 = vmatpush1.msra.mxu0 0.0
        %1789 = vmatprep.subr.mxu0 0.0
        %1790 = vmatpush1.msra.mxu0 0.0
        %1791 = vmatprep.subr.mxu0 0.0
        %1792 = vmatpush1.msra.mxu0 0.0
        %1793 = vmatprep.subr.mxu0 0.0
        %1794 = vmatpush1.msra.mxu0 0.0
        %1795 = vmatprep.subr.mxu0 0.0
        %1796 = vmatpush1.msra.mxu0 0.0
        %1797 = vmatprep.subr.mxu0 0.0
        %1798 = vmatpush1.msra.mxu0 0.0
        %1799 = vmatprep.mubr.f32.mxu0 0.0
        %1800 = vmatmul.mubr.f32.gmra.mrb[0].mxu0 %v1558
        %v1801 = vpop.f32.mrb[0].mxu0
        %v1802 = vadd.f32 %v1733, %v1801
        %v1803 = vpop.f32.mrb[0].mxu0
        %1804 = vmatprep.mubr.f32.mxu0 0.0
        %1805 = vmatmul.mubr.f32.gmra.mrb[0].mxu0 %v1561
        %v1806 = vpop.f32.mrb[0].mxu0
        %v1807 = vadd.f32 %v1733, %v1806
        %v1808 = vpop.f32.mrb[0].mxu0
        %1809 = vdwg.mxu0
        %vm1810 = vcmask 64512
        %v1812 = vsel %vm1810, %v1630, 0
        %v1815 = vsel %vm1810, %v1716, 0
        %1817 = vmatprep.subr.mxu0 0.0
        %1818 = vmatpush1.xpose.msra.mxu0 %v1815
        %1819 = vmatprep.subr.mxu0 0.0
        %1820 = vmatpush1.xpose.msra.mxu0 0.0
        %1821 = vmatprep.subr.mxu0 0.0
        %1822 = vmatpush1.xpose.msra.mxu0 0.0
        %1823 = vmatprep.subr.mxu0 0.0
        %1824 = vmatpush1.xpose.msra.mxu0 0.0
        %1825 = vmatprep.subr.mxu0 0.0
        %1826 = vmatpush1.xpose.msra.mxu0 0.0
        %1827 = vmatprep.subr.mxu0 0.0
        %1828 = vmatpush1.xpose.msra.mxu0 0.0
        %1829 = vmatprep.subr.mxu0 0.0
        %1830 = vmatpush1.xpose.msra.mxu0 0.0
        %1831 = vmatprep.subr.mxu0 0.0
        %1832 = vmatpush1.xpose.msra.mxu0 0.0
        %1833 = vmatprep.subr.mxu0 0.0
        %1834 = vmatpush1.xpose.msra.mxu0 0.0
        %1835 = vmatprep.subr.mxu0 0.0
        %1836 = vmatpush1.xpose.msra.mxu0 0.0
        %1837 = vmatprep.subr.mxu0 0.0
        %1838 = vmatpush1.xpose.msra.mxu0 0.0
        %1839 = vmatprep.subr.mxu0 0.0
        %1840 = vmatpush1.xpose.msra.mxu0 0.0
        %1841 = vmatprep.subr.mxu0 0.0
        %1842 = vmatpush1.xpose.msra.mxu0 0.0
        %1843 = vmatprep.subr.mxu0 0.0
        %1844 = vmatpush1.xpose.msra.mxu0 0.0
        %1845 = vmatprep.subr.mxu0 0.0
        %1846 = vmatpush1.xpose.msra.mxu0 0.0
        %1847 = vmatprep.subr.mxu0 0.0
        %1848 = vmatpush1.xpose.msra.mxu0 0.0
        %1849 = vmatprep.subr.mxu0 0.0
        %1850 = vmatpush1.xpose.msra.mxu0 0.0
        %1851 = vmatprep.subr.mxu0 0.0
        %1852 = vmatpush1.xpose.msra.mxu0 0.0
        %1853 = vmatprep.subr.mxu0 0.0
        %1854 = vmatpush1.xpose.msra.mxu0 0.0
        %1855 = vmatprep.subr.mxu0 0.0
        %1856 = vmatpush1.xpose.msra.mxu0 0.0
        %1857 = vmatprep.subr.mxu0 0.0
        %1858 = vmatpush1.xpose.msra.mxu0 0.0
        %1859 = vmatprep.subr.mxu0 0.0
        %1860 = vmatpush1.xpose.msra.mxu0 0.0
        %1861 = vmatprep.subr.mxu0 0.0
        %1862 = vmatpush1.xpose.msra.mxu0 0.0
        %1863 = vmatprep.subr.mxu0 0.0
        %1864 = vmatpush1.xpose.msra.mxu0 0.0
        %1865 = vmatprep.subr.mxu0 0.0
        %1866 = vmatpush1.xpose.msra.mxu0 0.0
        %1867 = vmatprep.subr.mxu0 0.0
        %1868 = vmatpush1.xpose.msra.mxu0 0.0
        %1869 = vmatprep.subr.mxu0 0.0
        %1870 = vmatpush1.xpose.msra.mxu0 0.0
        %1871 = vmatprep.subr.mxu0 0.0
        %1872 = vmatpush1.xpose.msra.mxu0 0.0
        %1873 = vmatprep.subr.mxu0 0.0
        %1874 = vmatpush1.xpose.msra.mxu0 0.0
        %1875 = vmatprep.subr.mxu0 0.0
        %1876 = vmatpush1.xpose.msra.mxu0 0.0
        %1877 = vmatprep.subr.mxu0 0.0
        %1878 = vmatpush1.xpose.msra.mxu0 0.0
        %1879 = vmatprep.subr.mxu0 0.0
        %1880 = vmatpush1.xpose.msra.mxu0 0.0
        %1881 = vmatprep.mubr.f32.mxu0 0.0
        %1882 = vmatmul.mubr.f32.gmra.mrb[0].mxu0 %v1812
        %v1883 = vpop.f32.mrb[0].mxu0
        %v1884 = vadd.f32 0.0, %v1883
        %v1885 = vpop.f32.mrb[0].mxu0
        %1886 = vdwg.mxu0
        %v1888 = vsel %vm1810, %v1635, 0
        %v1891 = vsel %vm1810, %v1721, 0
        %1893 = vmatprep.subr.mxu0 0.0
        %1894 = vmatpush1.xpose.msra.mxu0 %v1891
        %1895 = vmatprep.subr.mxu0 0.0
        %1896 = vmatpush1.xpose.msra.mxu0 0.0
        %1897 = vmatprep.subr.mxu0 0.0
        %1898 = vmatpush1.xpose.msra.mxu0 0.0
        %1899 = vmatprep.subr.mxu0 0.0
        %1900 = vmatpush1.xpose.msra.mxu0 0.0
        %1901 = vmatprep.subr.mxu0 0.0
        %1902 = vmatpush1.xpose.msra.mxu0 0.0
        %1903 = vmatprep.subr.mxu0 0.0
        %1904 = vmatpush1.xpose.msra.mxu0 0.0
        %1905 = vmatprep.subr.mxu0 0.0
        %1906 = vmatpush1.xpose.msra.mxu0 0.0
        %1907 = vmatprep.subr.mxu0 0.0
        %1908 = vmatpush1.xpose.msra.mxu0 0.0
        %1909 = vmatprep.subr.mxu0 0.0
        %1910 = vmatpush1.xpose.msra.mxu0 0.0
        %1911 = vmatprep.subr.mxu0 0.0
        %1912 = vmatpush1.xpose.msra.mxu0 0.0
        %1913 = vmatprep.subr.mxu0 0.0
        %1914 = vmatpush1.xpose.msra.mxu0 0.0
        %1915 = vmatprep.subr.mxu0 0.0
        %1916 = vmatpush1.xpose.msra.mxu0 0.0
        %1917 = vmatprep.subr.mxu0 0.0
        %1918 = vmatpush1.xpose.msra.mxu0 0.0
        %1919 = vmatprep.subr.mxu0 0.0
        %1920 = vmatpush1.xpose.msra.mxu0 0.0
        %1921 = vmatprep.subr.mxu0 0.0
        %1922 = vmatpush1.xpose.msra.mxu0 0.0
        %1923 = vmatprep.subr.mxu0 0.0
        %1924 = vmatpush1.xpose.msra.mxu0 0.0
        %1925 = vmatprep.subr.mxu0 0.0
        %1926 = vmatpush1.xpose.msra.mxu0 0.0
        %1927 = vmatprep.subr.mxu0 0.0
        %1928 = vmatpush1.xpose.msra.mxu0 0.0
        %1929 = vmatprep.subr.mxu0 0.0
        %1930 = vmatpush1.xpose.msra.mxu0 0.0
        %1931 = vmatprep.subr.mxu0 0.0
        %1932 = vmatpush1.xpose.msra.mxu0 0.0
        %1933 = vmatprep.subr.mxu0 0.0
        %1934 = vmatpush1.xpose.msra.mxu0 0.0
        %1935 = vmatprep.subr.mxu0 0.0
        %1936 = vmatpush1.xpose.msra.mxu0 0.0
        %1937 = vmatprep.subr.mxu0 0.0
        %1938 = vmatpush1.xpose.msra.mxu0 0.0
        %1939 = vmatprep.subr.mxu0 0.0
        %1940 = vmatpush1.xpose.msra.mxu0 0.0
        %1941 = vmatprep.subr.mxu0 0.0
        %1942 = vmatpush1.xpose.msra.mxu0 0.0
        %1943 = vmatprep.subr.mxu0 0.0
        %1944 = vmatpush1.xpose.msra.mxu0 0.0
        %1945 = vmatprep.subr.mxu0 0.0
        %1946 = vmatpush1.xpose.msra.mxu0 0.0
        %1947 = vmatprep.subr.mxu0 0.0
        %1948 = vmatpush1.xpose.msra.mxu0 0.0
        %1949 = vmatprep.subr.mxu0 0.0
        %1950 = vmatpush1.xpose.msra.mxu0 0.0
        %1951 = vmatprep.subr.mxu0 0.0
        %1952 = vmatpush1.xpose.msra.mxu0 0.0
        %1953 = vmatprep.subr.mxu0 0.0
        %1954 = vmatpush1.xpose.msra.mxu0 0.0
        %1955 = vmatprep.subr.mxu0 0.0
        %1956 = vmatpush1.xpose.msra.mxu0 0.0
        %1957 = vmatprep.mubr.f32.mxu0 0.0
        %1958 = vmatmul.mubr.f32.gmra.mrb[0].mxu0 %v1888
        %v1959 = vpop.f32.mrb[0].mxu0
        %v1960 = vadd.f32 0.0, %v1959
        %v1961 = vpop.f32.mrb[0].mxu0
        %1962 = vdwg.mxu0
        %v1963 = vmul.f32 %v1884, 0.35355338
        %v1964 = vmul.f32 %v1960, 0.35355338
        %v1965 = vsel %vm1810, %v1963, -inf
        %1966 = vmax.xlane.f32.xlu0 %v1965
        %v1967 = vpop.xlane.xlu0 %1966
        %v1968 = vsel %vm1810, %v1964, -inf
        %1969 = vmax.xlane.f32.xlu0 %v1968
        %v1970 = vpop.xlane.xlu0 %1969
        %v1971 = vsub.f32 %v1963, %v1967
        %v1972 = vsub.f32 %v1964, %v1970
        %v1973 = vmul.f32 %v1971, 1.442695
        %v1974 = vpow.pop %v1973
        %v1975 = vmul.f32 %v1972, 1.442695
        %v1976 = vpow.pop %v1975
        %v1977 = vsel %vm1810, %v1974, 0.0
        %1978 = vadd.xlane.f32.xlu0 %v1977
        %v1979 = vpop.xlane.xlu0 %1978
        %v1980 = vsel %vm1810, %v1976, 0.0
        %1981 = vadd.xlane.f32.xlu0 %v1980
        %v1982 = vpop.xlane.xlu0 %1981
        %v1983 = vrcp.pop %v1979
        %v1984 = vmul.f32 %v1974, %v1983
        %v1985 = vrcp.pop %v1982
        %v1986 = vmul.f32 %v1976, %v1985
        %v1988 = vsel %vm1810, %v1984, 0
        %1990 = vmatprep.subr.mxu0 0.0
        %1991 = vmatpush1.msra.mxu0 %v1802
        %1992 = vmatprep.subr.mxu0 0.0
        %1993 = vmatpush1.msra.mxu0 0.0
        %1994 = vmatprep.subr.mxu0 0.0
        %1995 = vmatpush1.msra.mxu0 0.0
        %1996 = vmatprep.subr.mxu0 0.0
        %1997 = vmatpush1.msra.mxu0 0.0
        %1998 = vmatprep.subr.mxu0 0.0
        %1999 = vmatpush1.msra.mxu0 0.0
        %2000 = vmatprep.subr.mxu0 0.0
        %2001 = vmatpush1.msra.mxu0 0.0
        %2002 = vmatprep.subr.mxu0 0.0
        %2003 = vmatpush1.msra.mxu0 0.0
        %2004 = vmatprep.subr.mxu0 0.0
        %2005 = vmatpush1.msra.mxu0 0.0
        %2006 = vmatprep.subr.mxu0 0.0
        %2007 = vmatpush1.msra.mxu0 0.0
        %2008 = vmatprep.subr.mxu0 0.0
        %2009 = vmatpush1.msra.mxu0 0.0
        %2010 = vmatprep.subr.mxu0 0.0
        %2011 = vmatpush1.msra.mxu0 0.0
        %2012 = vmatprep.subr.mxu0 0.0
        %2013 = vmatpush1.msra.mxu0 0.0
        %2014 = vmatprep.subr.mxu0 0.0
        %2015 = vmatpush1.msra.mxu0 0.0
        %2016 = vmatprep.subr.mxu0 0.0
        %2017 = vmatpush1.msra.mxu0 0.0
        %2018 = vmatprep.subr.mxu0 0.0
        %2019 = vmatpush1.msra.mxu0 0.0
        %2020 = vmatprep.subr.mxu0 0.0
        %2021 = vmatpush1.msra.mxu0 0.0
        %2022 = vmatprep.subr.mxu0 0.0
        %2023 = vmatpush1.msra.mxu0 0.0
        %2024 = vmatprep.subr.mxu0 0.0
        %2025 = vmatpush1.msra.mxu0 0.0
        %2026 = vmatprep.subr.mxu0 0.0
        %2027 = vmatpush1.msra.mxu0 0.0
        %2028 = vmatprep.subr.mxu0 0.0
        %2029 = vmatpush1.msra.mxu0 0.0
        %2030 = vmatprep.subr.mxu0 0.0
        %2031 = vmatpush1.msra.mxu0 0.0
        %2032 = vmatprep.subr.mxu0 0.0
        %2033 = vmatpush1.msra.mxu0 0.0
        %2034 = vmatprep.subr.mxu0 0.0
        %2035 = vmatpush1.msra.mxu0 0.0
        %2036 = vmatprep.subr.mxu0 0.0
        %2037 = vmatpush1.msra.mxu0 0.0
        %2038 = vmatprep.subr.mxu0 0.0
        %2039 = vmatpush1.msra.mxu0 0.0
        %2040 = vmatprep.subr.mxu0 0.0
        %2041 = vmatpush1.msra.mxu0 0.0
        %2042 = vmatprep.subr.mxu0 0.0
        %2043 = vmatpush1.msra.mxu0 0.0
        %2044 = vmatprep.subr.mxu0 0.0
        %2045 = vmatpush1.msra.mxu0 0.0
        %2046 = vmatprep.subr.mxu0 0.0
        %2047 = vmatpush1.msra.mxu0 0.0
        %2048 = vmatprep.subr.mxu0 0.0
        %2049 = vmatpush1.msra.mxu0 0.0
        %2050 = vmatprep.subr.mxu0 0.0
        %2051 = vmatpush1.msra.mxu0 0.0
        %2052 = vmatprep.subr.mxu0 0.0
        %2053 = vmatpush1.msra.mxu0 0.0
        %2054 = vmatprep.mubr.f32.mxu0 0.0
        %2055 = vmatmul.mubr.f32.gmra.mrb[0].mxu0 %v1988
        %v2056 = vpop.f32.mrb[0].mxu0
        %v2057 = vadd.f32 0.0, %v2056
        %v2058 = vpop.f32.mrb[0].mxu0
        %2059 = vdwg.mxu0
        %v2061 = vsel %vm1810, %v1986, 0
        %2063 = vmatprep.subr.mxu0 0.0
        %2064 = vmatpush1.msra.mxu0 %v1807
        %2065 = vmatprep.subr.mxu0 0.0
        %2066 = vmatpush1.msra.mxu0 0.0
        %2067 = vmatprep.subr.mxu0 0.0
        %2068 = vmatpush1.msra.mxu0 0.0
        %2069 = vmatprep.subr.mxu0 0.0
        %2070 = vmatpush1.msra.mxu0 0.0
        %2071 = vmatprep.subr.mxu0 0.0
        %2072 = vmatpush1.msra.mxu0 0.0
        %2073 = vmatprep.subr.mxu0 0.0
        %2074 = vmatpush1.msra.mxu0 0.0
        %2075 = vmatprep.subr.mxu0 0.0
        %2076 = vmatpush1.msra.mxu0 0.0
        %2077 = vmatprep.subr.mxu0 0.0
        %2078 = vmatpush1.msra.mxu0 0.0
        %2079 = vmatprep.subr.mxu0 0.0
        %2080 = vmatpush1.msra.mxu0 0.0
        %2081 = vmatprep.subr.mxu0 0.0
        %2082 = vmatpush1.msra.mxu0 0.0
        %2083 = vmatprep.subr.mxu0 0.0
        %2084 = vmatpush1.msra.mxu0 0.0
        %2085 = vmatprep.subr.mxu0 0.0
        %2086 = vmatpush1.msra.mxu0 0.0
        %2087 = vmatprep.subr.mxu0 0.0
        %2088 = vmatpush1.msra.mxu0 0.0
        %2089 = vmatprep.subr.mxu0 0.0
        %2090 = vmatpush1.msra.mxu0 0.0
        %2091 = vmatprep.subr.mxu0 0.0
        %2092 = vmatpush1.msra.mxu0 0.0
        %2093 = vmatprep.subr.mxu0 0.0
        %2094 = vmatpush1.msra.mxu0 0.0
        %2095 = vmatprep.subr.mxu0 0.0
        %2096 = vmatpush1.msra.mxu0 0.0
        %2097 = vmatprep.subr.mxu0 0.0
        %2098 = vmatpush1.msra.mxu0 0.0
        %2099 = vmatprep.subr.mxu0 0.0
        %2100 = vmatpush1.msra.mxu0 0.0
        %2101 = vmatprep.subr.mxu0 0.0
        %2102 = vmatpush1.msra.mxu0 0.0
        %2103 = vmatprep.subr.mxu0 0.0
        %2104 = vmatpush1.msra.mxu0 0.0
        %2105 = vmatprep.subr.mxu0 0.0
        %2106 = vmatpush1.msra.mxu0 0.0
        %2107 = vmatprep.subr.mxu0 0.0
        %2108 = vmatpush1.msra.mxu0 0.0
        %2109 = vmatprep.subr.mxu0 0.0
        %2110 = vmatpush1.msra.mxu0 0.0
        %2111 = vmatprep.subr.mxu0 0.0
        %2112 = vmatpush1.msra.mxu0 0.0
        %2113 = vmatprep.subr.mxu0 0.0
        %2114 = vmatpush1.msra.mxu0 0.0
        %2115 = vmatprep.subr.mxu0 0.0
        %2116 = vmatpush1.msra.mxu0 0.0
        %2117 = vmatprep.subr.mxu0 0.0
        %2118 = vmatpush1.msra.mxu0 0.0
        %2119 = vmatprep.subr.mxu0 0.0
        %2120 = vmatpush1.msra.mxu0 0.0
        %2121 = vmatprep.subr.mxu0 0.0
        %2122 = vmatpush1.msra.mxu0 0.0
        %2123 = vmatprep.subr.mxu0 0.0
        %2124 = vmatpush1.msra.mxu0 0.0
        %2125 = vmatprep.subr.mxu0 0.0
        %2126 = vmatpush1.msra.mxu0 0.0
        %2127 = vmatprep.mubr.f32.mxu0 0.0
        %2128 = vmatmul.mubr.f32.gmra.mrb[0].mxu0 %v2061
        %v2129 = vpop.f32.mrb[0].mxu0
        %v2130 = vadd.f32 0.0, %v2129
        %v2131 = vpop.f32.mrb[0].mxu0
        %2132 = vdwg.mxu0
        %2133 = vrot.lane.b32.xlu0 %v1630, 120
        %v2134 = vpop.permute.xlu0 %2133
        %2135 = vrot.lane.b32.xlu0 %v1716, 120
        %v2136 = vpop.permute.xlu0 %2135
        %v2137 = vsel %vm1810, %v2134, 0
        %v2139 = vsel %vm1810, %v2136, 0
        %2141 = vmatprep.subr.mxu0 0.0
        %2142 = vmatpush1.xpose.msra.mxu0 %v2139
        %2143 = vmatprep.subr.mxu0 0.0
        %2144 = vmatpush1.xpose.msra.mxu0 0.0
        %2145 = vmatprep.subr.mxu0 0.0
        %2146 = vmatpush1.xpose.msra.mxu0 0.0
        %2147 = vmatprep.subr.mxu0 0.0
        %2148 = vmatpush1.xpose.msra.mxu0 0.0
        %2149 = vmatprep.subr.mxu0 0.0
        %2150 = vmatpush1.xpose.msra.mxu0 0.0
        %2151 = vmatprep.subr.mxu0 0.0
        %2152 = vmatpush1.xpose.msra.mxu0 0.0
        %2153 = vmatprep.subr.mxu0 0.0
        %2154 = vmatpush1.xpose.msra.mxu0 0.0
        %2155 = vmatprep.subr.mxu0 0.0
        %2156 = vmatpush1.xpose.msra.mxu0 0.0
        %2157 = vmatprep.subr.mxu0 0.0
        %2158 = vmatpush1.xpose.msra.mxu0 0.0
        %2159 = vmatprep.subr.mxu0 0.0
        %2160 = vmatpush1.xpose.msra.mxu0 0.0
        %2161 = vmatprep.subr.mxu0 0.0
        %2162 = vmatpush1.xpose.msra.mxu0 0.0
        %2163 = vmatprep.subr.mxu0 0.0
        %2164 = vmatpush1.xpose.msra.mxu0 0.0
        %2165 = vmatprep.subr.mxu0 0.0
        %2166 = vmatpush1.xpose.msra.mxu0 0.0
        %2167 = vmatprep.subr.mxu0 0.0
        %2168 = vmatpush1.xpose.msra.mxu0 0.0
        %2169 = vmatprep.subr.mxu0 0.0
        %2170 = vmatpush1.xpose.msra.mxu0 0.0
        %2171 = vmatprep.subr.mxu0 0.0
        %2172 = vmatpush1.xpose.msra.mxu0 0.0
        %2173 = vmatprep.subr.mxu0 0.0
        %2174 = vmatpush1.xpose.msra.mxu0 0.0
        %2175 = vmatprep.subr.mxu0 0.0
        %2176 = vmatpush1.xpose.msra.mxu0 0.0
        %2177 = vmatprep.subr.mxu0 0.0
        %2178 = vmatpush1.xpose.msra.mxu0 0.0
        %2179 = vmatprep.subr.mxu0 0.0
        %2180 = vmatpush1.xpose.msra.mxu0 0.0
        %2181 = vmatprep.subr.mxu0 0.0
        %2182 = vmatpush1.xpose.msra.mxu0 0.0
        %2183 = vmatprep.subr.mxu0 0.0
        %2184 = vmatpush1.xpose.msra.mxu0 0.0
        %2185 = vmatprep.subr.mxu0 0.0
        %2186 = vmatpush1.xpose.msra.mxu0 0.0
        %2187 = vmatprep.subr.mxu0 0.0
        %2188 = vmatpush1.xpose.msra.mxu0 0.0
        %2189 = vmatprep.subr.mxu0 0.0
        %2190 = vmatpush1.xpose.msra.mxu0 0.0
        %2191 = vmatprep.subr.mxu0 0.0
        %2192 = vmatpush1.xpose.msra.mxu0 0.0
        %2193 = vmatprep.subr.mxu0 0.0
        %2194 = vmatpush1.xpose.msra.mxu0 0.0
        %2195 = vmatprep.subr.mxu0 0.0
        %2196 = vmatpush1.xpose.msra.mxu0 0.0
        %2197 = vmatprep.subr.mxu0 0.0
        %2198 = vmatpush1.xpose.msra.mxu0 0.0
        %2199 = vmatprep.subr.mxu0 0.0
        %2200 = vmatpush1.xpose.msra.mxu0 0.0
        %2201 = vmatprep.subr.mxu0 0.0
        %2202 = vmatpush1.xpose.msra.mxu0 0.0
        %2203 = vmatprep.subr.mxu0 0.0
        %2204 = vmatpush1.xpose.msra.mxu0 0.0
        %2205 = vmatprep.mubr.f32.mxu0 0.0
        %2206 = vmatmul.mubr.f32.gmra.mrb[0].mxu0 %v2137
        %v2207 = vpop.f32.mrb[0].mxu0
        %v2208 = vadd.f32 0.0, %v2207
        %v2209 = vpop.f32.mrb[0].mxu0
        %2210 = vdwg.mxu0
        %2211 = vrot.lane.b32.xlu0 %v1635, 120
        %v2212 = vpop.permute.xlu0 %2211
        %2213 = vrot.lane.b32.xlu0 %v1721, 120
        %v2214 = vpop.permute.xlu0 %2213
        %v2215 = vsel %vm1810, %v2212, 0
        %v2217 = vsel %vm1810, %v2214, 0
        %2219 = vmatprep.subr.mxu0 0.0
        %2220 = vmatpush1.xpose.msra.mxu0 %v2217
        %2221 = vmatprep.subr.mxu0 0.0
        %2222 = vmatpush1.xpose.msra.mxu0 0.0
        %2223 = vmatprep.subr.mxu0 0.0
        %2224 = vmatpush1.xpose.msra.mxu0 0.0
        %2225 = vmatprep.subr.mxu0 0.0
        %2226 = vmatpush1.xpose.msra.mxu0 0.0
        %2227 = vmatprep.subr.mxu0 0.0
        %2228 = vmatpush1.xpose.msra.mxu0 0.0
        %2229 = vmatprep.subr.mxu0 0.0
        %2230 = vmatpush1.xpose.msra.mxu0 0.0
        %2231 = vmatprep.subr.mxu0 0.0
        %2232 = vmatpush1.xpose.msra.mxu0 0.0
        %2233 = vmatprep.subr.mxu0 0.0
        %2234 = vmatpush1.xpose.msra.mxu0 0.0
        %2235 = vmatprep.subr.mxu0 0.0
        %2236 = vmatpush1.xpose.msra.mxu0 0.0
        %2237 = vmatprep.subr.mxu0 0.0
        %2238 = vmatpush1.xpose.msra.mxu0 0.0
        %2239 = vmatprep.subr.mxu0 0.0
        %2240 = vmatpush1.xpose.msra.mxu0 0.0
        %2241 = vmatprep.subr.mxu0 0.0
        %2242 = vmatpush1.xpose.msra.mxu0 0.0
        %2243 = vmatprep.subr.mxu0 0.0
        %2244 = vmatpush1.xpose.msra.mxu0 0.0
        %2245 = vmatprep.subr.mxu0 0.0
        %2246 = vmatpush1.xpose.msra.mxu0 0.0
        %2247 = vmatprep.subr.mxu0 0.0
        %2248 = vmatpush1.xpose.msra.mxu0 0.0
        %2249 = vmatprep.subr.mxu0 0.0
        %2250 = vmatpush1.xpose.msra.mxu0 0.0
        %2251 = vmatprep.subr.mxu0 0.0
        %2252 = vmatpush1.xpose.msra.mxu0 0.0
        %2253 = vmatprep.subr.mxu0 0.0
        %2254 = vmatpush1.xpose.msra.mxu0 0.0
        %2255 = vmatprep.subr.mxu0 0.0
        %2256 = vmatpush1.xpose.msra.mxu0 0.0
        %2257 = vmatprep.subr.mxu0 0.0
        %2258 = vmatpush1.xpose.msra.mxu0 0.0
        %2259 = vmatprep.subr.mxu0 0.0
        %2260 = vmatpush1.xpose.msra.mxu0 0.0
        %2261 = vmatprep.subr.mxu0 0.0
        %2262 = vmatpush1.xpose.msra.mxu0 0.0
        %2263 = vmatprep.subr.mxu0 0.0
        %2264 = vmatpush1.xpose.msra.mxu0 0.0
        %2265 = vmatprep.subr.mxu0 0.0
        %2266 = vmatpush1.xpose.msra.mxu0 0.0
        %2267 = vmatprep.subr.mxu0 0.0
        %2268 = vmatpush1.xpose.msra.mxu0 0.0
        %2269 = vmatprep.subr.mxu0 0.0
        %2270 = vmatpush1.xpose.msra.mxu0 0.0
        %2271 = vmatprep.subr.mxu0 0.0
        %2272 = vmatpush1.xpose.msra.mxu0 0.0
        %2273 = vmatprep.subr.mxu0 0.0
        %2274 = vmatpush1.xpose.msra.mxu0 0.0
        %2275 = vmatprep.subr.mxu0 0.0
        %2276 = vmatpush1.xpose.msra.mxu0 0.0
        %2277 = vmatprep.subr.mxu0 0.0
        %2278 = vmatpush1.xpose.msra.mxu0 0.0
        %2279 = vmatprep.subr.mxu0 0.0
        %2280 = vmatpush1.xpose.msra.mxu0 0.0
        %2281 = vmatprep.subr.mxu0 0.0
        %2282 = vmatpush1.xpose.msra.mxu0 0.0
        %2283 = vmatprep.mubr.f32.mxu0 0.0
        %2284 = vmatmul.mubr.f32.gmra.mrb[0].mxu0 %v2215
        %v2285 = vpop.f32.mrb[0].mxu0
        %v2286 = vadd.f32 0.0, %v2285
        %v2287 = vpop.f32.mrb[0].mxu0
        %2288 = vdwg.mxu0
        %v2289 = vmul.f32 %v2208, 0.35355338
        %v2290 = vmul.f32 %v2286, 0.35355338
        %v2291 = vsel %vm1810, %v2289, -inf
        %2292 = vmax.xlane.f32.xlu0 %v2291
        %v2293 = vpop.xlane.xlu0 %2292
        %v2294 = vsel %vm1810, %v2290, -inf
        %2295 = vmax.xlane.f32.xlu0 %v2294
        %v2296 = vpop.xlane.xlu0 %2295
        %v2297 = vsub.f32 %v2289, %v2293
        %v2298 = vsub.f32 %v2290, %v2296
        %v2299 = vmul.f32 %v2297, 1.442695
        %v2300 = vpow.pop %v2299
        %v2301 = vmul.f32 %v2298, 1.442695
        %v2302 = vpow.pop %v2301
        %v2303 = vsel %vm1810, %v2300, 0.0
        %2304 = vadd.xlane.f32.xlu0 %v2303
        %v2305 = vpop.xlane.xlu0 %2304
        %v2306 = vsel %vm1810, %v2302, 0.0
        %2307 = vadd.xlane.f32.xlu0 %v2306
        %v2308 = vpop.xlane.xlu0 %2307
        %v2309 = vrcp.pop %v2305
        %v2310 = vmul.f32 %v2300, %v2309
        %v2311 = vrcp.pop %v2308
        %v2312 = vmul.f32 %v2302, %v2311
        %2314 = vrot.lane.b32.xlu0 %v1802, 120
        %v2315 = vpop.permute.xlu0 %2314
        %v2318 = vsel %vm1810, %v2310, 0
        %2320 = vmatprep.subr.mxu0 0.0
        %2321 = vmatpush1.msra.mxu0 %v2315
        %2322 = vmatprep.subr.mxu0 0.0
        %2323 = vmatpush1.msra.mxu0 0.0
        %2324 = vmatprep.subr.mxu0 0.0
        %2325 = vmatpush1.msra.mxu0 0.0
        %2326 = vmatprep.subr.mxu0 0.0
        %2327 = vmatpush1.msra.mxu0 0.0
        %2328 = vmatprep.subr.mxu0 0.0
        %2329 = vmatpush1.msra.mxu0 0.0
        %2330 = vmatprep.subr.mxu0 0.0
        %2331 = vmatpush1.msra.mxu0 0.0
        %2332 = vmatprep.subr.mxu0 0.0
        %2333 = vmatpush1.msra.mxu0 0.0
        %2334 = vmatprep.subr.mxu0 0.0
        %2335 = vmatpush1.msra.mxu0 0.0
        %2336 = vmatprep.subr.mxu0 0.0
        %2337 = vmatpush1.msra.mxu0 0.0
        %2338 = vmatprep.subr.mxu0 0.0
        %2339 = vmatpush1.msra.mxu0 0.0
        %2340 = vmatprep.subr.mxu0 0.0
        %2341 = vmatpush1.msra.mxu0 0.0
        %2342 = vmatprep.subr.mxu0 0.0
        %2343 = vmatpush1.msra.mxu0 0.0
        %2344 = vmatprep.subr.mxu0 0.0
        %2345 = vmatpush1.msra.mxu0 0.0
        %2346 = vmatprep.subr.mxu0 0.0
        %2347 = vmatpush1.msra.mxu0 0.0
        %2348 = vmatprep.subr.mxu0 0.0
        %2349 = vmatpush1.msra.mxu0 0.0
        %2350 = vmatprep.subr.mxu0 0.0
        %2351 = vmatpush1.msra.mxu0 0.0
        %2352 = vmatprep.subr.mxu0 0.0
        %2353 = vmatpush1.msra.mxu0 0.0
        %2354 = vmatprep.subr.mxu0 0.0
        %2355 = vmatpush1.msra.mxu0 0.0
        %2356 = vmatprep.subr.mxu0 0.0
        %2357 = vmatpush1.msra.mxu0 0.0
        %2358 = vmatprep.subr.mxu0 0.0
        %2359 = vmatpush1.msra.mxu0 0.0
        %2360 = vmatprep.subr.mxu0 0.0
        %2361 = vmatpush1.msra.mxu0 0.0
        %2362 = vmatprep.subr.mxu0 0.0
        %2363 = vmatpush1.msra.mxu0 0.0
        %2364 = vmatprep.subr.mxu0 0.0
        %2365 = vmatpush1.msra.mxu0 0.0
        %2366 = vmatprep.subr.mxu0 0.0
        %2367 = vmatpush1.msra.mxu0 0.0
        %2368 = vmatprep.subr.mxu0 0.0
        %2369 = vmatpush1.msra.mxu0 0.0
        %2370 = vmatprep.subr.mxu0 0.0
        %2371 = vmatpush1.msra.mxu0 0.0
        %2372 = vmatprep.subr.mxu0 0.0
        %2373 = vmatpush1.msra.mxu0 0.0
        %2374 = vmatprep.subr.mxu0 0.0
        %2375 = vmatpush1.msra.mxu0 0.0
        %2376 = vmatprep.subr.mxu0 0.0
        %2377 = vmatpush1.msra.mxu0 0.0
        %2378 = vmatprep.subr.mxu0 0.0
        %2379 = vmatpush1.msra.mxu0 0.0
        %2380 = vmatprep.subr.mxu0 0.0
        %2381 = vmatpush1.msra.mxu0 0.0
        %2382 = vmatprep.subr.mxu0 0.0
        %2383 = vmatpush1.msra.mxu0 0.0
        %2384 = vmatprep.mubr.f32.mxu0 0.0
        %2385 = vmatmul.mubr.f32.gmra.mrb[0].mxu0 %v2318
        %v2386 = vpop.f32.mrb[0].mxu0
        %v2387 = vadd.f32 0.0, %v2386
        %v2388 = vpop.f32.mrb[0].mxu0
        %2389 = vdwg.mxu0
        %2391 = vrot.lane.b32.xlu0 %v1807, 120
        %v2392 = vpop.permute.xlu0 %2391
        %v2395 = vsel %vm1810, %v2312, 0
        %2397 = vmatprep.subr.mxu0 0.0
        %2398 = vmatpush1.msra.mxu0 %v2392
        %2399 = vmatprep.subr.mxu0 0.0
        %2400 = vmatpush1.msra.mxu0 0.0
        %2401 = vmatprep.subr.mxu0 0.0
        %2402 = vmatpush1.msra.mxu0 0.0
        %2403 = vmatprep.subr.mxu0 0.0
        %2404 = vmatpush1.msra.mxu0 0.0
        %2405 = vmatprep.subr.mxu0 0.0
        %2406 = vmatpush1.msra.mxu0 0.0
        %2407 = vmatprep.subr.mxu0 0.0
        %2408 = vmatpush1.msra.mxu0 0.0
        %2409 = vmatprep.subr.mxu0 0.0
        %2410 = vmatpush1.msra.mxu0 0.0
        %2411 = vmatprep.subr.mxu0 0.0
        %2412 = vmatpush1.msra.mxu0 0.0
        %2413 = vmatprep.subr.mxu0 0.0
        %2414 = vmatpush1.msra.mxu0 0.0
        %2415 = vmatprep.subr.mxu0 0.0
        %2416 = vmatpush1.msra.mxu0 0.0
        %2417 = vmatprep.subr.mxu0 0.0
        %2418 = vmatpush1.msra.mxu0 0.0
        %2419 = vmatprep.subr.mxu0 0.0
        %2420 = vmatpush1.msra.mxu0 0.0
        %2421 = vmatprep.subr.mxu0 0.0
        %2422 = vmatpush1.msra.mxu0 0.0
        %2423 = vmatprep.subr.mxu0 0.0
        %2424 = vmatpush1.msra.mxu0 0.0
        %2425 = vmatprep.subr.mxu0 0.0
        %2426 = vmatpush1.msra.mxu0 0.0
        %2427 = vmatprep.subr.mxu0 0.0
        %2428 = vmatpush1.msra.mxu0 0.0
        %2429 = vmatprep.subr.mxu0 0.0
        %2430 = vmatpush1.msra.mxu0 0.0
        %2431 = vmatprep.subr.mxu0 0.0
        %2432 = vmatpush1.msra.mxu0 0.0
        %2433 = vmatprep.subr.mxu0 0.0
        %2434 = vmatpush1.msra.mxu0 0.0
        %2435 = vmatprep.subr.mxu0 0.0
        %2436 = vmatpush1.msra.mxu0 0.0
        %2437 = vmatprep.subr.mxu0 0.0
        %2438 = vmatpush1.msra.mxu0 0.0
        %2439 = vmatprep.subr.mxu0 0.0
        %2440 = vmatpush1.msra.mxu0 0.0
        %2441 = vmatprep.subr.mxu0 0.0
        %2442 = vmatpush1.msra.mxu0 0.0
        %2443 = vmatprep.subr.mxu0 0.0
        %2444 = vmatpush1.msra.mxu0 0.0
        %2445 = vmatprep.subr.mxu0 0.0
        %2446 = vmatpush1.msra.mxu0 0.0
        %2447 = vmatprep.subr.mxu0 0.0
        %2448 = vmatpush1.msra.mxu0 0.0
        %2449 = vmatprep.subr.mxu0 0.0
        %2450 = vmatpush1.msra.mxu0 0.0
        %2451 = vmatprep.subr.mxu0 0.0
        %2452 = vmatpush1.msra.mxu0 0.0
        %2453 = vmatprep.subr.mxu0 0.0
        %2454 = vmatpush1.msra.mxu0 0.0
        %2455 = vmatprep.subr.mxu0 0.0
        %2456 = vmatpush1.msra.mxu0 0.0
        %2457 = vmatprep.subr.mxu0 0.0
        %2458 = vmatpush1.msra.mxu0 0.0
        %2459 = vmatprep.subr.mxu0 0.0
        %2460 = vmatpush1.msra.mxu0 0.0
        %2461 = vmatprep.mubr.f32.mxu0 0.0
        %2462 = vmatmul.mubr.f32.gmra.mrb[0].mxu0 %v2395
        %v2463 = vpop.f32.mrb[0].mxu0
        %v2464 = vadd.f32 0.0, %v2463
        %v2465 = vpop.f32.mrb[0].mxu0
        %2466 = vdwg.mxu0
        %2467 = vrot.lane.b32.xlu0 %v1630, 112
        %v2468 = vpop.permute.xlu0 %2467
        %2469 = vrot.lane.b32.xlu0 %v1716, 112
        %v2470 = vpop.permute.xlu0 %2469
        %v2471 = vsel %vm1810, %v2468, 0
        %v2473 = vsel %vm1810, %v2470, 0
        %2475 = vmatprep.subr.mxu0 0.0
        %2476 = vmatpush1.xpose.msra.mxu0 %v2473
        %2477 = vmatprep.subr.mxu0 0.0
        %2478 = vmatpush1.xpose.msra.mxu0 0.0
        %2479 = vmatprep.subr.mxu0 0.0
        %2480 = vmatpush1.xpose.msra.mxu0 0.0
        %2481 = vmatprep.subr.mxu0 0.0
        %2482 = vmatpush1.xpose.msra.mxu0 0.0
        %2483 = vmatprep.subr.mxu0 0.0
        %2484 = vmatpush1.xpose.msra.mxu0 0.0
        %2485 = vmatprep.subr.mxu0 0.0
        %2486 = vmatpush1.xpose.msra.mxu0 0.0
        %2487 = vmatprep.subr.mxu0 0.0
        %2488 = vmatpush1.xpose.msra.mxu0 0.0
        %2489 = vmatprep.subr.mxu0 0.0
        %2490 = vmatpush1.xpose.msra.mxu0 0.0
        %2491 = vmatprep.subr.mxu0 0.0
        %2492 = vmatpush1.xpose.msra.mxu0 0.0
        %2493 = vmatprep.subr.mxu0 0.0
        %2494 = vmatpush1.xpose.msra.mxu0 0.0
        %2495 = vmatprep.subr.mxu0 0.0
        %2496 = vmatpush1.xpose.msra.mxu0 0.0
        %2497 = vmatprep.subr.mxu0 0.0
        %2498 = vmatpush1.xpose.msra.mxu0 0.0
        %2499 = vmatprep.subr.mxu0 0.0
        %2500 = vmatpush1.xpose.msra.mxu0 0.0
        %2501 = vmatprep.subr.mxu0 0.0
        %2502 = vmatpush1.xpose.msra.mxu0 0.0
        %2503 = vmatprep.subr.mxu0 0.0
        %2504 = vmatpush1.xpose.msra.mxu0 0.0
        %2505 = vmatprep.subr.mxu0 0.0
        %2506 = vmatpush1.xpose.msra.mxu0 0.0
        %2507 = vmatprep.subr.mxu0 0.0
        %2508 = vmatpush1.xpose.msra.mxu0 0.0
        %2509 = vmatprep.subr.mxu0 0.0
        %2510 = vmatpush1.xpose.msra.mxu0 0.0
        %2511 = vmatprep.subr.mxu0 0.0
        %2512 = vmatpush1.xpose.msra.mxu0 0.0
        %2513 = vmatprep.subr.mxu0 0.0
        %2514 = vmatpush1.xpose.msra.mxu0 0.0
        %2515 = vmatprep.subr.mxu0 0.0
        %2516 = vmatpush1.xpose.msra.mxu0 0.0
        %2517 = vmatprep.subr.mxu0 0.0
        %2518 = vmatpush1.xpose.msra.mxu0 0.0
        %2519 = vmatprep.subr.mxu0 0.0
        %2520 = vmatpush1.xpose.msra.mxu0 0.0
        %2521 = vmatprep.subr.mxu0 0.0
        %2522 = vmatpush1.xpose.msra.mxu0 0.0
        %2523 = vmatprep.subr.mxu0 0.0
        %2524 = vmatpush1.xpose.msra.mxu0 0.0
        %2525 = vmatprep.subr.mxu0 0.0
        %2526 = vmatpush1.xpose.msra.mxu0 0.0
        %2527 = vmatprep.subr.mxu0 0.0
        %2528 = vmatpush1.xpose.msra.mxu0 0.0
        %2529 = vmatprep.subr.mxu0 0.0
        %2530 = vmatpush1.xpose.msra.mxu0 0.0
        %2531 = vmatprep.subr.mxu0 0.0
        %2532 = vmatpush1.xpose.msra.mxu0 0.0
        %2533 = vmatprep.subr.mxu0 0.0
        %2534 = vmatpush1.xpose.msra.mxu0 0.0
        %2535 = vmatprep.subr.mxu0 0.0
        %2536 = vmatpush1.xpose.msra.mxu0 0.0
        %2537 = vmatprep.subr.mxu0 0.0
        %2538 = vmatpush1.xpose.msra.mxu0 0.0
        %2539 = vmatprep.mubr.f32.mxu0 0.0
        %2540 = vmatmul.mubr.f32.gmra.mrb[0].mxu0 %v2471
        %v2541 = vpop.f32.mrb[0].mxu0
        %v2542 = vadd.f32 0.0, %v2541
        %v2543 = vpop.f32.mrb[0].mxu0
        %2544 = vdwg.mxu0
        %2545 = vrot.lane.b32.xlu0 %v1635, 112
        %v2546 = vpop.permute.xlu0 %2545
        %2547 = vrot.lane.b32.xlu0 %v1721, 112
        %v2548 = vpop.permute.xlu0 %2547
        %v2549 = vsel %vm1810, %v2546, 0
        %v2551 = vsel %vm1810, %v2548, 0
        %2553 = vmatprep.subr.mxu0 0.0
        %2554 = vmatpush1.xpose.msra.mxu0 %v2551
        %2555 = vmatprep.subr.mxu0 0.0
        %2556 = vmatpush1.xpose.msra.mxu0 0.0
        %2557 = vmatprep.subr.mxu0 0.0
        %2558 = vmatpush1.xpose.msra.mxu0 0.0
        %2559 = vmatprep.subr.mxu0 0.0
        %2560 = vmatpush1.xpose.msra.mxu0 0.0
        %2561 = vmatprep.subr.mxu0 0.0
        %2562 = vmatpush1.xpose.msra.mxu0 0.0
        %2563 = vmatprep.subr.mxu0 0.0
        %2564 = vmatpush1.xpose.msra.mxu0 0.0
        %2565 = vmatprep.subr.mxu0 0.0
        %2566 = vmatpush1.xpose.msra.mxu0 0.0
        %2567 = vmatprep.subr.mxu0 0.0
        %2568 = vmatpush1.xpose.msra.mxu0 0.0
        %2569 = vmatprep.subr.mxu0 0.0
        %2570 = vmatpush1.xpose.msra.mxu0 0.0
        %2571 = vmatprep.subr.mxu0 0.0
        %2572 = vmatpush1.xpose.msra.mxu0 0.0
        %2573 = vmatprep.subr.mxu0 0.0
        %2574 = vmatpush1.xpose.msra.mxu0 0.0
        %2575 = vmatprep.subr.mxu0 0.0
        %2576 = vmatpush1.xpose.msra.mxu0 0.0
        %2577 = vmatprep.subr.mxu0 0.0
        %2578 = vmatpush1.xpose.msra.mxu0 0.0
        %2579 = vmatprep.subr.mxu0 0.0
        %2580 = vmatpush1.xpose.msra.mxu0 0.0
        %2581 = vmatprep.subr.mxu0 0.0
        %2582 = vmatpush1.xpose.msra.mxu0 0.0
        %2583 = vmatprep.subr.mxu0 0.0
        %2584 = vmatpush1.xpose.msra.mxu0 0.0
        %2585 = vmatprep.subr.mxu0 0.0
        %2586 = vmatpush1.xpose.msra.mxu0 0.0
        %2587 = vmatprep.subr.mxu0 0.0
        %2588 = vmatpush1.xpose.msra.mxu0 0.0
        %2589 = vmatprep.subr.mxu0 0.0
        %2590 = vmatpush1.xpose.msra.mxu0 0.0
        %2591 = vmatprep.subr.mxu0 0.0
        %2592 = vmatpush1.xpose.msra.mxu0 0.0
        %2593 = vmatprep.subr.mxu0 0.0
        %2594 = vmatpush1.xpose.msra.mxu0 0.0
        %2595 = vmatprep.subr.mxu0 0.0
        %2596 = vmatpush1.xpose.msra.mxu0 0.0
        %2597 = vmatprep.subr.mxu0 0.0
        %2598 = vmatpush1.xpose.msra.mxu0 0.0
        %2599 = vmatprep.subr.mxu0 0.0
        %2600 = vmatpush1.xpose.msra.mxu0 0.0
        %2601 = vmatprep.subr.mxu0 0.0
        %2602 = vmatpush1.xpose.msra.mxu0 0.0
        %2603 = vmatprep.subr.mxu0 0.0
        %2604 = vmatpush1.xpose.msra.mxu0 0.0
        %2605 = vmatprep.subr.mxu0 0.0
        %2606 = vmatpush1.xpose.msra.mxu0 0.0
        %2607 = vmatprep.subr.mxu0 0.0
        %2608 = vmatpush1.xpose.msra.mxu0 0.0
        %2609 = vmatprep.subr.mxu0 0.0
        %2610 = vmatpush1.xpose.msra.mxu0 0.0
        %2611 = vmatprep.subr.mxu0 0.0
        %2612 = vmatpush1.xpose.msra.mxu0 0.0
        %2613 = vmatprep.subr.mxu0 0.0
        %2614 = vmatpush1.xpose.msra.mxu0 0.0
        %2615 = vmatprep.subr.mxu0 0.0
        %2616 = vmatpush1.xpose.msra.mxu0 0.0
        %2617 = vmatprep.mubr.f32.mxu0 0.0
        %2618 = vmatmul.mubr.f32.gmra.mrb[0].mxu0 %v2549
        %v2619 = vpop.f32.mrb[0].mxu0
        %v2620 = vadd.f32 0.0, %v2619
        %v2621 = vpop.f32.mrb[0].mxu0
        %2622 = vdwg.mxu0
        %v2623 = vmul.f32 %v2542, 0.35355338
        %v2624 = vmul.f32 %v2620, 0.35355338
        %v2625 = vsel %vm1810, %v2623, -inf
        %2626 = vmax.xlane.f32.xlu0 %v2625
        %v2627 = vpop.xlane.xlu0 %2626
        %v2628 = vsel %vm1810, %v2624, -inf
        %2629 = vmax.xlane.f32.xlu0 %v2628
        %v2630 = vpop.xlane.xlu0 %2629
        %v2631 = vsub.f32 %v2623, %v2627
        %v2632 = vsub.f32 %v2624, %v2630
        %v2633 = vmul.f32 %v2631, 1.442695
        %v2634 = vpow.pop %v2633
        %v2635 = vmul.f32 %v2632, 1.442695
        %v2636 = vpow.pop %v2635
        %v2637 = vsel %vm1810, %v2634, 0.0
        %2638 = vadd.xlane.f32.xlu0 %v2637
        %v2639 = vpop.xlane.xlu0 %2638
        %v2640 = vsel %vm1810, %v2636, 0.0
        %2641 = vadd.xlane.f32.xlu0 %v2640
        %v2642 = vpop.xlane.xlu0 %2641
        %v2643 = vrcp.pop %v2639
        %v2644 = vmul.f32 %v2634, %v2643
        %v2645 = vrcp.pop %v2642
        %v2646 = vmul.f32 %v2636, %v2645
        %2647 = vrot.lane.b32.xlu0 %v1802, 112
        %v2648 = vpop.permute.xlu0 %2647
        %v2651 = vsel %vm1810, %v2644, 0
        %2653 = vmatprep.subr.mxu0 0.0
        %2654 = vmatpush1.msra.mxu0 %v2648
        %2655 = vmatprep.subr.mxu0 0.0
        %2656 = vmatpush1.msra.mxu0 0.0
        %2657 = vmatprep.subr.mxu0 0.0
        %2658 = vmatpush1.msra.mxu0 0.0
        %2659 = vmatprep.subr.mxu0 0.0
        %2660 = vmatpush1.msra.mxu0 0.0
        %2661 = vmatprep.subr.mxu0 0.0
        %2662 = vmatpush1.msra.mxu0 0.0
        %2663 = vmatprep.subr.mxu0 0.0
        %2664 = vmatpush1.msra.mxu0 0.0
        %2665 = vmatprep.subr.mxu0 0.0
        %2666 = vmatpush1.msra.mxu0 0.0
        %2667 = vmatprep.subr.mxu0 0.0
        %2668 = vmatpush1.msra.mxu0 0.0
        %2669 = vmatprep.subr.mxu0 0.0
        %2670 = vmatpush1.msra.mxu0 0.0
        %2671 = vmatprep.subr.mxu0 0.0
        %2672 = vmatpush1.msra.mxu0 0.0
        %2673 = vmatprep.subr.mxu0 0.0
        %2674 = vmatpush1.msra.mxu0 0.0
        %2675 = vmatprep.subr.mxu0 0.0
        %2676 = vmatpush1.msra.mxu0 0.0
        %2677 = vmatprep.subr.mxu0 0.0
        %2678 = vmatpush1.msra.mxu0 0.0
        %2679 = vmatprep.subr.mxu0 0.0
        %2680 = vmatpush1.msra.mxu0 0.0
        %2681 = vmatprep.subr.mxu0 0.0
        %2682 = vmatpush1.msra.mxu0 0.0
        %2683 = vmatprep.subr.mxu0 0.0
        %2684 = vmatpush1.msra.mxu0 0.0
        %2685 = vmatprep.subr.mxu0 0.0
        %2686 = vmatpush1.msra.mxu0 0.0
        %2687 = vmatprep.subr.mxu0 0.0
        %2688 = vmatpush1.msra.mxu0 0.0
        %2689 = vmatprep.subr.mxu0 0.0
        %2690 = vmatpush1.msra.mxu0 0.0
        %2691 = vmatprep.subr.mxu0 0.0
        %2692 = vmatpush1.msra.mxu0 0.0
        %2693 = vmatprep.subr.mxu0 0.0
        %2694 = vmatpush1.msra.mxu0 0.0
        %2695 = vmatprep.subr.mxu0 0.0
        %2696 = vmatpush1.msra.mxu0 0.0
        %2697 = vmatprep.subr.mxu0 0.0
        %2698 = vmatpush1.msra.mxu0 0.0
        %2699 = vmatprep.subr.mxu0 0.0
        %2700 = vmatpush1.msra.mxu0 0.0
        %2701 = vmatprep.subr.mxu0 0.0
        %2702 = vmatpush1.msra.mxu0 0.0
        %2703 = vmatprep.subr.mxu0 0.0
        %2704 = vmatpush1.msra.mxu0 0.0
        %2705 = vmatprep.subr.mxu0 0.0
        %2706 = vmatpush1.msra.mxu0 0.0
        %2707 = vmatprep.subr.mxu0 0.0
        %2708 = vmatpush1.msra.mxu0 0.0
        %2709 = vmatprep.subr.mxu0 0.0
        %2710 = vmatpush1.msra.mxu0 0.0
        %2711 = vmatprep.subr.mxu0 0.0
        %2712 = vmatpush1.msra.mxu0 0.0
        %2713 = vmatprep.subr.mxu0 0.0
        %2714 = vmatpush1.msra.mxu0 0.0
        %2715 = vmatprep.subr.mxu0 0.0
        %2716 = vmatpush1.msra.mxu0 0.0
        %2717 = vmatprep.mubr.f32.mxu0 0.0
        %2718 = vmatmul.mubr.f32.gmra.mrb[0].mxu0 %v2651
        %v2719 = vpop.f32.mrb[0].mxu0
        %v2720 = vadd.f32 0.0, %v2719
        %v2721 = vpop.f32.mrb[0].mxu0
        %2722 = vdwg.mxu0
        %2723 = vrot.lane.b32.xlu0 %v1807, 112
        %v2724 = vpop.permute.xlu0 %2723
        %v2727 = vsel %vm1810, %v2646, 0
        %2729 = vmatprep.subr.mxu0 0.0
        %2730 = vmatpush1.msra.mxu0 %v2724
        %2731 = vmatprep.subr.mxu0 0.0
        %2732 = vmatpush1.msra.mxu0 0.0
        %2733 = vmatprep.subr.mxu0 0.0
        %2734 = vmatpush1.msra.mxu0 0.0
        %2735 = vmatprep.subr.mxu0 0.0
        %2736 = vmatpush1.msra.mxu0 0.0
        %2737 = vmatprep.subr.mxu0 0.0
        %2738 = vmatpush1.msra.mxu0 0.0
        %2739 = vmatprep.subr.mxu0 0.0
        %2740 = vmatpush1.msra.mxu0 0.0
        %2741 = vmatprep.subr.mxu0 0.0
        %2742 = vmatpush1.msra.mxu0 0.0
        %2743 = vmatprep.subr.mxu0 0.0
        %2744 = vmatpush1.msra.mxu0 0.0
        %2745 = vmatprep.subr.mxu0 0.0
        %2746 = vmatpush1.msra.mxu0 0.0
        %2747 = vmatprep.subr.mxu0 0.0
        %2748 = vmatpush1.msra.mxu0 0.0
        %2749 = vmatprep.subr.mxu0 0.0
        %2750 = vmatpush1.msra.mxu0 0.0
        %2751 = vmatprep.subr.mxu0 0.0
        %2752 = vmatpush1.msra.mxu0 0.0
        %2753 = vmatprep.subr.mxu0 0.0
        %2754 = vmatpush1.msra.mxu0 0.0
        %2755 = vmatprep.subr.mxu0 0.0
        %2756 = vmatpush1.msra.mxu0 0.0
        %2757 = vmatprep.subr.mxu0 0.0
        %2758 = vmatpush1.msra.mxu0 0.0
        %2759 = vmatprep.subr.mxu0 0.0
        %2760 = vmatpush1.msra.mxu0 0.0
        %2761 = vmatprep.subr.mxu0 0.0
        %2762 = vmatpush1.msra.mxu0 0.0
        %2763 = vmatprep.subr.mxu0 0.0
        %2764 = vmatpush1.msra.mxu0 0.0
        %2765 = vmatprep.subr.mxu0 0.0
        %2766 = vmatpush1.msra.mxu0 0.0
        %2767 = vmatprep.subr.mxu0 0.0
        %2768 = vmatpush1.msra.mxu0 0.0
        %2769 = vmatprep.subr.mxu0 0.0
        %2770 = vmatpush1.msra.mxu0 0.0
        %2771 = vmatprep.subr.mxu0 0.0
        %2772 = vmatpush1.msra.mxu0 0.0
        %2773 = vmatprep.subr.mxu0 0.0
        %2774 = vmatpush1.msra.mxu0 0.0
        %2775 = vmatprep.subr.mxu0 0.0
        %2776 = vmatpush1.msra.mxu0 0.0
        %2777 = vmatprep.subr.mxu0 0.0
        %2778 = vmatpush1.msra.mxu0 0.0
        %2779 = vmatprep.subr.mxu0 0.0
        %2780 = vmatpush1.msra.mxu0 0.0
        %2781 = vmatprep.subr.mxu0 0.0
        %2782 = vmatpush1.msra.mxu0 0.0
        %2783 = vmatprep.subr.mxu0 0.0
        %2784 = vmatpush1.msra.mxu0 0.0
        %2785 = vmatprep.subr.mxu0 0.0
        %2786 = vmatpush1.msra.mxu0 0.0
        %2787 = vmatprep.subr.mxu0 0.0
        %2788 = vmatpush1.msra.mxu0 0.0
        %2789 = vmatprep.subr.mxu0 0.0
        %2790 = vmatpush1.msra.mxu0 0.0
        %2791 = vmatprep.subr.mxu0 0.0
        %2792 = vmatpush1.msra.mxu0 0.0
        %2793 = vmatprep.mubr.f32.mxu0 0.0
        %2794 = vmatmul.mubr.f32.gmra.mrb[0].mxu0 %v2727
        %v2795 = vpop.f32.mrb[0].mxu0
        %v2796 = vadd.f32 0.0, %v2795
        %v2797 = vpop.f32.mrb[0].mxu0
        %2798 = vdwg.mxu0
        %2799 = vrot.lane.b32.xlu0 %v1630, 104
        %v2800 = vpop.permute.xlu0 %2799
        %2801 = vrot.lane.b32.xlu0 %v1716, 104
        %v2802 = vpop.permute.xlu0 %2801
        %v2803 = vsel %vm1810, %v2800, 0
        %v2805 = vsel %vm1810, %v2802, 0
        %2807 = vmatprep.subr.mxu0 0.0
        %2808 = vmatpush1.xpose.msra.mxu0 %v2805
        %2809 = vmatprep.subr.mxu0 0.0
        %2810 = vmatpush1.xpose.msra.mxu0 0.0
        %2811 = vmatprep.subr.mxu0 0.0
        %2812 = vmatpush1.xpose.msra.mxu0 0.0
        %2813 = vmatprep.subr.mxu0 0.0
        %2814 = vmatpush1.xpose.msra.mxu0 0.0
        %2815 = vmatprep.subr.mxu0 0.0
        %2816 = vmatpush1.xpose.msra.mxu0 0.0
        %2817 = vmatprep.subr.mxu0 0.0
        %2818 = vmatpush1.xpose.msra.mxu0 0.0
        %2819 = vmatprep.subr.mxu0 0.0
        %2820 = vmatpush1.xpose.msra.mxu0 0.0
        %2821 = vmatprep.subr.mxu0 0.0
        %2822 = vmatpush1.xpose.msra.mxu0 0.0
        %2823 = vmatprep.subr.mxu0 0.0
        %2824 = vmatpush1.xpose.msra.mxu0 0.0
        %2825 = vmatprep.subr.mxu0 0.0
        %2826 = vmatpush1.xpose.msra.mxu0 0.0
        %2827 = vmatprep.subr.mxu0 0.0
        %2828 = vmatpush1.xpose.msra.mxu0 0.0
        %2829 = vmatprep.subr.mxu0 0.0
        %2830 = vmatpush1.xpose.msra.mxu0 0.0
        %2831 = vmatprep.subr.mxu0 0.0
        %2832 = vmatpush1.xpose.msra.mxu0 0.0
        %2833 = vmatprep.subr.mxu0 0.0
        %2834 = vmatpush1.xpose.msra.mxu0 0.0
        %2835 = vmatprep.subr.mxu0 0.0
        %2836 = vmatpush1.xpose.msra.mxu0 0.0
        %2837 = vmatprep.subr.mxu0 0.0
        %2838 = vmatpush1.xpose.msra.mxu0 0.0
        %2839 = vmatprep.subr.mxu0 0.0
        %2840 = vmatpush1.xpose.msra.mxu0 0.0
        %2841 = vmatprep.subr.mxu0 0.0
        %2842 = vmatpush1.xpose.msra.mxu0 0.0
        %2843 = vmatprep.subr.mxu0 0.0
        %2844 = vmatpush1.xpose.msra.mxu0 0.0
        %2845 = vmatprep.subr.mxu0 0.0
        %2846 = vmatpush1.xpose.msra.mxu0 0.0
        %2847 = vmatprep.subr.mxu0 0.0
        %2848 = vmatpush1.xpose.msra.mxu0 0.0
        %2849 = vmatprep.subr.mxu0 0.0
        %2850 = vmatpush1.xpose.msra.mxu0 0.0
        %2851 = vmatprep.subr.mxu0 0.0
        %2852 = vmatpush1.xpose.msra.mxu0 0.0
        %2853 = vmatprep.subr.mxu0 0.0
        %2854 = vmatpush1.xpose.msra.mxu0 0.0
        %2855 = vmatprep.subr.mxu0 0.0
        %2856 = vmatpush1.xpose.msra.mxu0 0.0
        %2857 = vmatprep.subr.mxu0 0.0
        %2858 = vmatpush1.xpose.msra.mxu0 0.0
        %2859 = vmatprep.subr.mxu0 0.0
        %2860 = vmatpush1.xpose.msra.mxu0 0.0
        %2861 = vmatprep.subr.mxu0 0.0
        %2862 = vmatpush1.xpose.msra.mxu0 0.0
        %2863 = vmatprep.subr.mxu0 0.0
        %2864 = vmatpush1.xpose.msra.mxu0 0.0
        %2865 = vmatprep.subr.mxu0 0.0
        %2866 = vmatpush1.xpose.msra.mxu0 0.0
        %2867 = vmatprep.subr.mxu0 0.0
        %2868 = vmatpush1.xpose.msra.mxu0 0.0
        %2869 = vmatprep.subr.mxu0 0.0
        %2870 = vmatpush1.xpose.msra.mxu0 0.0
        %2871 = vmatprep.mubr.f32.mxu0 0.0
        %2872 = vmatmul.mubr.f32.gmra.mrb[0].mxu0 %v2803
        %v2873 = vpop.f32.mrb[0].mxu0
        %v2874 = vadd.f32 0.0, %v2873
        %v2875 = vpop.f32.mrb[0].mxu0
        %2876 = vdwg.mxu0
        %2877 = vrot.lane.b32.xlu0 %v1635, 104
        %v2878 = vpop.permute.xlu0 %2877
        %2879 = vrot.lane.b32.xlu0 %v1721, 104
        %v2880 = vpop.permute.xlu0 %2879
        %v2881 = vsel %vm1810, %v2878, 0
        %v2883 = vsel %vm1810, %v2880, 0
        %2885 = vmatprep.subr.mxu0 0.0
        %2886 = vmatpush1.xpose.msra.mxu0 %v2883
        %2887 = vmatprep.subr.mxu0 0.0
        %2888 = vmatpush1.xpose.msra.mxu0 0.0
        %2889 = vmatprep.subr.mxu0 0.0
        %2890 = vmatpush1.xpose.msra.mxu0 0.0
        %2891 = vmatprep.subr.mxu0 0.0
        %2892 = vmatpush1.xpose.msra.mxu0 0.0
        %2893 = vmatprep.subr.mxu0 0.0
        %2894 = vmatpush1.xpose.msra.mxu0 0.0
        %2895 = vmatprep.subr.mxu0 0.0
        %2896 = vmatpush1.xpose.msra.mxu0 0.0
        %2897 = vmatprep.subr.mxu0 0.0
        %2898 = vmatpush1.xpose.msra.mxu0 0.0
        %2899 = vmatprep.subr.mxu0 0.0
        %2900 = vmatpush1.xpose.msra.mxu0 0.0
        %2901 = vmatprep.subr.mxu0 0.0
        %2902 = vmatpush1.xpose.msra.mxu0 0.0
        %2903 = vmatprep.subr.mxu0 0.0
        %2904 = vmatpush1.xpose.msra.mxu0 0.0
        %2905 = vmatprep.subr.mxu0 0.0
        %2906 = vmatpush1.xpose.msra.mxu0 0.0
        %2907 = vmatprep.subr.mxu0 0.0
        %2908 = vmatpush1.xpose.msra.mxu0 0.0
        %2909 = vmatprep.subr.mxu0 0.0
        %2910 = vmatpush1.xpose.msra.mxu0 0.0
        %2911 = vmatprep.subr.mxu0 0.0
        %2912 = vmatpush1.xpose.msra.mxu0 0.0
        %2913 = vmatprep.subr.mxu0 0.0
        %2914 = vmatpush1.xpose.msra.mxu0 0.0
        %2915 = vmatprep.subr.mxu0 0.0
        %2916 = vmatpush1.xpose.msra.mxu0 0.0
        %2917 = vmatprep.subr.mxu0 0.0
        %2918 = vmatpush1.xpose.msra.mxu0 0.0
        %2919 = vmatprep.subr.mxu0 0.0
        %2920 = vmatpush1.xpose.msra.mxu0 0.0
        %2921 = vmatprep.subr.mxu0 0.0
        %2922 = vmatpush1.xpose.msra.mxu0 0.0
        %2923 = vmatprep.subr.mxu0 0.0
        %2924 = vmatpush1.xpose.msra.mxu0 0.0
        %2925 = vmatprep.subr.mxu0 0.0
        %2926 = vmatpush1.xpose.msra.mxu0 0.0
        %2927 = vmatprep.subr.mxu0 0.0
        %2928 = vmatpush1.xpose.msra.mxu0 0.0
        %2929 = vmatprep.subr.mxu0 0.0
        %2930 = vmatpush1.xpose.msra.mxu0 0.0
        %2931 = vmatprep.subr.mxu0 0.0
        %2932 = vmatpush1.xpose.msra.mxu0 0.0
        %2933 = vmatprep.subr.mxu0 0.0
        %2934 = vmatpush1.xpose.msra.mxu0 0.0
        %2935 = vmatprep.subr.mxu0 0.0
        %2936 = vmatpush1.xpose.msra.mxu0 0.0
        %2937 = vmatprep.subr.mxu0 0.0
        %2938 = vmatpush1.xpose.msra.mxu0 0.0
        %2939 = vmatprep.subr.mxu0 0.0
        %2940 = vmatpush1.xpose.msra.mxu0 0.0
        %2941 = vmatprep.subr.mxu0 0.0
        %2942 = vmatpush1.xpose.msra.mxu0 0.0
        %2943 = vmatprep.subr.mxu0 0.0
        %2944 = vmatpush1.xpose.msra.mxu0 0.0
        %2945 = vmatprep.subr.mxu0 0.0
        %2946 = vmatpush1.xpose.msra.mxu0 0.0
        %2947 = vmatprep.subr.mxu0 0.0
        %2948 = vmatpush1.xpose.msra.mxu0 0.0
        %2949 = vmatprep.mubr.f32.mxu0 0.0
        %2950 = vmatmul.mubr.f32.gmra.mrb[0].mxu0 %v2881
        %v2951 = vpop.f32.mrb[0].mxu0
        %v2952 = vadd.f32 0.0, %v2951
        %v2953 = vpop.f32.mrb[0].mxu0
        %2954 = vdwg.mxu0
        %v2955 = vmul.f32 %v2874, 0.35355338
        %v2956 = vmul.f32 %v2952, 0.35355338
        %v2957 = vsel %vm1810, %v2955, -inf
        %2958 = vmax.xlane.f32.xlu0 %v2957
        %v2959 = vpop.xlane.xlu0 %2958
        %v2960 = vsel %vm1810, %v2956, -inf
        %2961 = vmax.xlane.f32.xlu0 %v2960
        %v2962 = vpop.xlane.xlu0 %2961
        %v2963 = vsub.f32 %v2955, %v2959
        %v2964 = vsub.f32 %v2956, %v2962
        %v2965 = vmul.f32 %v2963, 1.442695
        %v2966 = vpow.pop %v2965
        %v2967 = vmul.f32 %v2964, 1.442695
        %v2968 = vpow.pop %v2967
        %v2969 = vsel %vm1810, %v2966, 0.0
        %2970 = vadd.xlane.f32.xlu0 %v2969
        %v2971 = vpop.xlane.xlu0 %2970
        %v2972 = vsel %vm1810, %v2968, 0.0
        %2973 = vadd.xlane.f32.xlu0 %v2972
        %v2974 = vpop.xlane.xlu0 %2973
        %v2975 = vrcp.pop %v2971
        %v2976 = vmul.f32 %v2966, %v2975
        %v2977 = vrcp.pop %v2974
        %v2978 = vmul.f32 %v2968, %v2977
        %2979 = vrot.lane.b32.xlu0 %v1802, 104
        %v2980 = vpop.permute.xlu0 %2979
        %v2983 = vsel %vm1810, %v2976, 0
        %2985 = vmatprep.subr.mxu0 0.0
        %2986 = vmatpush1.msra.mxu0 %v2980
        %2987 = vmatprep.subr.mxu0 0.0
        %2988 = vmatpush1.msra.mxu0 0.0
        %2989 = vmatprep.subr.mxu0 0.0
        %2990 = vmatpush1.msra.mxu0 0.0
        %2991 = vmatprep.subr.mxu0 0.0
        %2992 = vmatpush1.msra.mxu0 0.0
        %2993 = vmatprep.subr.mxu0 0.0
        %2994 = vmatpush1.msra.mxu0 0.0
        %2995 = vmatprep.subr.mxu0 0.0
        %2996 = vmatpush1.msra.mxu0 0.0
        %2997 = vmatprep.subr.mxu0 0.0
        %2998 = vmatpush1.msra.mxu0 0.0
        %2999 = vmatprep.subr.mxu0 0.0
        %3000 = vmatpush1.msra.mxu0 0.0
        %3001 = vmatprep.subr.mxu0 0.0
        %3002 = vmatpush1.msra.mxu0 0.0
        %3003 = vmatprep.subr.mxu0 0.0
        %3004 = vmatpush1.msra.mxu0 0.0
        %3005 = vmatprep.subr.mxu0 0.0
        %3006 = vmatpush1.msra.mxu0 0.0
        %3007 = vmatprep.subr.mxu0 0.0
        %3008 = vmatpush1.msra.mxu0 0.0
        %3009 = vmatprep.subr.mxu0 0.0
        %3010 = vmatpush1.msra.mxu0 0.0
        %3011 = vmatprep.subr.mxu0 0.0
        %3012 = vmatpush1.msra.mxu0 0.0
        %3013 = vmatprep.subr.mxu0 0.0
        %3014 = vmatpush1.msra.mxu0 0.0
        %3015 = vmatprep.subr.mxu0 0.0
        %3016 = vmatpush1.msra.mxu0 0.0
        %3017 = vmatprep.subr.mxu0 0.0
        %3018 = vmatpush1.msra.mxu0 0.0
        %3019 = vmatprep.subr.mxu0 0.0
        %3020 = vmatpush1.msra.mxu0 0.0
        %3021 = vmatprep.subr.mxu0 0.0
        %3022 = vmatpush1.msra.mxu0 0.0
        %3023 = vmatprep.subr.mxu0 0.0
        %3024 = vmatpush1.msra.mxu0 0.0
        %3025 = vmatprep.subr.mxu0 0.0
        %3026 = vmatpush1.msra.mxu0 0.0
        %3027 = vmatprep.subr.mxu0 0.0
        %3028 = vmatpush1.msra.mxu0 0.0
        %3029 = vmatprep.subr.mxu0 0.0
        %3030 = vmatpush1.msra.mxu0 0.0
        %3031 = vmatprep.subr.mxu0 0.0
        %3032 = vmatpush1.msra.mxu0 0.0
        %3033 = vmatprep.subr.mxu0 0.0
        %3034 = vmatpush1.msra.mxu0 0.0
        %3035 = vmatprep.subr.mxu0 0.0
        %3036 = vmatpush1.msra.mxu0 0.0
        %3037 = vmatprep.subr.mxu0 0.0
        %3038 = vmatpush1.msra.mxu0 0.0
        %3039 = vmatprep.subr.mxu0 0.0
        %3040 = vmatpush1.msra.mxu0 0.0
        %3041 = vmatprep.subr.mxu0 0.0
        %3042 = vmatpush1.msra.mxu0 0.0
        %3043 = vmatprep.subr.mxu0 0.0
        %3044 = vmatpush1.msra.mxu0 0.0
        %3045 = vmatprep.subr.mxu0 0.0
        %3046 = vmatpush1.msra.mxu0 0.0
        %3047 = vmatprep.subr.mxu0 0.0
        %3048 = vmatpush1.msra.mxu0 0.0
        %3049 = vmatprep.mubr.f32.mxu0 0.0
        %3050 = vmatmul.mubr.f32.gmra.mrb[0].mxu0 %v2983
        %v3051 = vpop.f32.mrb[0].mxu0
        %v3052 = vadd.f32 0.0, %v3051
        %v3053 = vpop.f32.mrb[0].mxu0
        %3054 = vdwg.mxu0
        %3055 = vrot.lane.b32.xlu0 %v1807, 104
        %v3056 = vpop.permute.xlu0 %3055
        %v3059 = vsel %vm1810, %v2978, 0
        %3061 = vmatprep.subr.mxu0 0.0
        %3062 = vmatpush1.msra.mxu0 %v3056
        %3063 = vmatprep.subr.mxu0 0.0
        %3064 = vmatpush1.msra.mxu0 0.0
        %3065 = vmatprep.subr.mxu0 0.0
        %3066 = vmatpush1.msra.mxu0 0.0
        %3067 = vmatprep.subr.mxu0 0.0
        %3068 = vmatpush1.msra.mxu0 0.0
        %3069 = vmatprep.subr.mxu0 0.0
        %3070 = vmatpush1.msra.mxu0 0.0
        %3071 = vmatprep.subr.mxu0 0.0
        %3072 = vmatpush1.msra.mxu0 0.0
        %3073 = vmatprep.subr.mxu0 0.0
        %3074 = vmatpush1.msra.mxu0 0.0
        %3075 = vmatprep.subr.mxu0 0.0
        %3076 = vmatpush1.msra.mxu0 0.0
        %3077 = vmatprep.subr.mxu0 0.0
        %3078 = vmatpush1.msra.mxu0 0.0
        %3079 = vmatprep.subr.mxu0 0.0
        %3080 = vmatpush1.msra.mxu0 0.0
        %3081 = vmatprep.subr.mxu0 0.0
        %3082 = vmatpush1.msra.mxu0 0.0
        %3083 = vmatprep.subr.mxu0 0.0
        %3084 = vmatpush1.msra.mxu0 0.0
        %3085 = vmatprep.subr.mxu0 0.0
        %3086 = vmatpush1.msra.mxu0 0.0
        %3087 = vmatprep.subr.mxu0 0.0
        %3088 = vmatpush1.msra.mxu0 0.0
        %3089 = vmatprep.subr.mxu0 0.0
        %3090 = vmatpush1.msra.mxu0 0.0
        %3091 = vmatprep.subr.mxu0 0.0
        %3092 = vmatpush1.msra.mxu0 0.0
        %3093 = vmatprep.subr.mxu0 0.0
        %3094 = vmatpush1.msra.mxu0 0.0
        %3095 = vmatprep.subr.mxu0 0.0
        %3096 = vmatpush1.msra.mxu0 0.0
        %3097 = vmatprep.subr.mxu0 0.0
        %3098 = vmatpush1.msra.mxu0 0.0
        %3099 = vmatprep.subr.mxu0 0.0
        %3100 = vmatpush1.msra.mxu0 0.0
        %3101 = vmatprep.subr.mxu0 0.0
        %3102 = vmatpush1.msra.mxu0 0.0
        %3103 = vmatprep.subr.mxu0 0.0
        %3104 = vmatpush1.msra.mxu0 0.0
        %3105 = vmatprep.subr.mxu0 0.0
        %3106 = vmatpush1.msra.mxu0 0.0
        %3107 = vmatprep.subr.mxu0 0.0
        %3108 = vmatpush1.msra.mxu0 0.0
        %3109 = vmatprep.subr.mxu0 0.0
        %3110 = vmatpush1.msra.mxu0 0.0
        %3111 = vmatprep.subr.mxu0 0.0
        %3112 = vmatpush1.msra.mxu0 0.0
        %3113 = vmatprep.subr.mxu0 0.0
        %3114 = vmatpush1.msra.mxu0 0.0
        %3115 = vmatprep.subr.mxu0 0.0
        %3116 = vmatpush1.msra.mxu0 0.0
        %3117 = vmatprep.subr.mxu0 0.0
        %3118 = vmatpush1.msra.mxu0 0.0
        %3119 = vmatprep.subr.mxu0 0.0
        %3120 = vmatpush1.msra.mxu0 0.0
        %3121 = vmatprep.subr.mxu0 0.0
        %3122 = vmatpush1.msra.mxu0 0.0
        %3123 = vmatprep.subr.mxu0 0.0
        %3124 = vmatpush1.msra.mxu0 0.0
        %3125 = vmatprep.mubr.f32.mxu0 0.0
        %3126 = vmatmul.mubr.f32.gmra.mrb[0].mxu0 %v3059
        %v3127 = vpop.f32.mrb[0].mxu0
        %v3128 = vadd.f32 0.0, %v3127
        %v3129 = vpop.f32.mrb[0].mxu0
        %3130 = vdwg.mxu0
        %3133 = vrot.lane.b32.xlu0 %v2387, 8
        %v3134 = vpop.permute.xlu0 %3133
        %3135 = vrot.lane.b32.xlu0 %v2464, 8
        %v3136 = vpop.permute.xlu0 %3135
        %3141 = vrot.lane.b32.xlu0 %v2720, 16
        %v3142 = vpop.permute.xlu0 %3141
        %3143 = vrot.lane.b32.xlu0 %v2796, 16
        %v3144 = vpop.permute.xlu0 %3143
        %3149 = vrot.lane.b32.xlu0 %v3052, 24
        %v3150 = vpop.permute.xlu0 %3149
        %3151 = vrot.lane.b32.xlu0 %v3128, 24
        %v3152 = vpop.permute.xlu0 %3151
        %v3155 = vsel %vm1810, %v2057, %v3134
        %v3156 = vsel %vm1810, %v2130, %v3136
        %vm3157 = vcmask 130048
        %v3158 = vsel %vm3157, %v3155, %v3142
        %v3159 = vsel %vm3157, %v3156, %v3144
        %vm3160 = vcmask 195584
        %v3161 = vsel %vm3160, %v3158, %v3150
        %v3162 = vsel %vm3160, %v3159, %v3152
        %v3163 = vld [vmem:[%s1518] sm:$0xff]
        %v3164 = vld [vmem:[%s1518 + $0x8] sm:$0xff]
        %v3165 = vld [vmem:[%s1518 + $0x10] sm:$0xff]
        %v3166 = vld [vmem:[%s1518 + $0x18] sm:$0xff]
        %v3167 = vld [vmem:[%s1193] sm:$0x1]
        %v3169 = vlaneseq
        %v3170 = vshrl.u32 %v3169, 7
        %v3171 = vsub.s32 0, %v3170
        %v3172 = vrot.slane %v3167, %v3171
        %v3175 = vsel %vm1556, %v3161, 0
        %v3178 = vsel %vm1556, %v3162, 0
        %3180 = vmatprep.subr.mxu0 0.0
        %3181 = vmatpush1.msra.mxu0 %v3163
        %3182 = vmatprep.subr.mxu0 0.0
        %3183 = vmatpush1.msra.mxu0 %v3164
        %3184 = vmatprep.subr.mxu0 0.0
        %3185 = vmatpush1.msra.mxu0 %v3165
        %3186 = vmatprep.subr.mxu0 0.0
        %3187 = vmatpush1.msra.mxu0 %v3166
        %3188 = vmatprep.subr.mxu0 0.0
        %3189 = vmatpush1.msra.mxu0 0.0
        %3190 = vmatprep.subr.mxu0 0.0
        %3191 = vmatpush1.msra.mxu0 0.0
        %3192 = vmatprep.subr.mxu0 0.0
        %3193 = vmatpush1.msra.mxu0 0.0
        %3194 = vmatprep.subr.mxu0 0.0
        %3195 = vmatpush1.msra.mxu0 0.0
        %3196 = vmatprep.subr.mxu0 0.0
        %3197 = vmatpush1.msra.mxu0 0.0
        %3198 = vmatprep.subr.mxu0 0.0
        %3199 = vmatpush1.msra.mxu0 0.0
        %3200 = vmatprep.subr.mxu0 0.0
        %3201 = vmatpush1.msra.mxu0 0.0
        %3202 = vmatprep.subr.mxu0 0.0
        %3203 = vmatpush1.msra.mxu0 0.0
        %3204 = vmatprep.subr.mxu0 0.0
        %3205 = vmatpush1.msra.mxu0 0.0
        %3206 = vmatprep.subr.mxu0 0.0
        %3207 = vmatpush1.msra.mxu0 0.0
        %3208 = vmatprep.subr.mxu0 0.0
        %3209 = vmatpush1.msra.mxu0 0.0
        %3210 = vmatprep.subr.mxu0 0.0
        %3211 = vmatpush1.msra.mxu0 0.0
        %3212 = vmatprep.subr.mxu0 0.0
        %3213 = vmatpush1.msra.mxu0 0.0
        %3214 = vmatprep.subr.mxu0 0.0
        %3215 = vmatpush1.msra.mxu0 0.0
        %3216 = vmatprep.subr.mxu0 0.0
        %3217 = vmatpush1.msra.mxu0 0.0
        %3218 = vmatprep.subr.mxu0 0.0
        %3219 = vmatpush1.msra.mxu0 0.0
        %3220 = vmatprep.subr.mxu0 0.0
        %3221 = vmatpush1.msra.mxu0 0.0
        %3222 = vmatprep.subr.mxu0 0.0
        %3223 = vmatpush1.msra.mxu0 0.0
        %3224 = vmatprep.subr.mxu0 0.0
        %3225 = vmatpush1.msra.mxu0 0.0
        %3226 = vmatprep.subr.mxu0 0.0
        %3227 = vmatpush1.msra.mxu0 0.0
        %3228 = vmatprep.subr.mxu0 0.0
        %3229 = vmatpush1.msra.mxu0 0.0
        %3230 = vmatprep.subr.mxu0 0.0
        %3231 = vmatpush1.msra.mxu0 0.0
        %3232 = vmatprep.subr.mxu0 0.0
        %3233 = vmatpush1.msra.mxu0 0.0
        %3234 = vmatprep.subr.mxu0 0.0
        %3235 = vmatpush1.msra.mxu0 0.0
        %3236 = vmatprep.subr.mxu0 0.0
        %3237 = vmatpush1.msra.mxu0 0.0
        %3238 = vmatprep.subr.mxu0 0.0
        %3239 = vmatpush1.msra.mxu0 0.0
        %3240 = vmatprep.subr.mxu0 0.0
        %3241 = vmatpush1.msra.mxu0 0.0
        %3242 = vmatprep.subr.mxu0 0.0
        %3243 = vmatpush1.msra.mxu0 0.0
        %3244 = vmatprep.mubr.f32.mxu0 0.0
        %3245 = vmatmul.mubr.f32.gmra.mrb[0].mxu0 %v3175
        %v3246 = vpop.f32.mrb[0].mxu0
        %v3247 = vadd.f32 %v3172, %v3246
        %v3248 = vpop.f32.mrb[0].mxu0
        %3249 = vmatprep.mubr.f32.mxu0 0.0
        %3250 = vmatmul.mubr.f32.gmra.mrb[0].mxu0 %v3178
        %v3251 = vpop.f32.mrb[0].mxu0
        %v3252 = vadd.f32 %v3172, %v3251
        %v3253 = vpop.f32.mrb[0].mxu0
        %3254 = vdwg.mxu0
        %v3255 = vadd.f32 %v1543, %v3247
        %v3256 = vadd.f32 %v1544, %v3252
        %v3257 = vsel %vm1556, %v3255, 0.0
        %3258 = vadd.xlane.f32.xlu0 %v3257
        %v3259 = vpop.xlane.xlu0 %3258
        %v3260 = vsel %vm1556, %v3256, 0.0
        %3261 = vadd.xlane.f32.xlu0 %v3260
        %v3262 = vpop.xlane.xlu0 %3261
        %v3263 = vrcp.pop 32.0
        %v3264 = vmul.f32 %v3259, %v3263
        %v3265 = vmul.f32 %v3262, %v3263
        %v3266 = vsub.f32 %v3255, %v3264
        %v3267 = vsub.f32 %v3256, %v3265
        %v3268 = vmul.f32 %v3266, %v3266
        %v3269 = vmul.f32 %v3267, %v3267
        %v3270 = vsel %vm1556, %v3268, 0.0
        %3271 = vadd.xlane.f32.xlu0 %v3270
        %v3272 = vpop.xlane.xlu0 %3271
        %v3273 = vsel %vm1556, %v3269, 0.0
        %3274 = vadd.xlane.f32.xlu0 %v3273
        %v3275 = vpop.xlane.xlu0 %3274
        %v3276 = vmul.f32 %v3272, %v3263
        %v3277 = vmul.f32 %v3275, %v3263
        %v3278 = vadd.f32 %v3276, 1e-05
        %v3279 = vadd.f32 %v3277, 1e-05
        %v3280 = vrsqrt.pop %v3278
        %v3281 = vrsqrt.pop %v3279
        %v3282 = vmul.f32 %v3266, %v3280
        %v3283 = vmul.f32 %v3267, %v3281
        %v3284 = vld [vmem:[%s1276] sm:$0x1]
        %v3286 = vlaneseq
        %v3287 = vshrl.u32 %v3286, 7
        %v3288 = vsub.s32 0, %v3287
        %v3289 = vrot.slane %v3284, %v3288
        %v3291 = vmul.f32 %v3282, %v3289
        %v3292 = vmul.f32 %v3283, %v3289
        %v3293 = vld [vmem:[%s1284] sm:$0x1]
        %v3295 = vlaneseq
        %v3296 = vshrl.u32 %v3295, 7
        %v3297 = vsub.s32 0, %v3296
        %v3298 = vrot.slane %v3293, %v3297
        %v3300 = vadd.f32 %v3291, %v3298
        %v3301 = vadd.f32 %v3292, %v3298
        %v3302 = vld [vmem:[%s1] sm:$0xff]
        %v3303 = vld [vmem:[%s1 + $0x8] sm:$0xff]
        %v3304 = vld [vmem:[%s1 + $0x10] sm:$0xff]
        %v3305 = vld [vmem:[%s1 + $0x18] sm:$0xff]
        %v3306 = vld [vmem:[%s1523] sm:$0xff]
        %v3307 = vld [vmem:[%s1523 + $0x8] sm:$0xff]
        %v3308 = vld [vmem:[%s1523 + $0x10] sm:$0xff]
        %v3309 = vld [vmem:[%s1523 + $0x18] sm:$0xff]
        %v3310 = vld [vmem:[%s1219] sm:$0x1]
        %v3312 = vlaneseq
        %v3313 = vshrl.u32 %v3312, 7
        %v3314 = vsub.s32 0, %v3313
        %v3315 = vrot.slane %v3310, %v3314
        %v3318 = vsel %vm1556, %v3300, 0
        %v3321 = vsel %vm1556, %v3301, 0
        %3323 = vmatprep.subr.mxu0 0.0
        %3324 = vmatpush1.msra.mxu0 %v3306
        %3325 = vmatprep.subr.mxu0 0.0
        %3326 = vmatpush1.msra.mxu0 %v3307
        %3327 = vmatprep.subr.mxu0 0.0
        %3328 = vmatpush1.msra.mxu0 %v3308
        %3329 = vmatprep.subr.mxu0 0.0
        %3330 = vmatpush1.msra.mxu0 %v3309
        %3331 = vmatprep.subr.mxu0 0.0
        %3332 = vmatpush1.msra.mxu0 0.0
        %3333 = vmatprep.subr.mxu0 0.0
        %3334 = vmatpush1.msra.mxu0 0.0
        %3335 = vmatprep.subr.mxu0 0.0
        %3336 = vmatpush1.msra.mxu0 0.0
        %3337 = vmatprep.subr.mxu0 0.0
        %3338 = vmatpush1.msra.mxu0 0.0
        %3339 = vmatprep.subr.mxu0 0.0
        %3340 = vmatpush1.msra.mxu0 0.0
        %3341 = vmatprep.subr.mxu0 0.0
        %3342 = vmatpush1.msra.mxu0 0.0
        %3343 = vmatprep.subr.mxu0 0.0
        %3344 = vmatpush1.msra.mxu0 0.0
        %3345 = vmatprep.subr.mxu0 0.0
        %3346 = vmatpush1.msra.mxu0 0.0
        %3347 = vmatprep.subr.mxu0 0.0
        %3348 = vmatpush1.msra.mxu0 0.0
        %3349 = vmatprep.subr.mxu0 0.0
        %3350 = vmatpush1.msra.mxu0 0.0
        %3351 = vmatprep.subr.mxu0 0.0
        %3352 = vmatpush1.msra.mxu0 0.0
        %3353 = vmatprep.subr.mxu0 0.0
        %3354 = vmatpush1.msra.mxu0 0.0
        %3355 = vmatprep.subr.mxu0 0.0
        %3356 = vmatpush1.msra.mxu0 0.0
        %3357 = vmatprep.subr.mxu0 0.0
        %3358 = vmatpush1.msra.mxu0 0.0
        %3359 = vmatprep.subr.mxu0 0.0
        %3360 = vmatpush1.msra.mxu0 0.0
        %3361 = vmatprep.subr.mxu0 0.0
        %3362 = vmatpush1.msra.mxu0 0.0
        %3363 = vmatprep.subr.mxu0 0.0
        %3364 = vmatpush1.msra.mxu0 0.0
        %3365 = vmatprep.subr.mxu0 0.0
        %3366 = vmatpush1.msra.mxu0 0.0
        %3367 = vmatprep.subr.mxu0 0.0
        %3368 = vmatpush1.msra.mxu0 0.0
        %3369 = vmatprep.subr.mxu0 0.0
        %3370 = vmatpush1.msra.mxu0 0.0
        %3371 = vmatprep.subr.mxu0 0.0
        %3372 = vmatpush1.msra.mxu0 0.0
        %3373 = vmatprep.subr.mxu0 0.0
        %3374 = vmatpush1.msra.mxu0 0.0
        %3375 = vmatprep.subr.mxu0 0.0
        %3376 = vmatpush1.msra.mxu0 0.0
        %3377 = vmatprep.subr.mxu0 0.0
        %3378 = vmatpush1.msra.mxu0 0.0
        %3379 = vmatprep.subr.mxu0 0.0
        %3380 = vmatpush1.msra.mxu0 0.0
        %3381 = vmatprep.subr.mxu0 0.0
        %3382 = vmatpush1.msra.mxu0 0.0
        %3383 = vmatprep.subr.mxu0 0.0
        %3384 = vmatpush1.msra.mxu0 0.0
        %3385 = vmatprep.subr.mxu0 0.0
        %3386 = vmatpush1.msra.mxu0 0.0
        %3387 = vmatprep.mubr.f32.mxu0 0.0
        %3388 = vmatmul.mubr.f32.gmra.mrb[0].mxu0 %v3318
        %v3389 = vpop.f32.mrb[0].mxu0
        %v3390 = vadd.f32 %v3315, %v3389
        %v3391 = vpop.f32.mrb[0].mxu0
        %3392 = vmatprep.mubr.f32.mxu0 0.0
        %3393 = vmatmul.mubr.f32.gmra.mrb[0].mxu0 %v3321
        %v3394 = vpop.f32.mrb[0].mxu0
        %v3395 = vadd.f32 %v3315, %v3394
        %v3396 = vpop.f32.mrb[0].mxu0
        %3397 = vdwg.mxu0
        %v3398 = vld [vmem:[%s1202] sm:$0xff]
        %v3399 = vld [vmem:[%s1202 + $0x8] sm:$0xff]
        %v3400 = vld [vmem:[%s1202 + $0x10] sm:$0xff]
        %v3401 = vld [vmem:[%s1202 + $0x18] sm:$0xff]
        %v3402 = vld [vmem:[%s1227] sm:$0x1]
        %v3404 = vlaneseq
        %v3405 = vshrl.u32 %v3404, 7
        %v3406 = vsub.s32 0, %v3405
        %v3407 = vrot.slane %v3402, %v3406
        %v3410 = vsel %vm1556, %v3302, 0
        %v3413 = vsel %vm1556, %v3303, 0
        %v3416 = vsel %vm1556, %v3304, 0
        %v3419 = vsel %vm1556, %v3305, 0
        %3421 = vmatprep.subr.mxu0 0.0
        %3422 = vmatpush1.msra.mxu0 %v3398
        %3423 = vmatprep.subr.mxu0 0.0
        %3424 = vmatpush1.msra.mxu0 %v3399
        %3425 = vmatprep.subr.mxu0 0.0
        %3426 = vmatpush1.msra.mxu0 %v3400
        %3427 = vmatprep.subr.mxu0 0.0
        %3428 = vmatpush1.msra.mxu0 %v3401
        %3429 = vmatprep.subr.mxu0 0.0
        %3430 = vmatpush1.msra.mxu0 0.0
        %3431 = vmatprep.subr.mxu0 0.0
        %3432 = vmatpush1.msra.mxu0 0.0
        %3433 = vmatprep.subr.mxu0 0.0
        %3434 = vmatpush1.msra.mxu0 0.0
        %3435 = vmatprep.subr.mxu0 0.0
        %3436 = vmatpush1.msra.mxu0 0.0
        %3437 = vmatprep.subr.mxu0 0.0
        %3438 = vmatpush1.msra.mxu0 0.0
        %3439 = vmatprep.subr.mxu0 0.0
        %3440 = vmatpush1.msra.mxu0 0.0
        %3441 = vmatprep.subr.mxu0 0.0
        %3442 = vmatpush1.msra.mxu0 0.0
        %3443 = vmatprep.subr.mxu0 0.0
        %3444 = vmatpush1.msra.mxu0 0.0
        %3445 = vmatprep.subr.mxu0 0.0
        %3446 = vmatpush1.msra.mxu0 0.0
        %3447 = vmatprep.subr.mxu0 0.0
        %3448 = vmatpush1.msra.mxu0 0.0
        %3449 = vmatprep.subr.mxu0 0.0
        %3450 = vmatpush1.msra.mxu0 0.0
        %3451 = vmatprep.subr.mxu0 0.0
        %3452 = vmatpush1.msra.mxu0 0.0
        %3453 = vmatprep.subr.mxu0 0.0
        %3454 = vmatpush1.msra.mxu0 0.0
        %3455 = vmatprep.subr.mxu0 0.0
        %3456 = vmatpush1.msra.mxu0 0.0
        %3457 = vmatprep.subr.mxu0 0.0
        %3458 = vmatpush1.msra.mxu0 0.0
        %3459 = vmatprep.subr.mxu0 0.0
        %3460 = vmatpush1.msra.mxu0 0.0
        %3461 = vmatprep.subr.mxu0 0.0
        %3462 = vmatpush1.msra.mxu0 0.0
        %3463 = vmatprep.subr.mxu0 0.0
        %3464 = vmatpush1.msra.mxu0 0.0
        %3465 = vmatprep.subr.mxu0 0.0
        %3466 = vmatpush1.msra.mxu0 0.0
        %3467 = vmatprep.subr.mxu0 0.0
        %3468 = vmatpush1.msra.mxu0 0.0
        %3469 = vmatprep.subr.mxu0 0.0
        %3470 = vmatpush1.msra.mxu0 0.0
        %3471 = vmatprep.subr.mxu0 0.0
        %3472 = vmatpush1.msra.mxu0 0.0
        %3473 = vmatprep.subr.mxu0 0.0
        %3474 = vmatpush1.msra.mxu0 0.0
        %3475 = vmatprep.subr.mxu0 0.0
        %3476 = vmatpush1.msra.mxu0 0.0
        %3477 = vmatprep.subr.mxu0 0.0
        %3478 = vmatpush1.msra.mxu0 0.0
        %3479 = vmatprep.subr.mxu0 0.0
        %3480 = vmatpush1.msra.mxu0 0.0
        %3481 = vmatprep.subr.mxu0 0.0
        %3482 = vmatpush1.msra.mxu0 0.0
        %3483 = vmatprep.subr.mxu0 0.0
        %3484 = vmatpush1.msra.mxu0 0.0
        %3485 = vmatprep.mubr.f32.mxu0 0.0
        %3486 = vmatmul.mubr.f32.gmra.mrb[0].mxu0 %v3410
        %v3487 = vpop.f32.mrb[0].mxu0
        %v3488 = vadd.f32 %v3407, %v3487
        %v3489 = vpop.f32.mrb[0].mxu0
        %3490 = vmatprep.mubr.f32.mxu0 0.0
        %3491 = vmatmul.mubr.f32.gmra.mrb[0].mxu0 %v3413
        %v3492 = vpop.f32.mrb[0].mxu0
        %v3493 = vadd.f32 %v3407, %v3492
        %v3494 = vpop.f32.mrb[0].mxu0
        %3495 = vmatprep.mubr.f32.mxu0 0.0
        %3496 = vmatmul.mubr.f32.gmra.mrb[0].mxu0 %v3416
        %v3497 = vpop.f32.mrb[0].mxu0
        %v3498 = vadd.f32 %v3407, %v3497
        %v3499 = vpop.f32.mrb[0].mxu0
        %3500 = vmatprep.mubr.f32.mxu0 0.0
        %3501 = vmatmul.mubr.f32.gmra.mrb[0].mxu0 %v3419
        %v3502 = vpop.f32.mrb[0].mxu0
        %v3503 = vadd.f32 %v3407, %v3502
        %v3504 = vpop.f32.mrb[0].mxu0
        %3505 = vdwg.mxu0
        %v3506 = vld [vmem:[%s1211] sm:$0xff]
        %v3507 = vld [vmem:[%s1211 + $0x8] sm:$0xff]
        %v3508 = vld [vmem:[%s1211 + $0x10] sm:$0xff]
        %v3509 = vld [vmem:[%s1211 + $0x18] sm:$0xff]
        %v3510 = vld [vmem:[%s1235] sm:$0x1]
        %v3512 = vlaneseq
        %v3513 = vshrl.u32 %v3512, 7
        %v3514 = vsub.s32 0, %v3513
        %v3515 = vrot.slane %v3510, %v3514
        %3517 = vmatprep.subr.mxu0 0.0
        %3518 = vmatpush1.msra.mxu0 %v3506
        %3519 = vmatprep.subr.mxu0 0.0
        %3520 = vmatpush1.msra.mxu0 %v3507
        %3521 = vmatprep.subr.mxu0 0.0
        %3522 = vmatpush1.msra.mxu0 %v3508
        %3523 = vmatprep.subr.mxu0 0.0
        %3524 = vmatpush1.msra.mxu0 %v3509
        %3525 = vmatprep.subr.mxu0 0.0
        %3526 = vmatpush1.msra.mxu0 0.0
        %3527 = vmatprep.subr.mxu0 0.0
        %3528 = vmatpush1.msra.mxu0 0.0
        %3529 = vmatprep.subr.mxu0 0.0
        %3530 = vmatpush1.msra.mxu0 0.0
        %3531 = vmatprep.subr.mxu0 0.0
        %3532 = vmatpush1.msra.mxu0 0.0
        %3533 = vmatprep.subr.mxu0 0.0
        %3534 = vmatpush1.msra.mxu0 0.0
        %3535 = vmatprep.subr.mxu0 0.0
        %3536 = vmatpush1.msra.mxu0 0.0
        %3537 = vmatprep.subr.mxu0 0.0
        %3538 = vmatpush1.msra.mxu0 0.0
        %3539 = vmatprep.subr.mxu0 0.0
        %3540 = vmatpush1.msra.mxu0 0.0
        %3541 = vmatprep.subr.mxu0 0.0
        %3542 = vmatpush1.msra.mxu0 0.0
        %3543 = vmatprep.subr.mxu0 0.0
        %3544 = vmatpush1.msra.mxu0 0.0
        %3545 = vmatprep.subr.mxu0 0.0
        %3546 = vmatpush1.msra.mxu0 0.0
        %3547 = vmatprep.subr.mxu0 0.0
        %3548 = vmatpush1.msra.mxu0 0.0
        %3549 = vmatprep.subr.mxu0 0.0
        %3550 = vmatpush1.msra.mxu0 0.0
        %3551 = vmatprep.subr.mxu0 0.0
        %3552 = vmatpush1.msra.mxu0 0.0
        %3553 = vmatprep.subr.mxu0 0.0
        %3554 = vmatpush1.msra.mxu0 0.0
        %3555 = vmatprep.subr.mxu0 0.0
        %3556 = vmatpush1.msra.mxu0 0.0
        %3557 = vmatprep.subr.mxu0 0.0
        %3558 = vmatpush1.msra.mxu0 0.0
        %3559 = vmatprep.subr.mxu0 0.0
        %3560 = vmatpush1.msra.mxu0 0.0
        %3561 = vmatprep.subr.mxu0 0.0
        %3562 = vmatpush1.msra.mxu0 0.0
        %3563 = vmatprep.subr.mxu0 0.0
        %3564 = vmatpush1.msra.mxu0 0.0
        %3565 = vmatprep.subr.mxu0 0.0
        %3566 = vmatpush1.msra.mxu0 0.0
        %3567 = vmatprep.subr.mxu0 0.0
        %3568 = vmatpush1.msra.mxu0 0.0
        %3569 = vmatprep.subr.mxu0 0.0
        %3570 = vmatpush1.msra.mxu0 0.0
        %3571 = vmatprep.subr.mxu0 0.0
        %3572 = vmatpush1.msra.mxu0 0.0
        %3573 = vmatprep.subr.mxu0 0.0
        %3574 = vmatpush1.msra.mxu0 0.0
        %3575 = vmatprep.subr.mxu0 0.0
        %3576 = vmatpush1.msra.mxu0 0.0
        %3577 = vmatprep.subr.mxu0 0.0
        %3578 = vmatpush1.msra.mxu0 0.0
        %3579 = vmatprep.subr.mxu0 0.0
        %3580 = vmatpush1.msra.mxu0 0.0
        %3581 = vmatprep.mubr.f32.mxu0 0.0
        %3582 = vmatmul.mubr.f32.gmra.mrb[0].mxu0 %v3410
        %v3583 = vpop.f32.mrb[0].mxu0
        %v3584 = vadd.f32 %v3515, %v3583
        %v3585 = vpop.f32.mrb[0].mxu0
        %3586 = vmatprep.mubr.f32.mxu0 0.0
        %3587 = vmatmul.mubr.f32.gmra.mrb[0].mxu0 %v3413
        %v3588 = vpop.f32.mrb[0].mxu0
        %v3589 = vadd.f32 %v3515, %v3588
        %v3590 = vpop.f32.mrb[0].mxu0
        %3591 = vmatprep.mubr.f32.mxu0 0.0
        %3592 = vmatmul.mubr.f32.gmra.mrb[0].mxu0 %v3416
        %v3593 = vpop.f32.mrb[0].mxu0
        %v3594 = vadd.f32 %v3515, %v3593
        %v3595 = vpop.f32.mrb[0].mxu0
        %3596 = vmatprep.mubr.f32.mxu0 0.0
        %3597 = vmatmul.mubr.f32.gmra.mrb[0].mxu0 %v3419
        %v3598 = vpop.f32.mrb[0].mxu0
        %v3599 = vadd.f32 %v3515, %v3598
        %v3600 = vpop.f32.mrb[0].mxu0
        %3601 = vdwg.mxu0
        %v3602 = vlaneseq
        %v3603 = vand.u32 %v3602, 127
        %vm3604 = vcmp.lt.s32.totalorder %v3603, 12
        %v3606 = vsel %vm1810, %v3390, 0
        %v3609 = vsel %vm1810, %v3488, 0
        %v3612 = vsel %vm1810, %v3493, 0
        %3614 = vmatprep.subr.mxu0 0.0
        %3615 = vmatpush1.xpose.msra.mxu0 %v3609
        %3616 = vmatprep.subr.mxu0 0.0
        %3617 = vmatpush1.xpose.msra.mxu0 %v3612
        %3618 = vmatprep.subr.mxu0 0.0
        %3619 = vmatpush1.xpose.msra.mxu0 0.0
        %3620 = vmatprep.subr.mxu0 0.0
        %3621 = vmatpush1.xpose.msra.mxu0 0.0
        %3622 = vmatprep.subr.mxu0 0.0
        %3623 = vmatpush1.xpose.msra.mxu0 0.0
        %3624 = vmatprep.subr.mxu0 0.0
        %3625 = vmatpush1.xpose.msra.mxu0 0.0
        %3626 = vmatprep.subr.mxu0 0.0
        %3627 = vmatpush1.xpose.msra.mxu0 0.0
        %3628 = vmatprep.subr.mxu0 0.0
        %3629 = vmatpush1.xpose.msra.mxu0 0.0
        %3630 = vmatprep.subr.mxu0 0.0
        %3631 = vmatpush1.xpose.msra.mxu0 0.0
        %3632 = vmatprep.subr.mxu0 0.0
        %3633 = vmatpush1.xpose.msra.mxu0 0.0
        %3634 = vmatprep.subr.mxu0 0.0
        %3635 = vmatpush1.xpose.msra.mxu0 0.0
        %3636 = vmatprep.subr.mxu0 0.0
        %3637 = vmatpush1.xpose.msra.mxu0 0.0
        %3638 = vmatprep.subr.mxu0 0.0
        %3639 = vmatpush1.xpose.msra.mxu0 0.0
        %3640 = vmatprep.subr.mxu0 0.0
        %3641 = vmatpush1.xpose.msra.mxu0 0.0
        %3642 = vmatprep.subr.mxu0 0.0
        %3643 = vmatpush1.xpose.msra.mxu0 0.0
        %3644 = vmatprep.subr.mxu0 0.0
        %3645 = vmatpush1.xpose.msra.mxu0 0.0
        %3646 = vmatprep.subr.mxu0 0.0
        %3647 = vmatpush1.xpose.msra.mxu0 0.0
        %3648 = vmatprep.subr.mxu0 0.0
        %3649 = vmatpush1.xpose.msra.mxu0 0.0
        %3650 = vmatprep.subr.mxu0 0.0
        %3651 = vmatpush1.xpose.msra.mxu0 0.0
        %3652 = vmatprep.subr.mxu0 0.0
        %3653 = vmatpush1.xpose.msra.mxu0 0.0
        %3654 = vmatprep.subr.mxu0 0.0
        %3655 = vmatpush1.xpose.msra.mxu0 0.0
        %3656 = vmatprep.subr.mxu0 0.0
        %3657 = vmatpush1.xpose.msra.mxu0 0.0
        %3658 = vmatprep.subr.mxu0 0.0
        %3659 = vmatpush1.xpose.msra.mxu0 0.0
        %3660 = vmatprep.subr.mxu0 0.0
        %3661 = vmatpush1.xpose.msra.mxu0 0.0
        %3662 = vmatprep.subr.mxu0 0.0
        %3663 = vmatpush1.xpose.msra.mxu0 0.0
        %3664 = vmatprep.subr.mxu0 0.0
        %3665 = vmatpush1.xpose.msra.mxu0 0.0
        %3666 = vmatprep.subr.mxu0 0.0
        %3667 = vmatpush1.xpose.msra.mxu0 0.0
        %3668 = vmatprep.subr.mxu0 0.0
        %3669 = vmatpush1.xpose.msra.mxu0 0.0
        %3670 = vmatprep.subr.mxu0 0.0
        %3671 = vmatpush1.xpose.msra.mxu0 0.0
        %3672 = vmatprep.subr.mxu0 0.0
        %3673 = vmatpush1.xpose.msra.mxu0 0.0
        %3674 = vmatprep.subr.mxu0 0.0
        %3675 = vmatpush1.xpose.msra.mxu0 0.0
        %3676 = vmatprep.subr.mxu0 0.0
        %3677 = vmatpush1.xpose.msra.mxu0 0.0
        %3678 = vmatprep.mubr.f32.mxu0 0.0
        %3679 = vmatmul.mubr.f32.gmra.mrb[0].mxu0 %v3606
        %v3680 = vpop.f32.mrb[0].mxu0
        %v3681 = vadd.f32 0.0, %v3680
        %v3682 = vpop.f32.mrb[0].mxu0
        %3683 = vdwg.mxu0
        %v3685 = vsel %vm1810, %v3395, 0
        %v3688 = vsel %vm1810, %v3498, 0
        %v3691 = vsel %vm1810, %v3503, 0
        %3693 = vmatprep.subr.mxu0 0.0
        %3694 = vmatpush1.xpose.msra.mxu0 %v3688
        %3695 = vmatprep.subr.mxu0 0.0
        %3696 = vmatpush1.xpose.msra.mxu0 %v3691
        %3697 = vmatprep.subr.mxu0 0.0
        %3698 = vmatpush1.xpose.msra.mxu0 0.0
        %3699 = vmatprep.subr.mxu0 0.0
        %3700 = vmatpush1.xpose.msra.mxu0 0.0
        %3701 = vmatprep.subr.mxu0 0.0
        %3702 = vmatpush1.xpose.msra.mxu0 0.0
        %3703 = vmatprep.subr.mxu0 0.0
        %3704 = vmatpush1.xpose.msra.mxu0 0.0
        %3705 = vmatprep.subr.mxu0 0.0
        %3706 = vmatpush1.xpose.msra.mxu0 0.0
        %3707 = vmatprep.subr.mxu0 0.0
        %3708 = vmatpush1.xpose.msra.mxu0 0.0
        %3709 = vmatprep.subr.mxu0 0.0
        %3710 = vmatpush1.xpose.msra.mxu0 0.0
        %3711 = vmatprep.subr.mxu0 0.0
        %3712 = vmatpush1.xpose.msra.mxu0 0.0
        %3713 = vmatprep.subr.mxu0 0.0
        %3714 = vmatpush1.xpose.msra.mxu0 0.0
        %3715 = vmatprep.subr.mxu0 0.0
        %3716 = vmatpush1.xpose.msra.mxu0 0.0
        %3717 = vmatprep.subr.mxu0 0.0
        %3718 = vmatpush1.xpose.msra.mxu0 0.0
        %3719 = vmatprep.subr.mxu0 0.0
        %3720 = vmatpush1.xpose.msra.mxu0 0.0
        %3721 = vmatprep.subr.mxu0 0.0
        %3722 = vmatpush1.xpose.msra.mxu0 0.0
        %3723 = vmatprep.subr.mxu0 0.0
        %3724 = vmatpush1.xpose.msra.mxu0 0.0
        %3725 = vmatprep.subr.mxu0 0.0
        %3726 = vmatpush1.xpose.msra.mxu0 0.0
        %3727 = vmatprep.subr.mxu0 0.0
        %3728 = vmatpush1.xpose.msra.mxu0 0.0
        %3729 = vmatprep.subr.mxu0 0.0
        %3730 = vmatpush1.xpose.msra.mxu0 0.0
        %3731 = vmatprep.subr.mxu0 0.0
        %3732 = vmatpush1.xpose.msra.mxu0 0.0
        %3733 = vmatprep.subr.mxu0 0.0
        %3734 = vmatpush1.xpose.msra.mxu0 0.0
        %3735 = vmatprep.subr.mxu0 0.0
        %3736 = vmatpush1.xpose.msra.mxu0 0.0
        %3737 = vmatprep.subr.mxu0 0.0
        %3738 = vmatpush1.xpose.msra.mxu0 0.0
        %3739 = vmatprep.subr.mxu0 0.0
        %3740 = vmatpush1.xpose.msra.mxu0 0.0
        %3741 = vmatprep.subr.mxu0 0.0
        %3742 = vmatpush1.xpose.msra.mxu0 0.0
        %3743 = vmatprep.subr.mxu0 0.0
        %3744 = vmatpush1.xpose.msra.mxu0 0.0
        %3745 = vmatprep.subr.mxu0 0.0
        %3746 = vmatpush1.xpose.msra.mxu0 0.0
        %3747 = vmatprep.subr.mxu0 0.0
        %3748 = vmatpush1.xpose.msra.mxu0 0.0
        %3749 = vmatprep.subr.mxu0 0.0
        %3750 = vmatpush1.xpose.msra.mxu0 0.0
        %3751 = vmatprep.subr.mxu0 0.0
        %3752 = vmatpush1.xpose.msra.mxu0 0.0
        %3753 = vmatprep.subr.mxu0 0.0
        %3754 = vmatpush1.xpose.msra.mxu0 0.0
        %3755 = vmatprep.subr.mxu0 0.0
        %3756 = vmatpush1.xpose.msra.mxu0 0.0
        %3757 = vmatprep.mubr.f32.mxu0 0.0
        %3758 = vmatmul.mubr.f32.gmra.mrb[0].mxu0 %v3685
        %v3759 = vpop.f32.mrb[0].mxu0
        %v3760 = vadd.f32 0.0, %v3759
        %v3761 = vpop.f32.mrb[0].mxu0
        %3762 = vdwg.mxu0
        %v3763 = vmul.f32 %v3681, 0.35355338
        %v3764 = vmul.f32 %v3760, 0.35355338
        %v3765 = vsel %vm3604, 1, 0
        %vm3766 = vcmp.eq.s32.totalorder %v3765, 1
        %v3767 = vsel %vm3766, %v3763, -1e+30
        %v3768 = vsel %vm3766, %v3764, -1e+30
        %v3769 = vsel %vm3157, %v3767, -inf
        %3770 = vmax.xlane.f32.xlu0 %v3769
        %v3771 = vpop.xlane.xlu0 %3770
        %v3772 = vsel %vm3157, %v3768, -inf
        %3773 = vmax.xlane.f32.xlu0 %v3772
        %v3774 = vpop.xlane.xlu0 %3773
        %v3775 = vsub.f32 %v3767, %v3771
        %v3776 = vsub.f32 %v3768, %v3774
        %v3777 = vmul.f32 %v3775, 1.442695
        %v3778 = vpow.pop %v3777
        %v3779 = vmul.f32 %v3776, 1.442695
        %v3780 = vpow.pop %v3779
        %v3781 = vsel %vm3157, %v3778, 0.0
        %3782 = vadd.xlane.f32.xlu0 %v3781
        %v3783 = vpop.xlane.xlu0 %3782
        %v3784 = vsel %vm3157, %v3780, 0.0
        %3785 = vadd.xlane.f32.xlu0 %v3784
        %v3786 = vpop.xlane.xlu0 %3785
        %v3787 = vrcp.pop %v3783
        %v3788 = vmul.f32 %v3778, %v3787
        %v3789 = vrcp.pop %v3786
        %v3790 = vmul.f32 %v3780, %v3789
        %v3792 = vsel %vm3157, %v3788, 0
        %3794 = vmatprep.subr.mxu0 0.0
        %3795 = vmatpush1.msra.mxu0 %v3584
        %3796 = vmatprep.subr.mxu0 0.0
        %3797 = vmatpush1.msra.mxu0 %v3589
        %3798 = vmatprep.subr.mxu0 0.0
        %3799 = vmatpush1.msra.mxu0 0.0
        %3800 = vmatprep.subr.mxu0 0.0
        %3801 = vmatpush1.msra.mxu0 0.0
        %3802 = vmatprep.subr.mxu0 0.0
        %3803 = vmatpush1.msra.mxu0 0.0
        %3804 = vmatprep.subr.mxu0 0.0
        %3805 = vmatpush1.msra.mxu0 0.0
        %3806 = vmatprep.subr.mxu0 0.0
        %3807 = vmatpush1.msra.mxu0 0.0
        %3808 = vmatprep.subr.mxu0 0.0
        %3809 = vmatpush1.msra.mxu0 0.0
        %3810 = vmatprep.subr.mxu0 0.0
        %3811 = vmatpush1.msra.mxu0 0.0
        %3812 = vmatprep.subr.mxu0 0.0
        %3813 = vmatpush1.msra.mxu0 0.0
        %3814 = vmatprep.subr.mxu0 0.0
        %3815 = vmatpush1.msra.mxu0 0.0
        %3816 = vmatprep.subr.mxu0 0.0
        %3817 = vmatpush1.msra.mxu0 0.0
        %3818 = vmatprep.subr.mxu0 0.0
        %3819 = vmatpush1.msra.mxu0 0.0
        %3820 = vmatprep.subr.mxu0 0.0
        %3821 = vmatpush1.msra.mxu0 0.0
        %3822 = vmatprep.subr.mxu0 0.0
        %3823 = vmatpush1.msra.mxu0 0.0
        %3824 = vmatprep.subr.mxu0 0.0
        %3825 = vmatpush1.msra.mxu0 0.0
        %3826 = vmatprep.subr.mxu0 0.0
        %3827 = vmatpush1.msra.mxu0 0.0
        %3828 = vmatprep.subr.mxu0 0.0
        %3829 = vmatpush1.msra.mxu0 0.0
        %3830 = vmatprep.subr.mxu0 0.0
        %3831 = vmatpush1.msra.mxu0 0.0
        %3832 = vmatprep.subr.mxu0 0.0
        %3833 = vmatpush1.msra.mxu0 0.0
        %3834 = vmatprep.subr.mxu0 0.0
        %3835 = vmatpush1.msra.mxu0 0.0
        %3836 = vmatprep.subr.mxu0 0.0
        %3837 = vmatpush1.msra.mxu0 0.0
        %3838 = vmatprep.subr.mxu0 0.0
        %3839 = vmatpush1.msra.mxu0 0.0
        %3840 = vmatprep.subr.mxu0 0.0
        %3841 = vmatpush1.msra.mxu0 0.0
        %3842 = vmatprep.subr.mxu0 0.0
        %3843 = vmatpush1.msra.mxu0 0.0
        %3844 = vmatprep.subr.mxu0 0.0
        %3845 = vmatpush1.msra.mxu0 0.0
        %3846 = vmatprep.subr.mxu0 0.0
        %3847 = vmatpush1.msra.mxu0 0.0
        %3848 = vmatprep.subr.mxu0 0.0
        %3849 = vmatpush1.msra.mxu0 0.0
        %3850 = vmatprep.subr.mxu0 0.0
        %3851 = vmatpush1.msra.mxu0 0.0
        %3852 = vmatprep.subr.mxu0 0.0
        %3853 = vmatpush1.msra.mxu0 0.0
        %3854 = vmatprep.subr.mxu0 0.0
        %3855 = vmatpush1.msra.mxu0 0.0
        %3856 = vmatprep.subr.mxu0 0.0
        %3857 = vmatpush1.msra.mxu0 0.0
        %3858 = vmatprep.mubr.f32.mxu0 0.0
        %3859 = vmatmul.mubr.f32.gmra.mrb[0].mxu0 %v3792
        %v3860 = vpop.f32.mrb[0].mxu0
        %v3861 = vadd.f32 0.0, %v3860
        %v3862 = vpop.f32.mrb[0].mxu0
        %3863 = vdwg.mxu0
        %v3865 = vsel %vm3157, %v3790, 0
        %3867 = vmatprep.subr.mxu0 0.0
        %3868 = vmatpush1.msra.mxu0 %v3594
        %3869 = vmatprep.subr.mxu0 0.0
        %3870 = vmatpush1.msra.mxu0 %v3599
        %3871 = vmatprep.subr.mxu0 0.0
        %3872 = vmatpush1.msra.mxu0 0.0
        %3873 = vmatprep.subr.mxu0 0.0
        %3874 = vmatpush1.msra.mxu0 0.0
        %3875 = vmatprep.subr.mxu0 0.0
        %3876 = vmatpush1.msra.mxu0 0.0
        %3877 = vmatprep.subr.mxu0 0.0
        %3878 = vmatpush1.msra.mxu0 0.0
        %3879 = vmatprep.subr.mxu0 0.0
        %3880 = vmatpush1.msra.mxu0 0.0
        %3881 = vmatprep.subr.mxu0 0.0
        %3882 = vmatpush1.msra.mxu0 0.0
        %3883 = vmatprep.subr.mxu0 0.0
        %3884 = vmatpush1.msra.mxu0 0.0
        %3885 = vmatprep.subr.mxu0 0.0
        %3886 = vmatpush1.msra.mxu0 0.0
        %3887 = vmatprep.subr.mxu0 0.0
        %3888 = vmatpush1.msra.mxu0 0.0
        %3889 = vmatprep.subr.mxu0 0.0
        %3890 = vmatpush1.msra.mxu0 0.0
        %3891 = vmatprep.subr.mxu0 0.0
        %3892 = vmatpush1.msra.mxu0 0.0
        %3893 = vmatprep.subr.mxu0 0.0
        %3894 = vmatpush1.msra.mxu0 0.0
        %3895 = vmatprep.subr.mxu0 0.0
        %3896 = vmatpush1.msra.mxu0 0.0
        %3897 = vmatprep.subr.mxu0 0.0
        %3898 = vmatpush1.msra.mxu0 0.0
        %3899 = vmatprep.subr.mxu0 0.0
        %3900 = vmatpush1.msra.mxu0 0.0
        %3901 = vmatprep.subr.mxu0 0.0
        %3902 = vmatpush1.msra.mxu0 0.0
        %3903 = vmatprep.subr.mxu0 0.0
        %3904 = vmatpush1.msra.mxu0 0.0
        %3905 = vmatprep.subr.mxu0 0.0
        %3906 = vmatpush1.msra.mxu0 0.0
        %3907 = vmatprep.subr.mxu0 0.0
        %3908 = vmatpush1.msra.mxu0 0.0
        %3909 = vmatprep.subr.mxu0 0.0
        %3910 = vmatpush1.msra.mxu0 0.0
        %3911 = vmatprep.subr.mxu0 0.0
        %3912 = vmatpush1.msra.mxu0 0.0
        %3913 = vmatprep.subr.mxu0 0.0
        %3914 = vmatpush1.msra.mxu0 0.0
        %3915 = vmatprep.subr.mxu0 0.0
        %3916 = vmatpush1.msra.mxu0 0.0
        %3917 = vmatprep.subr.mxu0 0.0
        %3918 = vmatpush1.msra.mxu0 0.0
        %3919 = vmatprep.subr.mxu0 0.0
        %3920 = vmatpush1.msra.mxu0 0.0
        %3921 = vmatprep.subr.mxu0 0.0
        %3922 = vmatpush1.msra.mxu0 0.0
        %3923 = vmatprep.subr.mxu0 0.0
        %3924 = vmatpush1.msra.mxu0 0.0
        %3925 = vmatprep.subr.mxu0 0.0
        %3926 = vmatpush1.msra.mxu0 0.0
        %3927 = vmatprep.subr.mxu0 0.0
        %3928 = vmatpush1.msra.mxu0 0.0
        %3929 = vmatprep.subr.mxu0 0.0
        %3930 = vmatpush1.msra.mxu0 0.0
        %3931 = vmatprep.mubr.f32.mxu0 0.0
        %3932 = vmatmul.mubr.f32.gmra.mrb[0].mxu0 %v3865
        %v3933 = vpop.f32.mrb[0].mxu0
        %v3934 = vadd.f32 0.0, %v3933
        %v3935 = vpop.f32.mrb[0].mxu0
        %3936 = vdwg.mxu0
        %3937 = vrot.lane.b32.xlu0 %v3390, 120
        %v3938 = vpop.permute.xlu0 %3937
        %3939 = vrot.lane.b32.xlu0 %v3488, 120
        %v3940 = vpop.permute.xlu0 %3939
        %3941 = vrot.lane.b32.xlu0 %v3493, 120
        %v3942 = vpop.permute.xlu0 %3941
        %v3943 = vsel %vm1810, %v3938, 0
        %v3945 = vsel %vm1810, %v3940, 0
        %v3947 = vsel %vm1810, %v3942, 0
        %3949 = vmatprep.subr.mxu0 0.0
        %3950 = vmatpush1.xpose.msra.mxu0 %v3945
        %3951 = vmatprep.subr.mxu0 0.0
        %3952 = vmatpush1.xpose.msra.mxu0 %v3947
        %3953 = vmatprep.subr.mxu0 0.0
        %3954 = vmatpush1.xpose.msra.mxu0 0.0
        %3955 = vmatprep.subr.mxu0 0.0
        %3956 = vmatpush1.xpose.msra.mxu0 0.0
        %3957 = vmatprep.subr.mxu0 0.0
        %3958 = vmatpush1.xpose.msra.mxu0 0.0
        %3959 = vmatprep.subr.mxu0 0.0
        %3960 = vmatpush1.xpose.msra.mxu0 0.0
        %3961 = vmatprep.subr.mxu0 0.0
        %3962 = vmatpush1.xpose.msra.mxu0 0.0
        %3963 = vmatprep.subr.mxu0 0.0
        %3964 = vmatpush1.xpose.msra.mxu0 0.0
        %3965 = vmatprep.subr.mxu0 0.0
        %3966 = vmatpush1.xpose.msra.mxu0 0.0
        %3967 = vmatprep.subr.mxu0 0.0
        %3968 = vmatpush1.xpose.msra.mxu0 0.0
        %3969 = vmatprep.subr.mxu0 0.0
        %3970 = vmatpush1.xpose.msra.mxu0 0.0
        %3971 = vmatprep.subr.mxu0 0.0
        %3972 = vmatpush1.xpose.msra.mxu0 0.0
        %3973 = vmatprep.subr.mxu0 0.0
        %3974 = vmatpush1.xpose.msra.mxu0 0.0
        %3975 = vmatprep.subr.mxu0 0.0
        %3976 = vmatpush1.xpose.msra.mxu0 0.0
        %3977 = vmatprep.subr.mxu0 0.0
        %3978 = vmatpush1.xpose.msra.mxu0 0.0
        %3979 = vmatprep.subr.mxu0 0.0
        %3980 = vmatpush1.xpose.msra.mxu0 0.0
        %3981 = vmatprep.subr.mxu0 0.0
        %3982 = vmatpush1.xpose.msra.mxu0 0.0
        %3983 = vmatprep.subr.mxu0 0.0
        %3984 = vmatpush1.xpose.msra.mxu0 0.0
        %3985 = vmatprep.subr.mxu0 0.0
        %3986 = vmatpush1.xpose.msra.mxu0 0.0
        %3987 = vmatprep.subr.mxu0 0.0
        %3988 = vmatpush1.xpose.msra.mxu0 0.0
        %3989 = vmatprep.subr.mxu0 0.0
        %3990 = vmatpush1.xpose.msra.mxu0 0.0
        %3991 = vmatprep.subr.mxu0 0.0
        %3992 = vmatpush1.xpose.msra.mxu0 0.0
        %3993 = vmatprep.subr.mxu0 0.0
        %3994 = vmatpush1.xpose.msra.mxu0 0.0
        %3995 = vmatprep.subr.mxu0 0.0
        %3996 = vmatpush1.xpose.msra.mxu0 0.0
        %3997 = vmatprep.subr.mxu0 0.0
        %3998 = vmatpush1.xpose.msra.mxu0 0.0
        %3999 = vmatprep.subr.mxu0 0.0
        %4000 = vmatpush1.xpose.msra.mxu0 0.0
        %4001 = vmatprep.subr.mxu0 0.0
        %4002 = vmatpush1.xpose.msra.mxu0 0.0
        %4003 = vmatprep.subr.mxu0 0.0
        %4004 = vmatpush1.xpose.msra.mxu0 0.0
        %4005 = vmatprep.subr.mxu0 0.0
        %4006 = vmatpush1.xpose.msra.mxu0 0.0
        %4007 = vmatprep.subr.mxu0 0.0
        %4008 = vmatpush1.xpose.msra.mxu0 0.0
        %4009 = vmatprep.subr.mxu0 0.0
        %4010 = vmatpush1.xpose.msra.mxu0 0.0
        %4011 = vmatprep.subr.mxu0 0.0
        %4012 = vmatpush1.xpose.msra.mxu0 0.0
        %4013 = vmatprep.mubr.f32.mxu0 0.0
        %4014 = vmatmul.mubr.f32.gmra.mrb[0].mxu0 %v3943
        %v4015 = vpop.f32.mrb[0].mxu0
        %v4016 = vadd.f32 0.0, %v4015
        %v4017 = vpop.f32.mrb[0].mxu0
        %4018 = vdwg.mxu0
        %4019 = vrot.lane.b32.xlu0 %v3395, 120
        %v4020 = vpop.permute.xlu0 %4019
        %4021 = vrot.lane.b32.xlu0 %v3498, 120
        %v4022 = vpop.permute.xlu0 %4021
        %4023 = vrot.lane.b32.xlu0 %v3503, 120
        %v4024 = vpop.permute.xlu0 %4023
        %v4025 = vsel %vm1810, %v4020, 0
        %v4027 = vsel %vm1810, %v4022, 0
        %v4029 = vsel %vm1810, %v4024, 0
        %4031 = vmatprep.subr.mxu0 0.0
        %4032 = vmatpush1.xpose.msra.mxu0 %v4027
        %4033 = vmatprep.subr.mxu0 0.0
        %4034 = vmatpush1.xpose.msra.mxu0 %v4029
        %4035 = vmatprep.subr.mxu0 0.0
        %4036 = vmatpush1.xpose.msra.mxu0 0.0
        %4037 = vmatprep.subr.mxu0 0.0
        %4038 = vmatpush1.xpose.msra.mxu0 0.0
        %4039 = vmatprep.subr.mxu0 0.0
        %4040 = vmatpush1.xpose.msra.mxu0 0.0
        %4041 = vmatprep.subr.mxu0 0.0
        %4042 = vmatpush1.xpose.msra.mxu0 0.0
        %4043 = vmatprep.subr.mxu0 0.0
        %4044 = vmatpush1.xpose.msra.mxu0 0.0
        %4045 = vmatprep.subr.mxu0 0.0
        %4046 = vmatpush1.xpose.msra.mxu0 0.0
        %4047 = vmatprep.subr.mxu0 0.0
        %4048 = vmatpush1.xpose.msra.mxu0 0.0
        %4049 = vmatprep.subr.mxu0 0.0
        %4050 = vmatpush1.xpose.msra.mxu0 0.0
        %4051 = vmatprep.subr.mxu0 0.0
        %4052 = vmatpush1.xpose.msra.mxu0 0.0
        %4053 = vmatprep.subr.mxu0 0.0
        %4054 = vmatpush1.xpose.msra.mxu0 0.0
        %4055 = vmatprep.subr.mxu0 0.0
        %4056 = vmatpush1.xpose.msra.mxu0 0.0
        %4057 = vmatprep.subr.mxu0 0.0
        %4058 = vmatpush1.xpose.msra.mxu0 0.0
        %4059 = vmatprep.subr.mxu0 0.0
        %4060 = vmatpush1.xpose.msra.mxu0 0.0
        %4061 = vmatprep.subr.mxu0 0.0
        %4062 = vmatpush1.xpose.msra.mxu0 0.0
        %4063 = vmatprep.subr.mxu0 0.0
        %4064 = vmatpush1.xpose.msra.mxu0 0.0
        %4065 = vmatprep.subr.mxu0 0.0
        %4066 = vmatpush1.xpose.msra.mxu0 0.0
        %4067 = vmatprep.subr.mxu0 0.0
        %4068 = vmatpush1.xpose.msra.mxu0 0.0
        %4069 = vmatprep.subr.mxu0 0.0
        %4070 = vmatpush1.xpose.msra.mxu0 0.0
        %4071 = vmatprep.subr.mxu0 0.0
        %4072 = vmatpush1.xpose.msra.mxu0 0.0
        %4073 = vmatprep.subr.mxu0 0.0
        %4074 = vmatpush1.xpose.msra.mxu0 0.0
        %4075 = vmatprep.subr.mxu0 0.0
        %4076 = vmatpush1.xpose.msra.mxu0 0.0
        %4077 = vmatprep.subr.mxu0 0.0
        %4078 = vmatpush1.xpose.msra.mxu0 0.0
        %4079 = vmatprep.subr.mxu0 0.0
        %4080 = vmatpush1.xpose.msra.mxu0 0.0
        %4081 = vmatprep.subr.mxu0 0.0
        %4082 = vmatpush1.xpose.msra.mxu0 0.0
        %4083 = vmatprep.subr.mxu0 0.0
        %4084 = vmatpush1.xpose.msra.mxu0 0.0
        %4085 = vmatprep.subr.mxu0 0.0
        %4086 = vmatpush1.xpose.msra.mxu0 0.0
        %4087 = vmatprep.subr.mxu0 0.0
        %4088 = vmatpush1.xpose.msra.mxu0 0.0
        %4089 = vmatprep.subr.mxu0 0.0
        %4090 = vmatpush1.xpose.msra.mxu0 0.0
        %4091 = vmatprep.subr.mxu0 0.0
        %4092 = vmatpush1.xpose.msra.mxu0 0.0
        %4093 = vmatprep.subr.mxu0 0.0
        %4094 = vmatpush1.xpose.msra.mxu0 0.0
        %4095 = vmatprep.mubr.f32.mxu0 0.0
        %4096 = vmatmul.mubr.f32.gmra.mrb[0].mxu0 %v4025
        %v4097 = vpop.f32.mrb[0].mxu0
        %v4098 = vadd.f32 0.0, %v4097
        %v4099 = vpop.f32.mrb[0].mxu0
        %4100 = vdwg.mxu0
        %v4101 = vmul.f32 %v4016, 0.35355338
        %v4102 = vmul.f32 %v4098, 0.35355338
        %v4103 = vsel %vm3766, %v4101, -1e+30
        %v4104 = vsel %vm3766, %v4102, -1e+30
        %v4105 = vsel %vm3157, %v4103, -inf
        %4106 = vmax.xlane.f32.xlu0 %v4105
        %v4107 = vpop.xlane.xlu0 %4106
        %v4108 = vsel %vm3157, %v4104, -inf
        %4109 = vmax.xlane.f32.xlu0 %v4108
        %v4110 = vpop.xlane.xlu0 %4109
        %v4111 = vsub.f32 %v4103, %v4107
        %v4112 = vsub.f32 %v4104, %v4110
        %v4113 = vmul.f32 %v4111, 1.442695
        %v4114 = vpow.pop %v4113
        %v4115 = vmul.f32 %v4112, 1.442695
        %v4116 = vpow.pop %v4115
        %v4117 = vsel %vm3157, %v4114, 0.0
        %4118 = vadd.xlane.f32.xlu0 %v4117
        %v4119 = vpop.xlane.xlu0 %4118
        %v4120 = vsel %vm3157, %v4116, 0.0
        %4121 = vadd.xlane.f32.xlu0 %v4120
        %v4122 = vpop.xlane.xlu0 %4121
        %v4123 = vrcp.pop %v4119
        %v4124 = vmul.f32 %v4114, %v4123
        %v4125 = vrcp.pop %v4122
        %v4126 = vmul.f32 %v4116, %v4125
        %4129 = vrot.lane.b32.xlu0 %v3584, 120
        %v4130 = vpop.permute.xlu0 %4129
        %4131 = vrot.lane.b32.xlu0 %v3589, 120
        %v4132 = vpop.permute.xlu0 %4131
        %v4136 = vsel %vm3157, %v4124, 0
        %4138 = vmatprep.subr.mxu0 0.0
        %4139 = vmatpush1.msra.mxu0 %v4130
        %4140 = vmatprep.subr.mxu0 0.0
        %4141 = vmatpush1.msra.mxu0 %v4132
        %4142 = vmatprep.subr.mxu0 0.0
        %4143 = vmatpush1.msra.mxu0 0.0
        %4144 = vmatprep.subr.mxu0 0.0
        %4145 = vmatpush1.msra.mxu0 0.0
        %4146 = vmatprep.subr.mxu0 0.0
        %4147 = vmatpush1.msra.mxu0 0.0
        %4148 = vmatprep.subr.mxu0 0.0
        %4149 = vmatpush1.msra.mxu0 0.0
        %4150 = vmatprep.subr.mxu0 0.0
        %4151 = vmatpush1.msra.mxu0 0.0
        %4152 = vmatprep.subr.mxu0 0.0
        %4153 = vmatpush1.msra.mxu0 0.0
        %4154 = vmatprep.subr.mxu0 0.0
        %4155 = vmatpush1.msra.mxu0 0.0
        %4156 = vmatprep.subr.mxu0 0.0
        %4157 = vmatpush1.msra.mxu0 0.0
        %4158 = vmatprep.subr.mxu0 0.0
        %4159 = vmatpush1.msra.mxu0 0.0
        %4160 = vmatprep.subr.mxu0 0.0
        %4161 = vmatpush1.msra.mxu0 0.0
        %4162 = vmatprep.subr.mxu0 0.0
        %4163 = vmatpush1.msra.mxu0 0.0
        %4164 = vmatprep.subr.mxu0 0.0
        %4165 = vmatpush1.msra.mxu0 0.0
        %4166 = vmatprep.subr.mxu0 0.0
        %4167 = vmatpush1.msra.mxu0 0.0
        %4168 = vmatprep.subr.mxu0 0.0
        %4169 = vmatpush1.msra.mxu0 0.0
        %4170 = vmatprep.subr.mxu0 0.0
        %4171 = vmatpush1.msra.mxu0 0.0
        %4172 = vmatprep.subr.mxu0 0.0
        %4173 = vmatpush1.msra.mxu0 0.0
        %4174 = vmatprep.subr.mxu0 0.0
        %4175 = vmatpush1.msra.mxu0 0.0
        %4176 = vmatprep.subr.mxu0 0.0
        %4177 = vmatpush1.msra.mxu0 0.0
        %4178 = vmatprep.subr.mxu0 0.0
        %4179 = vmatpush1.msra.mxu0 0.0
        %4180 = vmatprep.subr.mxu0 0.0
        %4181 = vmatpush1.msra.mxu0 0.0
        %4182 = vmatprep.subr.mxu0 0.0
        %4183 = vmatpush1.msra.mxu0 0.0
        %4184 = vmatprep.subr.mxu0 0.0
        %4185 = vmatpush1.msra.mxu0 0.0
        %4186 = vmatprep.subr.mxu0 0.0
        %4187 = vmatpush1.msra.mxu0 0.0
        %4188 = vmatprep.subr.mxu0 0.0
        %4189 = vmatpush1.msra.mxu0 0.0
        %4190 = vmatprep.subr.mxu0 0.0
        %4191 = vmatpush1.msra.mxu0 0.0
        %4192 = vmatprep.subr.mxu0 0.0
        %4193 = vmatpush1.msra.mxu0 0.0
        %4194 = vmatprep.subr.mxu0 0.0
        %4195 = vmatpush1.msra.mxu0 0.0
        %4196 = vmatprep.subr.mxu0 0.0
        %4197 = vmatpush1.msra.mxu0 0.0
        %4198 = vmatprep.subr.mxu0 0.0
        %4199 = vmatpush1.msra.mxu0 0.0
        %4200 = vmatprep.subr.mxu0 0.0
        %4201 = vmatpush1.msra.mxu0 0.0
        %4202 = vmatprep.mubr.f32.mxu0 0.0
        %4203 = vmatmul.mubr.f32.gmra.mrb[0].mxu0 %v4136
        %v4204 = vpop.f32.mrb[0].mxu0
        %v4205 = vadd.f32 0.0, %v4204
        %v4206 = vpop.f32.mrb[0].mxu0
        %4207 = vdwg.mxu0
        %4210 = vrot.lane.b32.xlu0 %v3594, 120
        %v4211 = vpop.permute.xlu0 %4210
        %4212 = vrot.lane.b32.xlu0 %v3599, 120
        %v4213 = vpop.permute.xlu0 %4212
        %v4217 = vsel %vm3157, %v4126, 0
        %4219 = vmatprep.subr.mxu0 0.0
        %4220 = vmatpush1.msra.mxu0 %v4211
        %4221 = vmatprep.subr.mxu0 0.0
        %4222 = vmatpush1.msra.mxu0 %v4213
        %4223 = vmatprep.subr.mxu0 0.0
        %4224 = vmatpush1.msra.mxu0 0.0
        %4225 = vmatprep.subr.mxu0 0.0
        %4226 = vmatpush1.msra.mxu0 0.0
        %4227 = vmatprep.subr.mxu0 0.0
        %4228 = vmatpush1.msra.mxu0 0.0
        %4229 = vmatprep.subr.mxu0 0.0
        %4230 = vmatpush1.msra.mxu0 0.0
        %4231 = vmatprep.subr.mxu0 0.0
        %4232 = vmatpush1.msra.mxu0 0.0
        %4233 = vmatprep.subr.mxu0 0.0
        %4234 = vmatpush1.msra.mxu0 0.0
        %4235 = vmatprep.subr.mxu0 0.0
        %4236 = vmatpush1.msra.mxu0 0.0
        %4237 = vmatprep.subr.mxu0 0.0
        %4238 = vmatpush1.msra.mxu0 0.0
        %4239 = vmatprep.subr.mxu0 0.0
        %4240 = vmatpush1.msra.mxu0 0.0
        %4241 = vmatprep.subr.mxu0 0.0
        %4242 = vmatpush1.msra.mxu0 0.0
        %4243 = vmatprep.subr.mxu0 0.0
        %4244 = vmatpush1.msra.mxu0 0.0
        %4245 = vmatprep.subr.mxu0 0.0
        %4246 = vmatpush1.msra.mxu0 0.0
        %4247 = vmatprep.subr.mxu0 0.0
        %4248 = vmatpush1.msra.mxu0 0.0
        %4249 = vmatprep.subr.mxu0 0.0
        %4250 = vmatpush1.msra.mxu0 0.0
        %4251 = vmatprep.subr.mxu0 0.0
        %4252 = vmatpush1.msra.mxu0 0.0
        %4253 = vmatprep.subr.mxu0 0.0
        %4254 = vmatpush1.msra.mxu0 0.0
        %4255 = vmatprep.subr.mxu0 0.0
        %4256 = vmatpush1.msra.mxu0 0.0
        %4257 = vmatprep.subr.mxu0 0.0
        %4258 = vmatpush1.msra.mxu0 0.0
        %4259 = vmatprep.subr.mxu0 0.0
        %4260 = vmatpush1.msra.mxu0 0.0
        %4261 = vmatprep.subr.mxu0 0.0
        %4262 = vmatpush1.msra.mxu0 0.0
        %4263 = vmatprep.subr.mxu0 0.0
        %4264 = vmatpush1.msra.mxu0 0.0
        %4265 = vmatprep.subr.mxu0 0.0
        %4266 = vmatpush1.msra.mxu0 0.0
        %4267 = vmatprep.subr.mxu0 0.0
        %4268 = vmatpush1.msra.mxu0 0.0
        %4269 = vmatprep.subr.mxu0 0.0
        %4270 = vmatpush1.msra.mxu0 0.0
        %4271 = vmatprep.subr.mxu0 0.0
        %4272 = vmatpush1.msra.mxu0 0.0
        %4273 = vmatprep.subr.mxu0 0.0
        %4274 = vmatpush1.msra.mxu0 0.0
        %4275 = vmatprep.subr.mxu0 0.0
        %4276 = vmatpush1.msra.mxu0 0.0
        %4277 = vmatprep.subr.mxu0 0.0
        %4278 = vmatpush1.msra.mxu0 0.0
        %4279 = vmatprep.subr.mxu0 0.0
        %4280 = vmatpush1.msra.mxu0 0.0
        %4281 = vmatprep.subr.mxu0 0.0
        %4282 = vmatpush1.msra.mxu0 0.0
        %4283 = vmatprep.mubr.f32.mxu0 0.0
        %4284 = vmatmul.mubr.f32.gmra.mrb[0].mxu0 %v4217
        %v4285 = vpop.f32.mrb[0].mxu0
        %v4286 = vadd.f32 0.0, %v4285
        %v4287 = vpop.f32.mrb[0].mxu0
        %4288 = vdwg.mxu0
        %4289 = vrot.lane.b32.xlu0 %v3390, 112
        %v4290 = vpop.permute.xlu0 %4289
        %4291 = vrot.lane.b32.xlu0 %v3488, 112
        %v4292 = vpop.permute.xlu0 %4291
        %4293 = vrot.lane.b32.xlu0 %v3493, 112
        %v4294 = vpop.permute.xlu0 %4293
        %v4295 = vsel %vm1810, %v4290, 0
        %v4297 = vsel %vm1810, %v4292, 0
        %v4299 = vsel %vm1810, %v4294, 0
        %4301 = vmatprep.subr.mxu0 0.0
        %4302 = vmatpush1.xpose.msra.mxu0 %v4297
        %4303 = vmatprep.subr.mxu0 0.0
        %4304 = vmatpush1.xpose.msra.mxu0 %v4299
        %4305 = vmatprep.subr.mxu0 0.0
        %4306 = vmatpush1.xpose.msra.mxu0 0.0
        %4307 = vmatprep.subr.mxu0 0.0
        %4308 = vmatpush1.xpose.msra.mxu0 0.0
        %4309 = vmatprep.subr.mxu0 0.0
        %4310 = vmatpush1.xpose.msra.mxu0 0.0
        %4311 = vmatprep.subr.mxu0 0.0
        %4312 = vmatpush1.xpose.msra.mxu0 0.0
        %4313 = vmatprep.subr.mxu0 0.0
        %4314 = vmatpush1.xpose.msra.mxu0 0.0
        %4315 = vmatprep.subr.mxu0 0.0
        %4316 = vmatpush1.xpose.msra.mxu0 0.0
        %4317 = vmatprep.subr.mxu0 0.0
        %4318 = vmatpush1.xpose.msra.mxu0 0.0
        %4319 = vmatprep.subr.mxu0 0.0
        %4320 = vmatpush1.xpose.msra.mxu0 0.0
        %4321 = vmatprep.subr.mxu0 0.0
        %4322 = vmatpush1.xpose.msra.mxu0 0.0
        %4323 = vmatprep.subr.mxu0 0.0
        %4324 = vmatpush1.xpose.msra.mxu0 0.0
        %4325 = vmatprep.subr.mxu0 0.0
        %4326 = vmatpush1.xpose.msra.mxu0 0.0
        %4327 = vmatprep.subr.mxu0 0.0
        %4328 = vmatpush1.xpose.msra.mxu0 0.0
        %4329 = vmatprep.subr.mxu0 0.0
        %4330 = vmatpush1.xpose.msra.mxu0 0.0
        %4331 = vmatprep.subr.mxu0 0.0
        %4332 = vmatpush1.xpose.msra.mxu0 0.0
        %4333 = vmatprep.subr.mxu0 0.0
        %4334 = vmatpush1.xpose.msra.mxu0 0.0
        %4335 = vmatprep.subr.mxu0 0.0
        %4336 = vmatpush1.xpose.msra.mxu0 0.0
        %4337 = vmatprep.subr.mxu0 0.0
        %4338 = vmatpush1.xpose.msra.mxu0 0.0
        %4339 = vmatprep.subr.mxu0 0.0
        %4340 = vmatpush1.xpose.msra.mxu0 0.0
        %4341 = vmatprep.subr.mxu0 0.0
        %4342 = vmatpush1.xpose.msra.mxu0 0.0
        %4343 = vmatprep.subr.mxu0 0.0
        %4344 = vmatpush1.xpose.msra.mxu0 0.0
        %4345 = vmatprep.subr.mxu0 0.0
        %4346 = vmatpush1.xpose.msra.mxu0 0.0
        %4347 = vmatprep.subr.mxu0 0.0
        %4348 = vmatpush1.xpose.msra.mxu0 0.0
        %4349 = vmatprep.subr.mxu0 0.0
        %4350 = vmatpush1.xpose.msra.mxu0 0.0
        %4351 = vmatprep.subr.mxu0 0.0
        %4352 = vmatpush1.xpose.msra.mxu0 0.0
        %4353 = vmatprep.subr.mxu0 0.0
        %4354 = vmatpush1.xpose.msra.mxu0 0.0
        %4355 = vmatprep.subr.mxu0 0.0
        %4356 = vmatpush1.xpose.msra.mxu0 0.0
        %4357 = vmatprep.subr.mxu0 0.0
        %4358 = vmatpush1.xpose.msra.mxu0 0.0
        %4359 = vmatprep.subr.mxu0 0.0
        %4360 = vmatpush1.xpose.msra.mxu0 0.0
        %4361 = vmatprep.subr.mxu0 0.0
        %4362 = vmatpush1.xpose.msra.mxu0 0.0
        %4363 = vmatprep.subr.mxu0 0.0
        %4364 = vmatpush1.xpose.msra.mxu0 0.0
        %4365 = vmatprep.mubr.f32.mxu0 0.0
        %4366 = vmatmul.mubr.f32.gmra.mrb[0].mxu0 %v4295
        %v4367 = vpop.f32.mrb[0].mxu0
        %v4368 = vadd.f32 0.0, %v4367
        %v4369 = vpop.f32.mrb[0].mxu0
        %4370 = vdwg.mxu0
        %4371 = vrot.lane.b32.xlu0 %v3395, 112
        %v4372 = vpop.permute.xlu0 %4371
        %4373 = vrot.lane.b32.xlu0 %v3498, 112
        %v4374 = vpop.permute.xlu0 %4373
        %4375 = vrot.lane.b32.xlu0 %v3503, 112
        %v4376 = vpop.permute.xlu0 %4375
        %v4377 = vsel %vm1810, %v4372, 0
        %v4379 = vsel %vm1810, %v4374, 0
        %v4381 = vsel %vm1810, %v4376, 0
        %4383 = vmatprep.subr.mxu0 0.0
        %4384 = vmatpush1.xpose.msra.mxu0 %v4379
        %4385 = vmatprep.subr.mxu0 0.0
        %4386 = vmatpush1.xpose.msra.mxu0 %v4381
        %4387 = vmatprep.subr.mxu0 0.0
        %4388 = vmatpush1.xpose.msra.mxu0 0.0
        %4389 = vmatprep.subr.mxu0 0.0
        %4390 = vmatpush1.xpose.msra.mxu0 0.0
        %4391 = vmatprep.subr.mxu0 0.0
        %4392 = vmatpush1.xpose.msra.mxu0 0.0
        %4393 = vmatprep.subr.mxu0 0.0
        %4394 = vmatpush1.xpose.msra.mxu0 0.0
        %4395 = vmatprep.subr.mxu0 0.0
        %4396 = vmatpush1.xpose.msra.mxu0 0.0
        %4397 = vmatprep.subr.mxu0 0.0
        %4398 = vmatpush1.xpose.msra.mxu0 0.0
        %4399 = vmatprep.subr.mxu0 0.0
        %4400 = vmatpush1.xpose.msra.mxu0 0.0
        %4401 = vmatprep.subr.mxu0 0.0
        %4402 = vmatpush1.xpose.msra.mxu0 0.0
        %4403 = vmatprep.subr.mxu0 0.0
        %4404 = vmatpush1.xpose.msra.mxu0 0.0
        %4405 = vmatprep.subr.mxu0 0.0
        %4406 = vmatpush1.xpose.msra.mxu0 0.0
        %4407 = vmatprep.subr.mxu0 0.0
        %4408 = vmatpush1.xpose.msra.mxu0 0.0
        %4409 = vmatprep.subr.mxu0 0.0
        %4410 = vmatpush1.xpose.msra.mxu0 0.0
        %4411 = vmatprep.subr.mxu0 0.0
        %4412 = vmatpush1.xpose.msra.mxu0 0.0
        %4413 = vmatprep.subr.mxu0 0.0
        %4414 = vmatpush1.xpose.msra.mxu0 0.0
        %4415 = vmatprep.subr.mxu0 0.0
        %4416 = vmatpush1.xpose.msra.mxu0 0.0
        %4417 = vmatprep.subr.mxu0 0.0
        %4418 = vmatpush1.xpose.msra.mxu0 0.0
        %4419 = vmatprep.subr.mxu0 0.0
        %4420 = vmatpush1.xpose.msra.mxu0 0.0
        %4421 = vmatprep.subr.mxu0 0.0
        %4422 = vmatpush1.xpose.msra.mxu0 0.0
        %4423 = vmatprep.subr.mxu0 0.0
        %4424 = vmatpush1.xpose.msra.mxu0 0.0
        %4425 = vmatprep.subr.mxu0 0.0
        %4426 = vmatpush1.xpose.msra.mxu0 0.0
        %4427 = vmatprep.subr.mxu0 0.0
        %4428 = vmatpush1.xpose.msra.mxu0 0.0
        %4429 = vmatprep.subr.mxu0 0.0
        %4430 = vmatpush1.xpose.msra.mxu0 0.0
        %4431 = vmatprep.subr.mxu0 0.0
        %4432 = vmatpush1.xpose.msra.mxu0 0.0
        %4433 = vmatprep.subr.mxu0 0.0
        %4434 = vmatpush1.xpose.msra.mxu0 0.0
        %4435 = vmatprep.subr.mxu0 0.0
        %4436 = vmatpush1.xpose.msra.mxu0 0.0
        %4437 = vmatprep.subr.mxu0 0.0
        %4438 = vmatpush1.xpose.msra.mxu0 0.0
        %4439 = vmatprep.subr.mxu0 0.0
        %4440 = vmatpush1.xpose.msra.mxu0 0.0
        %4441 = vmatprep.subr.mxu0 0.0
        %4442 = vmatpush1.xpose.msra.mxu0 0.0
        %4443 = vmatprep.subr.mxu0 0.0
        %4444 = vmatpush1.xpose.msra.mxu0 0.0
        %4445 = vmatprep.subr.mxu0 0.0
        %4446 = vmatpush1.xpose.msra.mxu0 0.0
        %4447 = vmatprep.mubr.f32.mxu0 0.0
        %4448 = vmatmul.mubr.f32.gmra.mrb[0].mxu0 %v4377
        %v4449 = vpop.f32.mrb[0].mxu0
        %v4450 = vadd.f32 0.0, %v4449
        %v4451 = vpop.f32.mrb[0].mxu0
        %4452 = vdwg.mxu0
        %v4453 = vmul.f32 %v4368, 0.35355338
        %v4454 = vmul.f32 %v4450, 0.35355338
        %v4455 = vsel %vm3766, %v4453, -1e+30
        %v4456 = vsel %vm3766, %v4454, -1e+30
        %v4457 = vsel %vm3157, %v4455, -inf
        %4458 = vmax.xlane.f32.xlu0 %v4457
        %v4459 = vpop.xlane.xlu0 %4458
        %v4460 = vsel %vm3157, %v4456, -inf
        %4461 = vmax.xlane.f32.xlu0 %v4460
        %v4462 = vpop.xlane.xlu0 %4461
        %v4463 = vsub.f32 %v4455, %v4459
        %v4464 = vsub.f32 %v4456, %v4462
        %v4465 = vmul.f32 %v4463, 1.442695
        %v4466 = vpow.pop %v4465
        %v4467 = vmul.f32 %v4464, 1.442695
        %v4468 = vpow.pop %v4467
        %v4469 = vsel %vm3157, %v4466, 0.0
        %4470 = vadd.xlane.f32.xlu0 %v4469
        %v4471 = vpop.xlane.xlu0 %4470
        %v4472 = vsel %vm3157, %v4468, 0.0
        %4473 = vadd.xlane.f32.xlu0 %v4472
        %v4474 = vpop.xlane.xlu0 %4473
        %v4475 = vrcp.pop %v4471
        %v4476 = vmul.f32 %v4466, %v4475
        %v4477 = vrcp.pop %v4474
        %v4478 = vmul.f32 %v4468, %v4477
        %4479 = vrot.lane.b32.xlu0 %v3584, 112
        %v4480 = vpop.permute.xlu0 %4479
        %4481 = vrot.lane.b32.xlu0 %v3589, 112
        %v4482 = vpop.permute.xlu0 %4481
        %v4486 = vsel %vm3157, %v4476, 0
        %4488 = vmatprep.subr.mxu0 0.0
        %4489 = vmatpush1.msra.mxu0 %v4480
        %4490 = vmatprep.subr.mxu0 0.0
        %4491 = vmatpush1.msra.mxu0 %v4482
        %4492 = vmatprep.subr.mxu0 0.0
        %4493 = vmatpush1.msra.mxu0 0.0
        %4494 = vmatprep.subr.mxu0 0.0
        %4495 = vmatpush1.msra.mxu0 0.0
        %4496 = vmatprep.subr.mxu0 0.0
        %4497 = vmatpush1.msra.mxu0 0.0
        %4498 = vmatprep.subr.mxu0 0.0
        %4499 = vmatpush1.msra.mxu0 0.0
        %4500 = vmatprep.subr.mxu0 0.0
        %4501 = vmatpush1.msra.mxu0 0.0
        %4502 = vmatprep.subr.mxu0 0.0
        %4503 = vmatpush1.msra.mxu0 0.0
        %4504 = vmatprep.subr.mxu0 0.0
        %4505 = vmatpush1.msra.mxu0 0.0
        %4506 = vmatprep.subr.mxu0 0.0
        %4507 = vmatpush1.msra.mxu0 0.0
        %4508 = vmatprep.subr.mxu0 0.0
        %4509 = vmatpush1.msra.mxu0 0.0
        %4510 = vmatprep.subr.mxu0 0.0
        %4511 = vmatpush1.msra.mxu0 0.0
        %4512 = vmatprep.subr.mxu0 0.0
        %4513 = vmatpush1.msra.mxu0 0.0
        %4514 = vmatprep.subr.mxu0 0.0
        %4515 = vmatpush1.msra.mxu0 0.0
        %4516 = vmatprep.subr.mxu0 0.0
        %4517 = vmatpush1.msra.mxu0 0.0
        %4518 = vmatprep.subr.mxu0 0.0
        %4519 = vmatpush1.msra.mxu0 0.0
        %4520 = vmatprep.subr.mxu0 0.0
        %4521 = vmatpush1.msra.mxu0 0.0
        %4522 = vmatprep.subr.mxu0 0.0
        %4523 = vmatpush1.msra.mxu0 0.0
        %4524 = vmatprep.subr.mxu0 0.0
        %4525 = vmatpush1.msra.mxu0 0.0
        %4526 = vmatprep.subr.mxu0 0.0
        %4527 = vmatpush1.msra.mxu0 0.0
        %4528 = vmatprep.subr.mxu0 0.0
        %4529 = vmatpush1.msra.mxu0 0.0
        %4530 = vmatprep.subr.mxu0 0.0
        %4531 = vmatpush1.msra.mxu0 0.0
        %4532 = vmatprep.subr.mxu0 0.0
        %4533 = vmatpush1.msra.mxu0 0.0
        %4534 = vmatprep.subr.mxu0 0.0
        %4535 = vmatpush1.msra.mxu0 0.0
        %4536 = vmatprep.subr.mxu0 0.0
        %4537 = vmatpush1.msra.mxu0 0.0
        %4538 = vmatprep.subr.mxu0 0.0
        %4539 = vmatpush1.msra.mxu0 0.0
        %4540 = vmatprep.subr.mxu0 0.0
        %4541 = vmatpush1.msra.mxu0 0.0
        %4542 = vmatprep.subr.mxu0 0.0
        %4543 = vmatpush1.msra.mxu0 0.0
        %4544 = vmatprep.subr.mxu0 0.0
        %4545 = vmatpush1.msra.mxu0 0.0
        %4546 = vmatprep.subr.mxu0 0.0
        %4547 = vmatpush1.msra.mxu0 0.0
        %4548 = vmatprep.subr.mxu0 0.0
        %4549 = vmatpush1.msra.mxu0 0.0
        %4550 = vmatprep.subr.mxu0 0.0
        %4551 = vmatpush1.msra.mxu0 0.0
        %4552 = vmatprep.mubr.f32.mxu0 0.0
        %4553 = vmatmul.mubr.f32.gmra.mrb[0].mxu0 %v4486
        %v4554 = vpop.f32.mrb[0].mxu0
        %v4555 = vadd.f32 0.0, %v4554
        %v4556 = vpop.f32.mrb[0].mxu0
        %4557 = vdwg.mxu0
        %4558 = vrot.lane.b32.xlu0 %v3594, 112
        %v4559 = vpop.permute.xlu0 %4558
        %4560 = vrot.lane.b32.xlu0 %v3599, 112
        %v4561 = vpop.permute.xlu0 %4560
        %v4565 = vsel %vm3157, %v4478, 0
        %4567 = vmatprep.subr.mxu0 0.0
        %4568 = vmatpush1.msra.mxu0 %v4559
        %4569 = vmatprep.subr.mxu0 0.0
        %4570 = vmatpush1.msra.mxu0 %v4561
        %4571 = vmatprep.subr.mxu0 0.0
        %4572 = vmatpush1.msra.mxu0 0.0
        %4573 = vmatprep.subr.mxu0 0.0
        %4574 = vmatpush1.msra.mxu0 0.0
        %4575 = vmatprep.subr.mxu0 0.0
        %4576 = vmatpush1.msra.mxu0 0.0
        %4577 = vmatprep.subr.mxu0 0.0
        %4578 = vmatpush1.msra.mxu0 0.0
        %4579 = vmatprep.subr.mxu0 0.0
        %4580 = vmatpush1.msra.mxu0 0.0
        %4581 = vmatprep.subr.mxu0 0.0
        %4582 = vmatpush1.msra.mxu0 0.0
        %4583 = vmatprep.subr.mxu0 0.0
        %4584 = vmatpush1.msra.mxu0 0.0
        %4585 = vmatprep.subr.mxu0 0.0
        %4586 = vmatpush1.msra.mxu0 0.0
        %4587 = vmatprep.subr.mxu0 0.0
        %4588 = vmatpush1.msra.mxu0 0.0
        %4589 = vmatprep.subr.mxu0 0.0
        %4590 = vmatpush1.msra.mxu0 0.0
        %4591 = vmatprep.subr.mxu0 0.0
        %4592 = vmatpush1.msra.mxu0 0.0
        %4593 = vmatprep.subr.mxu0 0.0
        %4594 = vmatpush1.msra.mxu0 0.0
        %4595 = vmatprep.subr.mxu0 0.0
        %4596 = vmatpush1.msra.mxu0 0.0
        %4597 = vmatprep.subr.mxu0 0.0
        %4598 = vmatpush1.msra.mxu0 0.0
        %4599 = vmatprep.subr.mxu0 0.0
        %4600 = vmatpush1.msra.mxu0 0.0
        %4601 = vmatprep.subr.mxu0 0.0
        %4602 = vmatpush1.msra.mxu0 0.0
        %4603 = vmatprep.subr.mxu0 0.0
        %4604 = vmatpush1.msra.mxu0 0.0
        %4605 = vmatprep.subr.mxu0 0.0
        %4606 = vmatpush1.msra.mxu0 0.0
        %4607 = vmatprep.subr.mxu0 0.0
        %4608 = vmatpush1.msra.mxu0 0.0
        %4609 = vmatprep.subr.mxu0 0.0
        %4610 = vmatpush1.msra.mxu0 0.0
        %4611 = vmatprep.subr.mxu0 0.0
        %4612 = vmatpush1.msra.mxu0 0.0
        %4613 = vmatprep.subr.mxu0 0.0
        %4614 = vmatpush1.msra.mxu0 0.0
        %4615 = vmatprep.subr.mxu0 0.0
        %4616 = vmatpush1.msra.mxu0 0.0
        %4617 = vmatprep.subr.mxu0 0.0
        %4618 = vmatpush1.msra.mxu0 0.0
        %4619 = vmatprep.subr.mxu0 0.0
        %4620 = vmatpush1.msra.mxu0 0.0
        %4621 = vmatprep.subr.mxu0 0.0
        %4622 = vmatpush1.msra.mxu0 0.0
        %4623 = vmatprep.subr.mxu0 0.0
        %4624 = vmatpush1.msra.mxu0 0.0
        %4625 = vmatprep.subr.mxu0 0.0
        %4626 = vmatpush1.msra.mxu0 0.0
        %4627 = vmatprep.subr.mxu0 0.0
        %4628 = vmatpush1.msra.mxu0 0.0
        %4629 = vmatprep.subr.mxu0 0.0
        %4630 = vmatpush1.msra.mxu0 0.0
        %4631 = vmatprep.mubr.f32.mxu0 0.0
        %4632 = vmatmul.mubr.f32.gmra.mrb[0].mxu0 %v4565
        %v4633 = vpop.f32.mrb[0].mxu0
        %v4634 = vadd.f32 0.0, %v4633
        %v4635 = vpop.f32.mrb[0].mxu0
        %4636 = vdwg.mxu0
        %4637 = vrot.lane.b32.xlu0 %v3390, 104
        %v4638 = vpop.permute.xlu0 %4637
        %4639 = vrot.lane.b32.xlu0 %v3488, 104
        %v4640 = vpop.permute.xlu0 %4639
        %4641 = vrot.lane.b32.xlu0 %v3493, 104
        %v4642 = vpop.permute.xlu0 %4641
        %v4643 = vsel %vm1810, %v4638, 0
        %v4645 = vsel %vm1810, %v4640, 0
        %v4647 = vsel %vm1810, %v4642, 0
        %4649 = vmatprep.subr.mxu0 0.0
        %4650 = vmatpush1.xpose.msra.mxu0 %v4645
        %4651 = vmatprep.subr.mxu0 0.0
        %4652 = vmatpush1.xpose.msra.mxu0 %v4647
        %4653 = vmatprep.subr.mxu0 0.0
        %4654 = vmatpush1.xpose.msra.mxu0 0.0
        %4655 = vmatprep.subr.mxu0 0.0
        %4656 = vmatpush1.xpose.msra.mxu0 0.0
        %4657 = vmatprep.subr.mxu0 0.0
        %4658 = vmatpush1.xpose.msra.mxu0 0.0
        %4659 = vmatprep.subr.mxu0 0.0
        %4660 = vmatpush1.xpose.msra.mxu0 0.0
        %4661 = vmatprep.subr.mxu0 0.0
        %4662 = vmatpush1.xpose.msra.mxu0 0.0
        %4663 = vmatprep.subr.mxu0 0.0
        %4664 = vmatpush1.xpose.msra.mxu0 0.0
        %4665 = vmatprep.subr.mxu0 0.0
        %4666 = vmatpush1.xpose.msra.mxu0 0.0
        %4667 = vmatprep.subr.mxu0 0.0
        %4668 = vmatpush1.xpose.msra.mxu0 0.0
        %4669 = vmatprep.subr.mxu0 0.0
        %4670 = vmatpush1.xpose.msra.mxu0 0.0
        %4671 = vmatprep.subr.mxu0 0.0
        %4672 = vmatpush1.xpose.msra.mxu0 0.0
        %4673 = vmatprep.subr.mxu0 0.0
        %4674 = vmatpush1.xpose.msra.mxu0 0.0
        %4675 = vmatprep.subr.mxu0 0.0
        %4676 = vmatpush1.xpose.msra.mxu0 0.0
        %4677 = vmatprep.subr.mxu0 0.0
        %4678 = vmatpush1.xpose.msra.mxu0 0.0
        %4679 = vmatprep.subr.mxu0 0.0
        %4680 = vmatpush1.xpose.msra.mxu0 0.0
        %4681 = vmatprep.subr.mxu0 0.0
        %4682 = vmatpush1.xpose.msra.mxu0 0.0
        %4683 = vmatprep.subr.mxu0 0.0
        %4684 = vmatpush1.xpose.msra.mxu0 0.0
        %4685 = vmatprep.subr.mxu0 0.0
        %4686 = vmatpush1.xpose.msra.mxu0 0.0
        %4687 = vmatprep.subr.mxu0 0.0
        %4688 = vmatpush1.xpose.msra.mxu0 0.0
        %4689 = vmatprep.subr.mxu0 0.0
        %4690 = vmatpush1.xpose.msra.mxu0 0.0
        %4691 = vmatprep.subr.mxu0 0.0
        %4692 = vmatpush1.xpose.msra.mxu0 0.0
        %4693 = vmatprep.subr.mxu0 0.0
        %4694 = vmatpush1.xpose.msra.mxu0 0.0
        %4695 = vmatprep.subr.mxu0 0.0
        %4696 = vmatpush1.xpose.msra.mxu0 0.0
        %4697 = vmatprep.subr.mxu0 0.0
        %4698 = vmatpush1.xpose.msra.mxu0 0.0
        %4699 = vmatprep.subr.mxu0 0.0
        %4700 = vmatpush1.xpose.msra.mxu0 0.0
        %4701 = vmatprep.subr.mxu0 0.0
        %4702 = vmatpush1.xpose.msra.mxu0 0.0
        %4703 = vmatprep.subr.mxu0 0.0
        %4704 = vmatpush1.xpose.msra.mxu0 0.0
        %4705 = vmatprep.subr.mxu0 0.0
        %4706 = vmatpush1.xpose.msra.mxu0 0.0
        %4707 = vmatprep.subr.mxu0 0.0
        %4708 = vmatpush1.xpose.msra.mxu0 0.0
        %4709 = vmatprep.subr.mxu0 0.0
        %4710 = vmatpush1.xpose.msra.mxu0 0.0
        %4711 = vmatprep.subr.mxu0 0.0
        %4712 = vmatpush1.xpose.msra.mxu0 0.0
        %4713 = vmatprep.mubr.f32.mxu0 0.0
        %4714 = vmatmul.mubr.f32.gmra.mrb[0].mxu0 %v4643
        %v4715 = vpop.f32.mrb[0].mxu0
        %v4716 = vadd.f32 0.0, %v4715
        %v4717 = vpop.f32.mrb[0].mxu0
        %4718 = vdwg.mxu0
        %4719 = vrot.lane.b32.xlu0 %v3395, 104
        %v4720 = vpop.permute.xlu0 %4719
        %4721 = vrot.lane.b32.xlu0 %v3498, 104
        %v4722 = vpop.permute.xlu0 %4721
        %4723 = vrot.lane.b32.xlu0 %v3503, 104
        %v4724 = vpop.permute.xlu0 %4723
        %v4725 = vsel %vm1810, %v4720, 0
        %v4727 = vsel %vm1810, %v4722, 0
        %v4729 = vsel %vm1810, %v4724, 0
        %4731 = vmatprep.subr.mxu0 0.0
        %4732 = vmatpush1.xpose.msra.mxu0 %v4727
        %4733 = vmatprep.subr.mxu0 0.0
        %4734 = vmatpush1.xpose.msra.mxu0 %v4729
        %4735 = vmatprep.subr.mxu0 0.0
        %4736 = vmatpush1.xpose.msra.mxu0 0.0
        %4737 = vmatprep.subr.mxu0 0.0
        %4738 = vmatpush1.xpose.msra.mxu0 0.0
        %4739 = vmatprep.subr.mxu0 0.0
        %4740 = vmatpush1.xpose.msra.mxu0 0.0
        %4741 = vmatprep.subr.mxu0 0.0
        %4742 = vmatpush1.xpose.msra.mxu0 0.0
        %4743 = vmatprep.subr.mxu0 0.0
        %4744 = vmatpush1.xpose.msra.mxu0 0.0
        %4745 = vmatprep.subr.mxu0 0.0
        %4746 = vmatpush1.xpose.msra.mxu0 0.0
        %4747 = vmatprep.subr.mxu0 0.0
        %4748 = vmatpush1.xpose.msra.mxu0 0.0
        %4749 = vmatprep.subr.mxu0 0.0
        %4750 = vmatpush1.xpose.msra.mxu0 0.0
        %4751 = vmatprep.subr.mxu0 0.0
        %4752 = vmatpush1.xpose.msra.mxu0 0.0
        %4753 = vmatprep.subr.mxu0 0.0
        %4754 = vmatpush1.xpose.msra.mxu0 0.0
        %4755 = vmatprep.subr.mxu0 0.0
        %4756 = vmatpush1.xpose.msra.mxu0 0.0
        %4757 = vmatprep.subr.mxu0 0.0
        %4758 = vmatpush1.xpose.msra.mxu0 0.0
        %4759 = vmatprep.subr.mxu0 0.0
        %4760 = vmatpush1.xpose.msra.mxu0 0.0
        %4761 = vmatprep.subr.mxu0 0.0
        %4762 = vmatpush1.xpose.msra.mxu0 0.0
        %4763 = vmatprep.subr.mxu0 0.0
        %4764 = vmatpush1.xpose.msra.mxu0 0.0
        %4765 = vmatprep.subr.mxu0 0.0
        %4766 = vmatpush1.xpose.msra.mxu0 0.0
        %4767 = vmatprep.subr.mxu0 0.0
        %4768 = vmatpush1.xpose.msra.mxu0 0.0
        %4769 = vmatprep.subr.mxu0 0.0
        %4770 = vmatpush1.xpose.msra.mxu0 0.0
        %4771 = vmatprep.subr.mxu0 0.0
        %4772 = vmatpush1.xpose.msra.mxu0 0.0
        %4773 = vmatprep.subr.mxu0 0.0
        %4774 = vmatpush1.xpose.msra.mxu0 0.0
        %4775 = vmatprep.subr.mxu0 0.0
        %4776 = vmatpush1.xpose.msra.mxu0 0.0
        %4777 = vmatprep.subr.mxu0 0.0
        %4778 = vmatpush1.xpose.msra.mxu0 0.0
        %4779 = vmatprep.subr.mxu0 0.0
        %4780 = vmatpush1.xpose.msra.mxu0 0.0
        %4781 = vmatprep.subr.mxu0 0.0
        %4782 = vmatpush1.xpose.msra.mxu0 0.0
        %4783 = vmatprep.subr.mxu0 0.0
        %4784 = vmatpush1.xpose.msra.mxu0 0.0
        %4785 = vmatprep.subr.mxu0 0.0
        %4786 = vmatpush1.xpose.msra.mxu0 0.0
        %4787 = vmatprep.subr.mxu0 0.0
        %4788 = vmatpush1.xpose.msra.mxu0 0.0
        %4789 = vmatprep.subr.mxu0 0.0
        %4790 = vmatpush1.xpose.msra.mxu0 0.0
        %4791 = vmatprep.subr.mxu0 0.0
        %4792 = vmatpush1.xpose.msra.mxu0 0.0
        %4793 = vmatprep.subr.mxu0 0.0
        %4794 = vmatpush1.xpose.msra.mxu0 0.0
        %4795 = vmatprep.mubr.f32.mxu0 0.0
        %4796 = vmatmul.mubr.f32.gmra.mrb[0].mxu0 %v4725
        %v4797 = vpop.f32.mrb[0].mxu0
        %v4798 = vadd.f32 0.0, %v4797
        %v4799 = vpop.f32.mrb[0].mxu0
        %4800 = vdwg.mxu0
        %v4801 = vmul.f32 %v4716, 0.35355338
        %v4802 = vmul.f32 %v4798, 0.35355338
        %v4803 = vsel %vm3766, %v4801, -1e+30
        %v4804 = vsel %vm3766, %v4802, -1e+30
        %v4805 = vsel %vm3157, %v4803, -inf
        %4806 = vmax.xlane.f32.xlu0 %v4805
        %v4807 = vpop.xlane.xlu0 %4806
        %v4808 = vsel %vm3157, %v4804, -inf
        %4809 = vmax.xlane.f32.xlu0 %v4808
        %v4810 = vpop.xlane.xlu0 %4809
        %v4811 = vsub.f32 %v4803, %v4807
        %v4812 = vsub.f32 %v4804, %v4810
        %v4813 = vmul.f32 %v4811, 1.442695
        %v4814 = vpow.pop %v4813
        %v4815 = vmul.f32 %v4812, 1.442695
        %v4816 = vpow.pop %v4815
        %v4817 = vsel %vm3157, %v4814, 0.0
        %4818 = vadd.xlane.f32.xlu0 %v4817
        %v4819 = vpop.xlane.xlu0 %4818
        %v4820 = vsel %vm3157, %v4816, 0.0
        %4821 = vadd.xlane.f32.xlu0 %v4820
        %v4822 = vpop.xlane.xlu0 %4821
        %v4823 = vrcp.pop %v4819
        %v4824 = vmul.f32 %v4814, %v4823
        %v4825 = vrcp.pop %v4822
        %v4826 = vmul.f32 %v4816, %v4825
        %4827 = vrot.lane.b32.xlu0 %v3584, 104
        %v4828 = vpop.permute.xlu0 %4827
        %4829 = vrot.lane.b32.xlu0 %v3589, 104
        %v4830 = vpop.permute.xlu0 %4829
        %v4834 = vsel %vm3157, %v4824, 0
        %4836 = vmatprep.subr.mxu0 0.0
        %4837 = vmatpush1.msra.mxu0 %v4828
        %4838 = vmatprep.subr.mxu0 0.0
        %4839 = vmatpush1.msra.mxu0 %v4830
        %4840 = vmatprep.subr.mxu0 0.0
        %4841 = vmatpush1.msra.mxu0 0.0
        %4842 = vmatprep.subr.mxu0 0.0
        %4843 = vmatpush1.msra.mxu0 0.0
        %4844 = vmatprep.subr.mxu0 0.0
        %4845 = vmatpush1.msra.mxu0 0.0
        %4846 = vmatprep.subr.mxu0 0.0
        %4847 = vmatpush1.msra.mxu0 0.0
        %4848 = vmatprep.subr.mxu0 0.0
        %4849 = vmatpush1.msra.mxu0 0.0
        %4850 = vmatprep.subr.mxu0 0.0
        %4851 = vmatpush1.msra.mxu0 0.0
        %4852 = vmatprep.subr.mxu0 0.0
        %4853 = vmatpush1.msra.mxu0 0.0
        %4854 = vmatprep.subr.mxu0 0.0
        %4855 = vmatpush1.msra.mxu0 0.0
        %4856 = vmatprep.subr.mxu0 0.0
        %4857 = vmatpush1.msra.mxu0 0.0
        %4858 = vmatprep.subr.mxu0 0.0
        %4859 = vmatpush1.msra.mxu0 0.0
        %4860 = vmatprep.subr.mxu0 0.0
        %4861 = vmatpush1.msra.mxu0 0.0
        %4862 = vmatprep.subr.mxu0 0.0
        %4863 = vmatpush1.msra.mxu0 0.0
        %4864 = vmatprep.subr.mxu0 0.0
        %4865 = vmatpush1.msra.mxu0 0.0
        %4866 = vmatprep.subr.mxu0 0.0
        %4867 = vmatpush1.msra.mxu0 0.0
        %4868 = vmatprep.subr.mxu0 0.0
        %4869 = vmatpush1.msra.mxu0 0.0
        %4870 = vmatprep.subr.mxu0 0.0
        %4871 = vmatpush1.msra.mxu0 0.0
        %4872 = vmatprep.subr.mxu0 0.0
        %4873 = vmatpush1.msra.mxu0 0.0
        %4874 = vmatprep.subr.mxu0 0.0
        %4875 = vmatpush1.msra.mxu0 0.0
        %4876 = vmatprep.subr.mxu0 0.0
        %4877 = vmatpush1.msra.mxu0 0.0
        %4878 = vmatprep.subr.mxu0 0.0
        %4879 = vmatpush1.msra.mxu0 0.0
        %4880 = vmatprep.subr.mxu0 0.0
        %4881 = vmatpush1.msra.mxu0 0.0
        %4882 = vmatprep.subr.mxu0 0.0
        %4883 = vmatpush1.msra.mxu0 0.0
        %4884 = vmatprep.subr.mxu0 0.0
        %4885 = vmatpush1.msra.mxu0 0.0
        %4886 = vmatprep.subr.mxu0 0.0
        %4887 = vmatpush1.msra.mxu0 0.0
        %4888 = vmatprep.subr.mxu0 0.0
        %4889 = vmatpush1.msra.mxu0 0.0
        %4890 = vmatprep.subr.mxu0 0.0
        %4891 = vmatpush1.msra.mxu0 0.0
        %4892 = vmatprep.subr.mxu0 0.0
        %4893 = vmatpush1.msra.mxu0 0.0
        %4894 = vmatprep.subr.mxu0 0.0
        %4895 = vmatpush1.msra.mxu0 0.0
        %4896 = vmatprep.subr.mxu0 0.0
        %4897 = vmatpush1.msra.mxu0 0.0
        %4898 = vmatprep.subr.mxu0 0.0
        %4899 = vmatpush1.msra.mxu0 0.0
        %4900 = vmatprep.mubr.f32.mxu0 0.0
        %4901 = vmatmul.mubr.f32.gmra.mrb[0].mxu0 %v4834
        %v4902 = vpop.f32.mrb[0].mxu0
        %v4903 = vadd.f32 0.0, %v4902
        %v4904 = vpop.f32.mrb[0].mxu0
        %4905 = vdwg.mxu0
        %4906 = vrot.lane.b32.xlu0 %v3594, 104
        %v4907 = vpop.permute.xlu0 %4906
        %4908 = vrot.lane.b32.xlu0 %v3599, 104
        %v4909 = vpop.permute.xlu0 %4908
        %v4913 = vsel %vm3157, %v4826, 0
        %4915 = vmatprep.subr.mxu0 0.0
        %4916 = vmatpush1.msra.mxu0 %v4907
        %4917 = vmatprep.subr.mxu0 0.0
        %4918 = vmatpush1.msra.mxu0 %v4909
        %4919 = vmatprep.subr.mxu0 0.0
        %4920 = vmatpush1.msra.mxu0 0.0
        %4921 = vmatprep.subr.mxu0 0.0
        %4922 = vmatpush1.msra.mxu0 0.0
        %4923 = vmatprep.subr.mxu0 0.0
        %4924 = vmatpush1.msra.mxu0 0.0
        %4925 = vmatprep.subr.mxu0 0.0
        %4926 = vmatpush1.msra.mxu0 0.0
        %4927 = vmatprep.subr.mxu0 0.0
        %4928 = vmatpush1.msra.mxu0 0.0
        %4929 = vmatprep.subr.mxu0 0.0
        %4930 = vmatpush1.msra.mxu0 0.0
        %4931 = vmatprep.subr.mxu0 0.0
        %4932 = vmatpush1.msra.mxu0 0.0
        %4933 = vmatprep.subr.mxu0 0.0
        %4934 = vmatpush1.msra.mxu0 0.0
        %4935 = vmatprep.subr.mxu0 0.0
        %4936 = vmatpush1.msra.mxu0 0.0
        %4937 = vmatprep.subr.mxu0 0.0
        %4938 = vmatpush1.msra.mxu0 0.0
        %4939 = vmatprep.subr.mxu0 0.0
        %4940 = vmatpush1.msra.mxu0 0.0
        %4941 = vmatprep.subr.mxu0 0.0
        %4942 = vmatpush1.msra.mxu0 0.0
        %4943 = vmatprep.subr.mxu0 0.0
        %4944 = vmatpush1.msra.mxu0 0.0
        %4945 = vmatprep.subr.mxu0 0.0
        %4946 = vmatpush1.msra.mxu0 0.0
        %4947 = vmatprep.subr.mxu0 0.0
        %4948 = vmatpush1.msra.mxu0 0.0
        %4949 = vmatprep.subr.mxu0 0.0
        %4950 = vmatpush1.msra.mxu0 0.0
        %4951 = vmatprep.subr.mxu0 0.0
        %4952 = vmatpush1.msra.mxu0 0.0
        %4953 = vmatprep.subr.mxu0 0.0
        %4954 = vmatpush1.msra.mxu0 0.0
        %4955 = vmatprep.subr.mxu0 0.0
        %4956 = vmatpush1.msra.mxu0 0.0
        %4957 = vmatprep.subr.mxu0 0.0
        %4958 = vmatpush1.msra.mxu0 0.0
        %4959 = vmatprep.subr.mxu0 0.0
        %4960 = vmatpush1.msra.mxu0 0.0
        %4961 = vmatprep.subr.mxu0 0.0
        %4962 = vmatpush1.msra.mxu0 0.0
        %4963 = vmatprep.subr.mxu0 0.0
        %4964 = vmatpush1.msra.mxu0 0.0
        %4965 = vmatprep.subr.mxu0 0.0
        %4966 = vmatpush1.msra.mxu0 0.0
        %4967 = vmatprep.subr.mxu0 0.0
        %4968 = vmatpush1.msra.mxu0 0.0
        %4969 = vmatprep.subr.mxu0 0.0
        %4970 = vmatpush1.msra.mxu0 0.0
        %4971 = vmatprep.subr.mxu0 0.0
        %4972 = vmatpush1.msra.mxu0 0.0
        %4973 = vmatprep.subr.mxu0 0.0
        %4974 = vmatpush1.msra.mxu0 0.0
        %4975 = vmatprep.subr.mxu0 0.0
        %4976 = vmatpush1.msra.mxu0 0.0
        %4977 = vmatprep.subr.mxu0 0.0
        %4978 = vmatpush1.msra.mxu0 0.0
        %4979 = vmatprep.mubr.f32.mxu0 0.0
        %4980 = vmatmul.mubr.f32.gmra.mrb[0].mxu0 %v4913
        %v4981 = vpop.f32.mrb[0].mxu0
        %v4982 = vadd.f32 0.0, %v4981
        %v4983 = vpop.f32.mrb[0].mxu0
        %4984 = vdwg.mxu0
        %4987 = vrot.lane.b32.xlu0 %v4205, 8
        %v4988 = vpop.permute.xlu0 %4987
        %4989 = vrot.lane.b32.xlu0 %v4286, 8
        %v4990 = vpop.permute.xlu0 %4989
        %4995 = vrot.lane.b32.xlu0 %v4555, 16
        %v4996 = vpop.permute.xlu0 %4995
        %4997 = vrot.lane.b32.xlu0 %v4634, 16
        %v4998 = vpop.permute.xlu0 %4997
        %5003 = vrot.lane.b32.xlu0 %v4903, 24
        %v5004 = vpop.permute.xlu0 %5003
        %5005 = vrot.lane.b32.xlu0 %v4982, 24
        %v5006 = vpop.permute.xlu0 %5005
        %v5009 = vsel %vm1810, %v3861, %v4988
        %v5010 = vsel %vm1810, %v3934, %v4990
        %v5011 = vsel %vm3157, %v5009, %v4996
        %v5012 = vsel %vm3157, %v5010, %v4998
        %v5013 = vsel %vm3160, %v5011, %v5004
        %v5014 = vsel %vm3160, %v5012, %v5006
        %v5015 = vld [vmem:[%s1244] sm:$0xff]
        %v5016 = vld [vmem:[%s1244 + $0x8] sm:$0xff]
        %v5017 = vld [vmem:[%s1244 + $0x10] sm:$0xff]
        %v5018 = vld [vmem:[%s1244 + $0x18] sm:$0xff]
        %v5019 = vld [vmem:[%s1252] sm:$0x1]
        %v5021 = vlaneseq
        %v5022 = vshrl.u32 %v5021, 7
        %v5023 = vsub.s32 0, %v5022
        %v5024 = vrot.slane %v5019, %v5023
        %v5027 = vsel %vm1556, %v5013, 0
        %v5030 = vsel %vm1556, %v5014, 0
        %5032 = vmatprep.subr.mxu0 0.0
        %5033 = vmatpush1.msra.mxu0 %v5015
        %5034 = vmatprep.subr.mxu0 0.0
        %5035 = vmatpush1.msra.mxu0 %v5016
        %5036 = vmatprep.subr.mxu0 0.0
        %5037 = vmatpush1.msra.mxu0 %v5017
        %5038 = vmatprep.subr.mxu0 0.0
        %5039 = vmatpush1.msra.mxu0 %v5018
        %5040 = vmatprep.subr.mxu0 0.0
        %5041 = vmatpush1.msra.mxu0 0.0
        %5042 = vmatprep.subr.mxu0 0.0
        %5043 = vmatpush1.msra.mxu0 0.0
        %5044 = vmatprep.subr.mxu0 0.0
        %5045 = vmatpush1.msra.mxu0 0.0
        %5046 = vmatprep.subr.mxu0 0.0
        %5047 = vmatpush1.msra.mxu0 0.0
        %5048 = vmatprep.subr.mxu0 0.0
        %5049 = vmatpush1.msra.mxu0 0.0
        %5050 = vmatprep.subr.mxu0 0.0
        %5051 = vmatpush1.msra.mxu0 0.0
        %5052 = vmatprep.subr.mxu0 0.0
        %5053 = vmatpush1.msra.mxu0 0.0
        %5054 = vmatprep.subr.mxu0 0.0
        %5055 = vmatpush1.msra.mxu0 0.0
        %5056 = vmatprep.subr.mxu0 0.0
        %5057 = vmatpush1.msra.mxu0 0.0
        %5058 = vmatprep.subr.mxu0 0.0
        %5059 = vmatpush1.msra.mxu0 0.0
        %5060 = vmatprep.subr.mxu0 0.0
        %5061 = vmatpush1.msra.mxu0 0.0
        %5062 = vmatprep.subr.mxu0 0.0
        %5063 = vmatpush1.msra.mxu0 0.0
        %5064 = vmatprep.subr.mxu0 0.0
        %5065 = vmatpush1.msra.mxu0 0.0
        %5066 = vmatprep.subr.mxu0 0.0
        %5067 = vmatpush1.msra.mxu0 0.0
        %5068 = vmatprep.subr.mxu0 0.0
        %5069 = vmatpush1.msra.mxu0 0.0
        %5070 = vmatprep.subr.mxu0 0.0
        %5071 = vmatpush1.msra.mxu0 0.0
        %5072 = vmatprep.subr.mxu0 0.0
        %5073 = vmatpush1.msra.mxu0 0.0
        %5074 = vmatprep.subr.mxu0 0.0
        %5075 = vmatpush1.msra.mxu0 0.0
        %5076 = vmatprep.subr.mxu0 0.0
        %5077 = vmatpush1.msra.mxu0 0.0
        %5078 = vmatprep.subr.mxu0 0.0
        %5079 = vmatpush1.msra.mxu0 0.0
        %5080 = vmatprep.subr.mxu0 0.0
        %5081 = vmatpush1.msra.mxu0 0.0
        %5082 = vmatprep.subr.mxu0 0.0
        %5083 = vmatpush1.msra.mxu0 0.0
        %5084 = vmatprep.subr.mxu0 0.0
        %5085 = vmatpush1.msra.mxu0 0.0
        %5086 = vmatprep.subr.mxu0 0.0
        %5087 = vmatpush1.msra.mxu0 0.0
        %5088 = vmatprep.subr.mxu0 0.0
        %5089 = vmatpush1.msra.mxu0 0.0
        %5090 = vmatprep.subr.mxu0 0.0
        %5091 = vmatpush1.msra.mxu0 0.0
        %5092 = vmatprep.subr.mxu0 0.0
        %5093 = vmatpush1.msra.mxu0 0.0
        %5094 = vmatprep.subr.mxu0 0.0
        %5095 = vmatpush1.msra.mxu0 0.0
        %5096 = vmatprep.mubr.f32.mxu0 0.0
        %5097 = vmatmul.mubr.f32.gmra.mrb[0].mxu0 %v5027
        %v5098 = vpop.f32.mrb[0].mxu0
        %v5099 = vadd.f32 %v5024, %v5098
        %v5100 = vpop.f32.mrb[0].mxu0
        %5101 = vmatprep.mubr.f32.mxu0 0.0
        %5102 = vmatmul.mubr.f32.gmra.mrb[0].mxu0 %v5030
        %v5103 = vpop.f32.mrb[0].mxu0
        %v5104 = vadd.f32 %v5024, %v5103
        %v5105 = vpop.f32.mrb[0].mxu0
        %5106 = vdwg.mxu0
        %v5107 = vadd.f32 %v3300, %v5099
        %v5108 = vadd.f32 %v3301, %v5104
        %v5109 = vsel %vm1556, %v5107, 0.0
        %5110 = vadd.xlane.f32.xlu0 %v5109
        %v5111 = vpop.xlane.xlu0 %5110
        %v5112 = vsel %vm1556, %v5108, 0.0
        %5113 = vadd.xlane.f32.xlu0 %v5112
        %v5114 = vpop.xlane.xlu0 %5113
        %v5115 = vmul.f32 %v5111, %v3263
        %v5116 = vmul.f32 %v5114, %v3263
        %v5117 = vsub.f32 %v5107, %v5115
        %v5118 = vsub.f32 %v5108, %v5116
        %v5119 = vmul.f32 %v5117, %v5117
        %v5120 = vmul.f32 %v5118, %v5118
        %v5121 = vsel %vm1556, %v5119, 0.0
        %5122 = vadd.xlane.f32.xlu0 %v5121
        %v5123 = vpop.xlane.xlu0 %5122
        %v5124 = vsel %vm1556, %v5120, 0.0
        %5125 = vadd.xlane.f32.xlu0 %v5124
        %v5126 = vpop.xlane.xlu0 %5125
        %v5127 = vmul.f32 %v5123, %v3263
        %v5128 = vmul.f32 %v5126, %v3263
        %v5129 = vadd.f32 %v5127, 1e-05
        %v5130 = vadd.f32 %v5128, 1e-05
        %v5131 = vrsqrt.pop %v5129
        %v5132 = vrsqrt.pop %v5130
        %v5133 = vmul.f32 %v5117, %v5131
        %v5134 = vmul.f32 %v5118, %v5132
        %v5135 = vld [vmem:[%s1292] sm:$0x1]
        %v5137 = vlaneseq
        %v5138 = vshrl.u32 %v5137, 7
        %v5139 = vsub.s32 0, %v5138
        %v5140 = vrot.slane %v5135, %v5139
        %v5142 = vmul.f32 %v5133, %v5140
        %v5143 = vmul.f32 %v5134, %v5140
        %v5144 = vld [vmem:[%s1300] sm:$0x1]
        %v5146 = vlaneseq
        %v5147 = vshrl.u32 %v5146, 7
        %v5148 = vsub.s32 0, %v5147
        %v5149 = vrot.slane %v5144, %v5148
        %v5151 = vadd.f32 %v5142, %v5149
        %v5152 = vadd.f32 %v5143, %v5149
        %v5153 = vld [vmem:[%s1528] sm:$0xff]
        %v5154 = vld [vmem:[%s1528 + $0x8] sm:$0xff]
        %v5155 = vld [vmem:[%s1528 + $0x10] sm:$0xff]
        %v5156 = vld [vmem:[%s1528 + $0x18] sm:$0xff]
        %v5157 = vld [vmem:[%s1260] sm:$0x1]
        %v5159 = vlaneseq
        %v5160 = vshrl.u32 %v5159, 7
        %v5161 = vsub.s32 0, %v5160
        %v5162 = vrot.slane %v5157, %v5161
        %v5165 = vsel %vm1556, %v5151, 0
        %v5168 = vsel %vm1556, %v5152, 0
        %5170 = vmatprep.subr.mxu0 0.0
        %5171 = vmatpush1.msra.mxu0 %v5153
        %5172 = vmatprep.subr.mxu0 0.0
        %5173 = vmatpush1.msra.mxu0 %v5154
        %5174 = vmatprep.subr.mxu0 0.0
        %5175 = vmatpush1.msra.mxu0 %v5155
        %5176 = vmatprep.subr.mxu0 0.0
        %5177 = vmatpush1.msra.mxu0 %v5156
        %5178 = vmatprep.subr.mxu0 0.0
        %5179 = vmatpush1.msra.mxu0 0.0
        %5180 = vmatprep.subr.mxu0 0.0
        %5181 = vmatpush1.msra.mxu0 0.0
        %5182 = vmatprep.subr.mxu0 0.0
        %5183 = vmatpush1.msra.mxu0 0.0
        %5184 = vmatprep.subr.mxu0 0.0
        %5185 = vmatpush1.msra.mxu0 0.0
        %5186 = vmatprep.subr.mxu0 0.0
        %5187 = vmatpush1.msra.mxu0 0.0
        %5188 = vmatprep.subr.mxu0 0.0
        %5189 = vmatpush1.msra.mxu0 0.0
        %5190 = vmatprep.subr.mxu0 0.0
        %5191 = vmatpush1.msra.mxu0 0.0
        %5192 = vmatprep.subr.mxu0 0.0
        %5193 = vmatpush1.msra.mxu0 0.0
        %5194 = vmatprep.subr.mxu0 0.0
        %5195 = vmatpush1.msra.mxu0 0.0
        %5196 = vmatprep.subr.mxu0 0.0
        %5197 = vmatpush1.msra.mxu0 0.0
        %5198 = vmatprep.subr.mxu0 0.0
        %5199 = vmatpush1.msra.mxu0 0.0
        %5200 = vmatprep.subr.mxu0 0.0
        %5201 = vmatpush1.msra.mxu0 0.0
        %5202 = vmatprep.subr.mxu0 0.0
        %5203 = vmatpush1.msra.mxu0 0.0
        %5204 = vmatprep.subr.mxu0 0.0
        %5205 = vmatpush1.msra.mxu0 0.0
        %5206 = vmatprep.subr.mxu0 0.0
        %5207 = vmatpush1.msra.mxu0 0.0
        %5208 = vmatprep.subr.mxu0 0.0
        %5209 = vmatpush1.msra.mxu0 0.0
        %5210 = vmatprep.subr.mxu0 0.0
        %5211 = vmatpush1.msra.mxu0 0.0
        %5212 = vmatprep.subr.mxu0 0.0
        %5213 = vmatpush1.msra.mxu0 0.0
        %5214 = vmatprep.subr.mxu0 0.0
        %5215 = vmatpush1.msra.mxu0 0.0
        %5216 = vmatprep.subr.mxu0 0.0
        %5217 = vmatpush1.msra.mxu0 0.0
        %5218 = vmatprep.subr.mxu0 0.0
        %5219 = vmatpush1.msra.mxu0 0.0
        %5220 = vmatprep.subr.mxu0 0.0
        %5221 = vmatpush1.msra.mxu0 0.0
        %5222 = vmatprep.subr.mxu0 0.0
        %5223 = vmatpush1.msra.mxu0 0.0
        %5224 = vmatprep.subr.mxu0 0.0
        %5225 = vmatpush1.msra.mxu0 0.0
        %5226 = vmatprep.subr.mxu0 0.0
        %5227 = vmatpush1.msra.mxu0 0.0
        %5228 = vmatprep.subr.mxu0 0.0
        %5229 = vmatpush1.msra.mxu0 0.0
        %5230 = vmatprep.subr.mxu0 0.0
        %5231 = vmatpush1.msra.mxu0 0.0
        %5232 = vmatprep.subr.mxu0 0.0
        %5233 = vmatpush1.msra.mxu0 0.0
        %5234 = vmatprep.mubr.f32.mxu0 0.0
        %5235 = vmatmul.mubr.f32.gmra.mrb[0].mxu0 %v5165
        %v5236 = vpop.f32.mrb[0].mxu0
        %v5237 = vadd.f32 %v5162, %v5236
        %v5238 = vpop.f32.mrb[0].mxu0
        %5239 = vmatprep.mubr.f32.mxu0 0.0
        %5240 = vmatmul.mubr.f32.gmra.mrb[0].mxu0 %v5168
        %v5241 = vpop.f32.mrb[0].mxu0
        %v5242 = vadd.f32 %v5162, %v5241
        %v5243 = vpop.f32.mrb[0].mxu0
        %5244 = vdwg.mxu0
        %v5245 = vmax.f32 %v5237, 0.0
        %v5246 = vmax.f32 %v5242, 0.0
        %v5247 = vld [vmem:[%s1533] sm:$0xff]
        %v5248 = vld [vmem:[%s1533 + $0x8] sm:$0xff]
        %v5249 = vld [vmem:[%s1533 + $0x10] sm:$0xff]
        %v5250 = vld [vmem:[%s1533 + $0x18] sm:$0xff]
        %v5251 = vld [vmem:[%s1533 + $0x20] sm:$0xff]
        %v5252 = vld [vmem:[%s1533 + $0x28] sm:$0xff]
        %v5253 = vld [vmem:[%s1533 + $0x30] sm:$0xff]
        %v5254 = vld [vmem:[%s1533 + $0x38] sm:$0xff]
        %v5255 = vld [vmem:[%s1268] sm:$0x1]
        %v5257 = vlaneseq
        %v5258 = vshrl.u32 %v5257, 7
        %v5259 = vsub.s32 0, %v5258
        %v5260 = vrot.slane %v5255, %v5259
        %vm5262 = vcmask 523264
        %v5264 = vsel %vm5262, %v5245, 0
        %v5267 = vsel %vm5262, %v5246, 0
        %5269 = vmatprep.subr.mxu0 0.0
        %5270 = vmatpush1.msra.mxu0 %v5247
        %5271 = vmatprep.subr.mxu0 0.0
        %5272 = vmatpush1.msra.mxu0 %v5248
        %5273 = vmatprep.subr.mxu0 0.0
        %5274 = vmatpush1.msra.mxu0 %v5249
        %5275 = vmatprep.subr.mxu0 0.0
        %5276 = vmatpush1.msra.mxu0 %v5250
        %5277 = vmatprep.subr.mxu0 0.0
        %5278 = vmatpush1.msra.mxu0 %v5251
        %5279 = vmatprep.subr.mxu0 0.0
        %5280 = vmatpush1.msra.mxu0 %v5252
        %5281 = vmatprep.subr.mxu0 0.0
        %5282 = vmatpush1.msra.mxu0 %v5253
        %5283 = vmatprep.subr.mxu0 0.0
        %5284 = vmatpush1.msra.mxu0 %v5254
        %5285 = vmatprep.subr.mxu0 0.0
        %5286 = vmatpush1.msra.mxu0 0.0
        %5287 = vmatprep.subr.mxu0 0.0
        %5288 = vmatpush1.msra.mxu0 0.0
        %5289 = vmatprep.subr.mxu0 0.0
        %5290 = vmatpush1.msra.mxu0 0.0
        %5291 = vmatprep.subr.mxu0 0.0
        %5292 = vmatpush1.msra.mxu0 0.0
        %5293 = vmatprep.subr.mxu0 0.0
        %5294 = vmatpush1.msra.mxu0 0.0
        %5295 = vmatprep.subr.mxu0 0.0
        %5296 = vmatpush1.msra.mxu0 0.0
        %5297 = vmatprep.subr.mxu0 0.0
        %5298 = vmatpush1.msra.mxu0 0.0
        %5299 = vmatprep.subr.mxu0 0.0
        %5300 = vmatpush1.msra.mxu0 0.0
        %5301 = vmatprep.subr.mxu0 0.0
        %5302 = vmatpush1.msra.mxu0 0.0
        %5303 = vmatprep.subr.mxu0 0.0
        %5304 = vmatpush1.msra.mxu0 0.0
        %5305 = vmatprep.subr.mxu0 0.0
        %5306 = vmatpush1.msra.mxu0 0.0
        %5307 = vmatprep.subr.mxu0 0.0
        %5308 = vmatpush1.msra.mxu0 0.0
        %5309 = vmatprep.subr.mxu0 0.0
        %5310 = vmatpush1.msra.mxu0 0.0
        %5311 = vmatprep.subr.mxu0 0.0
        %5312 = vmatpush1.msra.mxu0 0.0
        %5313 = vmatprep.subr.mxu0 0.0
        %5314 = vmatpush1.msra.mxu0 0.0
        %5315 = vmatprep.subr.mxu0 0.0
        %5316 = vmatpush1.msra.mxu0 0.0
        %5317 = vmatprep.subr.mxu0 0.0
        %5318 = vmatpush1.msra.mxu0 0.0
        %5319 = vmatprep.subr.mxu0 0.0
        %5320 = vmatpush1.msra.mxu0 0.0
        %5321 = vmatprep.subr.mxu0 0.0
        %5322 = vmatpush1.msra.mxu0 0.0
        %5323 = vmatprep.subr.mxu0 0.0
        %5324 = vmatpush1.msra.mxu0 0.0
        %5325 = vmatprep.subr.mxu0 0.0
        %5326 = vmatpush1.msra.mxu0 0.0
        %5327 = vmatprep.subr.mxu0 0.0
        %5328 = vmatpush1.msra.mxu0 0.0
        %5329 = vmatprep.subr.mxu0 0.0
        %5330 = vmatpush1.msra.mxu0 0.0
        %5331 = vmatprep.subr.mxu0 0.0
        %5332 = vmatpush1.msra.mxu0 0.0
        %5333 = vmatprep.mubr.f32.mxu0 0.0
        %5334 = vmatmul.mubr.f32.gmra.mrb[0].mxu0 %v5264
        %v5335 = vpop.f32.mrb[0].mxu0
        %v5336 = vadd.f32 %v5260, %v5335
        %v5337 = vpop.f32.mrb[0].mxu0
        %5338 = vmatprep.mubr.f32.mxu0 0.0
        %5339 = vmatmul.mubr.f32.gmra.mrb[0].mxu0 %v5267
        %v5340 = vpop.f32.mrb[0].mxu0
        %v5341 = vadd.f32 %v5260, %v5340
        %v5342 = vpop.f32.mrb[0].mxu0
        %5343 = vdwg.mxu0
        %v5344 = vadd.f32 %v5151, %v5336
        %v5345 = vadd.f32 %v5152, %v5341
        %v5346 = vsel %vm1556, %v5344, 0.0
        %5347 = vadd.xlane.f32.xlu0 %v5346
        %v5348 = vpop.xlane.xlu0 %5347
        %v5349 = vsel %vm1556, %v5345, 0.0
        %5350 = vadd.xlane.f32.xlu0 %v5349
        %v5351 = vpop.xlane.xlu0 %5350
        %v5352 = vmul.f32 %v5348, %v3263
        %v5353 = vmul.f32 %v5351, %v3263
        %v5354 = vsub.f32 %v5344, %v5352
        %v5355 = vsub.f32 %v5345, %v5353
        %v5356 = vmul.f32 %v5354, %v5354
        %v5357 = vmul.f32 %v5355, %v5355
        %v5358 = vsel %vm1556, %v5356, 0.0
        %5359 = vadd.xlane.f32.xlu0 %v5358
        %v5360 = vpop.xlane.xlu0 %5359
        %v5361 = vsel %vm1556, %v5357, 0.0
        %5362 = vadd.xlane.f32.xlu0 %v5361
        %v5363 = vpop.xlane.xlu0 %5362
        %v5364 = vmul.f32 %v5360, %v3263
        %v5365 = vmul.f32 %v5363, %v3263
        %v5366 = vadd.f32 %v5364, 1e-05
        %v5367 = vadd.f32 %v5365, 1e-05
        %v5368 = vrsqrt.pop %v5366
        %v5369 = vrsqrt.pop %v5367
        %v5370 = vmul.f32 %v5354, %v5368
        %v5371 = vmul.f32 %v5355, %v5369
        %v5372 = vld [vmem:[%s1308] sm:$0x1]
        %v5374 = vlaneseq
        %v5375 = vshrl.u32 %v5374, 7
        %v5376 = vsub.s32 0, %v5375
        %v5377 = vrot.slane %v5372, %v5376
        %v5379 = vmul.f32 %v5370, %v5377
        %v5380 = vmul.f32 %v5371, %v5377
        %v5381 = vld [vmem:[%s1316] sm:$0x1]
        %v5383 = vlaneseq
        %v5384 = vshrl.u32 %v5383, 7
        %v5385 = vsub.s32 0, %v5384
        %v5386 = vrot.slane %v5381, %v5385
        %v5388 = vadd.f32 %v5379, %v5386
        %v5389 = vadd.f32 %v5380, %v5386
        %p5390 = scmp.lt.s32.totalorder %s66, 1
        // Predicated region
        $region201: #{_lambda_.1} parent=131 // pred_check
          %p5391 = pneg %p5390
        $region202: #{_lambda_.1} parent=131 // pred_check_branch
          %5393 = sbr.rel (%p5391) target = $region204
        $region203: #{_lambda_.1} parent=131 // pred_region
          %5394 = vst.msk [vmem:[#allocation2] sm:$0xff] %vm1556, %v5388
          %5395 = vst.msk [vmem:[#allocation2 + $0x8] sm:$0xff] %vm1556, %v5389
        $region204: #{_lambda_.1} parent=131 // pred_fallthru
          _
        %p5396 = scmp.eq.s32.totalorder %s66, 1
        // Predicated region
        $region205: #{_lambda_.1} parent=131 // pred_check
          %p5397 = pneg %p5396
        $region206: #{_lambda_.1} parent=131 // pred_check_branch
          %5399 = sbr.rel (%p5397) target = $region208
        $region207: #{_lambda_.1} parent=131 // pred_region
          %5400 = vst.msk [vmem:[%s28] sm:$0xff] %vm1556, %v5388
          %5401 = vst.msk [vmem:[%s28 + $0x8] sm:$0xff] %vm1556, %v5389
        $region208: #{_lambda_.1} parent=131 // pred_fallthru
          _
        // Predicated region
        $region209: #{_lambda_.1} parent=131 // pred_check
          %p5402 = pneg %p797
        $region210: #{_lambda_.1} parent=131 // pred_check_branch
          %5404 = sbr.rel (%p5402) target = $region212
        $region211: #{_lambda_.1} parent=131 // pred_region
          _
        $region212: #{_lambda_.1} parent=131 // pred_fallthru
          _
        // Predicated region
        $region213: #{_lambda_.1} parent=131 // pred_check
          %p5405 = pneg %p797
        $region214: #{_lambda_.1} parent=131 // pred_check_branch
          %5407 = sbr.rel (%p5405) target = $region216
        $region215: #{_lambda_.1} parent=131 // pred_region
          _
        $region216: #{_lambda_.1} parent=131 // pred_fallthru
          _
      $region132: #{_lambda_.1} parent=5 // pred_fallthru
        _
      %p5408 = scmp.le.s32.totalorder 2, %s61
      // Predicated region
      $region217: #{_lambda_.1} parent=5 // pred_check
        %p5409 = pneg %p5408
      $region218: #{_lambda_.1} parent=5 // pred_check_branch
        %5411 = sbr.rel (%p5409) target = $region220
      $region219: #{_lambda_.1} parent=5 // pred_region
        %s5412 = ssub.s32 %s61, 2
      $region220: #{_lambda_.1} parent=5 // pred_fallthru
        _
    $region6: #{_lambda_.1} parent=1 // loop_footer
      %s65 = sadd.s32 1, %s61
    $region7: #{_lambda_.1} parent=1 // loop_footer_branch
      %60 = sbr.rel target = $region3
    $region8: #{_lambda_.1} parent=1 // loop_exit
      _
    %5413 = vsyncpa [#allocation4], 1
    %s5414 = scalar_lea.sflag [#allocation4], 1
    %5415 = vsyncpa %s5414, 1
    %5416 = vsyncpa [#allocation6], 1
    %s5417 = scalar_lea.sflag [#allocation6], 1
    %5418 = vsyncpa %s5417, 1
    %5419 = vsyncpa [#allocation9], 1
    %s5420 = scalar_lea.sflag [#allocation9], 1
    %5421 = vsyncpa %s5420, 1
    %5422 = vsyncpa [#allocation12], 1
    %s5423 = scalar_lea.sflag [#allocation12], 1
    %5424 = vsyncpa %s5423, 1
    %5425 = vsyncpa [#allocation15], 1
    %s5426 = scalar_lea.sflag [#allocation15], 1
    %5427 = vsyncpa %s5426, 1
    %5428 = vsyncpa [#allocation18], 1
    %s5429 = scalar_lea.sflag [#allocation18], 1
    %5430 = vsyncpa %s5429, 1
    %5431 = vsyncpa [#allocation21], 1
    %s5432 = scalar_lea.sflag [#allocation21], 1
    %5433 = vsyncpa %s5432, 1
    %5434 = vsyncpa [#allocation24], 1
    %s5435 = scalar_lea.sflag [#allocation24], 1
    %5436 = vsyncpa %s5435, 1
    %5437 = vsyncpa [#allocation27], 1
    %s5438 = scalar_lea.sflag [#allocation27], 1
    %5439 = vsyncpa %s5438, 1

</llo_original>
